<compile_context>
chip_gen: v7x
topology: tpu7x:2x2x1
jax: 0.10.0
libtpu: 0.0.40
codegen_flags: <defaults>
</compile_context>

<pallas_src>
import functools
import math

import jax
import jax.numpy as jnp
from jax.experimental import pallas as pl
from jax.experimental.pallas import tpu as pltpu

_VMEM_LIMIT = 48 * 1024 * 1024   # above 16/32 MiB defaults, below v7x physical


# --------------------------------------------------------------------------
# tiling helpers (review item: no full-dim fallback for huge dims)
# --------------------------------------------------------------------------
def _round_up(x, m):
    return ((x + m - 1) // m) * m


def _tile_and_pad(dim, max_tile):
    """Return (tile, padded_dim): full dim as one tile when small enough,
    otherwise a fixed (8,128)-aligned tile with the array zero-padded."""
    if dim <= max_tile:
        return dim, dim
    return max_tile, _round_up(dim, max_tile)


def _attn_chunk(S):
    # v5e's MXU is 128-wide: prefer chunk=128 there, 256 on v6e/v7x.
    pref = 256
    try:
        kind = jax.devices()[0].device_kind.lower()
        if "v5e" in kind or "v5 lite" in kind or "v5litepod" in kind:
            pref = 128
    except Exception:
        pass
    for c in (pref, 128, 64, 32, 16, 8):
        if S % c == 0:
            return c
    return S


# --------------------------------------------------------------------------
# LayerNorm / Linear kernels
# --------------------------------------------------------------------------
def _layernorm_kernel(x_ref, g_ref, b_ref, o_ref):
    x = x_ref[...].astype(jnp.float32)
    mu = jnp.mean(x, axis=-1, keepdims=True)
    var = jnp.mean(jnp.square(x - mu), axis=-1, keepdims=True)
    y = (x - mu) * jax.lax.rsqrt(var + 1e-5)
    o_ref[...] = (y * g_ref[...] + b_ref[...]).astype(o_ref.dtype)


def layernorm(x2d, gamma, beta, out_dtype=jnp.float32):
    R, E = x2d.shape
    tr, Rp = _tile_and_pad(R, 256)
    xp = x2d if Rp == R else jnp.pad(x2d, ((0, Rp - R), (0, 0)))
    out = pl.pallas_call(
        _layernorm_kernel,
        out_shape=jax.ShapeDtypeStruct((Rp, E), out_dtype),
        grid=(Rp // tr,),
        in_specs=[pl.BlockSpec((tr, E), lambda i: (i, 0)),
                  pl.BlockSpec((1, E), lambda i: (0, 0)),
                  pl.BlockSpec((1, E), lambda i: (0, 0))],
        out_specs=pl.BlockSpec((tr, E), lambda i: (i, 0)),
        compiler_params=pltpu.CompilerParams(
            dimension_semantics=("parallel",),
            vmem_limit_bytes=_VMEM_LIMIT),
    )(xp, gamma.reshape(1, E), beta.reshape(1, E))
    return out if Rp == R else out[:R]


def _ln_linear_kernel(x_ref, g_ref, bln_ref, w_ref, b_ref, o_ref, *, activation):
    # fused LayerNorm -> matmul (-> optional GELU)
    x = x_ref[...].astype(jnp.float32)
    mu = jnp.mean(x, axis=-1, keepdims=True)
    var = jnp.mean(jnp.square(x - mu), axis=-1, keepdims=True)
    xn = (x - mu) * jax.lax.rsqrt(var + 1e-5)
    xn = xn * g_ref[...] + bln_ref[...]
    y = jnp.dot(xn.astype(jnp.bfloat16), w_ref[...],
                preferred_element_type=jnp.float32)
    y = y + b_ref[...]
    if activation == "gelu":
        # TODO(synk): reference nn.GELU() is exact erf; tanh approx kept (EUP-safe).
        y = jax.nn.gelu(y, approximate=True)
    o_ref[...] = y.astype(o_ref.dtype)


def ln_linear(x2d, gamma, beta, w, b, activation=None, out_dtype=jnp.bfloat16):
    R, E = x2d.shape
    N = w.shape[1]
    tr, Rp = _tile_and_pad(R, 256)
    xp = x2d if Rp == R else jnp.pad(x2d, ((0, Rp - R), (0, 0)))
    out = pl.pallas_call(
        functools.partial(_ln_linear_kernel, activation=activation),
        out_shape=jax.ShapeDtypeStruct((Rp, N), out_dtype),
        grid=(Rp // tr,),
        in_specs=[pl.BlockSpec((tr, E), lambda i: (i, 0)),
                  pl.BlockSpec((1, E), lambda i: (0, 0)),
                  pl.BlockSpec((1, E), lambda i: (0, 0)),
                  pl.BlockSpec((E, N), lambda i: (0, 0)),
                  pl.BlockSpec((1, N), lambda i: (0, 0))],
        out_specs=pl.BlockSpec((tr, N), lambda i: (i, 0)),
        compiler_params=pltpu.CompilerParams(
            dimension_semantics=("parallel",),
            vmem_limit_bytes=_VMEM_LIMIT),
    )(xp, gamma.reshape(1, E), beta.reshape(1, E), w, b.reshape(1, N))
    return out if Rp == R else out[:R]


def _linear_kernel(x_ref, w_ref, b_ref, o_ref, *, activation):
    y = jnp.dot(x_ref[...].astype(jnp.bfloat16), w_ref[...],
                preferred_element_type=jnp.float32)
    y = y + b_ref[...]
    if activation == "gelu":
        y = jax.nn.gelu(y, approximate=True)
    o_ref[...] = y.astype(o_ref.dtype)


def _linear_res_kernel(x_ref, w_ref, b_ref, res_ref, o_ref):
    # matmul with fused residual add (residual stream stays f32)
    y = jnp.dot(x_ref[...].astype(jnp.bfloat16), w_ref[...],
                preferred_element_type=jnp.float32)
    o_ref[...] = (y + b_ref[...] + res_ref[...].astype(jnp.float32)).astype(o_ref.dtype)


def linear(x2d, w, b, activation=None, residual=None,
           out_dtype=jnp.float32, weight_major=False):
    R, K = x2d.shape
    N = w.shape[1]
    tr, Rp = _tile_and_pad(R, 256)
    tn, Np = _tile_and_pad(N, 512)
    xp = x2d if Rp == R else jnp.pad(x2d, ((0, Rp - R), (0, 0)))
    wp = w if Np == N else jnp.pad(w, ((0, 0), (0, Np - N)))
    bp = (b if Np == N else jnp.pad(b, ((0, Np - N),))).reshape(1, Np)
    ni, nj = Rp // tr, Np // tn

    if weight_major:
        # Column tiles on the OUTER axis, rows inner: each weight block stays
        # resident across the inner row sweep, so the big lm-head weight is
        # streamed from HBM approximately once.
        grid = (nj, ni)
        xm = lambda j, i: (i, 0)
        wm = lambda j, i: (0, j)
        bm = lambda j, i: (0, j)
        om = lambda j, i: (i, j)
    else:
        grid = (ni, nj)
        xm = lambda i, j: (i, 0)
        wm = lambda i, j: (0, j)
        bm = lambda i, j: (0, j)
        om = lambda i, j: (i, j)

    in_specs = [pl.BlockSpec((tr, K), xm),
                pl.BlockSpec((K, tn), wm),
                pl.BlockSpec((1, tn), bm)]
    args = [xp, wp, bp]
    if residual is None:
        kernel = functools.partial(_linear_kernel, activation=activation)
    else:
        kernel = _linear_res_kernel
        resp = residual
        if Rp != R:
            resp = jnp.pad(resp, ((0, Rp - R), (0, 0)))
        if Np != N:
            resp = jnp.pad(resp, ((0, 0), (0, Np - N)))
        in_specs.append(pl.BlockSpec((tr, tn), om))
        args.append(resp)

    out = pl.pallas_call(
        kernel,
        out_shape=jax.ShapeDtypeStruct((Rp, Np), out_dtype),
        grid=grid,
        in_specs=in_specs,
        out_specs=pl.BlockSpec((tr, tn), om),
        compiler_params=pltpu.CompilerParams(
            dimension_semantics=("parallel", "parallel"),
            vmem_limit_bytes=_VMEM_LIMIT),
    )(*args)
    if Rp != R or Np != N:
        out = out[:R, :N]
    return out


# --------------------------------------------------------------------------
# FAVOR+ causal attention: sequence-chunk grid axis with carried prefix state
# --------------------------------------------------------------------------
def _favor_attn_kernel(qkv_ref, proj_ref, hsum_ref, o_ref,
                       state_ref, ksum_ref, kmax_ref,
                       *, num_heads, head_dim, nb_features):
    # qkv_ref  : (1, T, 3E) bf16   current sequence chunk, all heads
    # proj_ref : (E, H*M)   bf16   block-diag per-head features (dn folded in)
    # hsum_ref : (E, H)     f32    per-head sum-of-squares reducer (0.5*dn^2)
    # o_ref    : (1, T, E)  bf16
    # scratch (carried across the chunk grid axis, reset at chunk 0):
    #   state_ref: (H, M, Dh) f32  running  sum_j k'_j (x) v_j
    #   ksum_ref : (H, 1, M)  f32  running  sum_j k'_j
    #   kmax_ref : (H, 1, 1)  f32  running stabiliser max over k_dash
    H, M, Dh = num_heads, nb_features, head_dim
    E = H * Dh
    c = pl.program_id(1)

    @pl.when(c == 0)
    def _():
        state_ref[...] = jnp.zeros_like(state_ref)
        ksum_ref[...] = jnp.zeros_like(ksum_ref)
        kmax_ref[...] = jnp.full(kmax_ref.shape, -1e30, jnp.float32)

    qkv = qkv_ref[0]                                   # (T, 3E) bf16
    T = qkv.shape[0]
    ratio = 1.0 / math.sqrt(M)
    eps = 1e-4

    q = qkv[:, 0:E]
    k = qkv[:, E:2 * E]
    qf = q.astype(jnp.float32)
    kf = k.astype(jnp.float32)
    proj = proj_ref[...]                               # (E, H*M) bf16
    hsum = hsum_ref[...]                               # (E, H)   f32

    # feature maps for ALL heads at once: contraction dim is E (lane-dense)
    q_dash = jnp.dot(q, proj, preferred_element_type=jnp.float32)       # (T, H*M)
    k_dash = jnp.dot(k, proj, preferred_element_type=jnp.float32)       # (T, H*M)
    q_diag = jnp.dot(qf * qf, hsum, preferred_element_type=jnp.float32)  # (T, H)
    k_diag = jnp.dot(kf * kf, hsum, preferred_element_type=jnp.float32)  # (T, H)

    # intra-chunk causal mask (identical for every chunk; offsets cancel)
    row = jax.lax.broadcasted_iota(jnp.int32, (T, T), 0)
    col = jax.lax.broadcasted_iota(jnp.int32, (T, T), 1)
    causal = (row >= col).astype(jnp.float32)

    head_outs = []
    for h in range(H):
        qdash = q_dash[:, h * M:(h + 1) * M]
        kdash = k_dash[:, h * M:(h + 1) * M]
        qdiag = q_diag[:, h:h + 1]
        kdiag = k_diag[:, h:h + 1]
        v = qkv[:, 2 * E + h * Dh:2 * E + (h + 1) * Dh].astype(jnp.float32)

        q_prime = ratio * (jnp.exp(
            qdash - qdiag - jnp.max(qdash, axis=-1, keepdims=True)) + eps)

        # running key stabiliser: rescale carried state when the max grows.
        # TODO(synk): rescaling also scales the +eps regulariser of earlier
        # chunks (reference uses one global max); deviation is O(eps).
        m_old = kmax_ref[h]                                            # (1, 1)
        cmax = jnp.max(jnp.max(kdash, axis=-1, keepdims=True),
                       axis=0, keepdims=True)
        m_new = jnp.maximum(m_old, cmax)
        scale = jnp.exp(m_old - m_new)
        state = state_ref[h] * scale                                   # (M, Dh)
        ksum = ksum_ref[h] * scale                                     # (1, M)
        k_prime = ratio * (jnp.exp(kdash - kdiag - m_new) + eps)       # (T, M)

        # contribution of all previous chunks via the carried prefix state
        num = jnp.dot(q_prime, state, preferred_element_type=jnp.float32)  # (T, Dh)
        den = jax.lax.dot_general(q_prime, ksum, (((1,), (1,)), ((), ())),
                                  preferred_element_type=jnp.float32)      # (T, 1)

        # intra-chunk causal part (T x T only, never S x S)
        A = jax.lax.dot_general(q_prime, k_prime, (((1,), (1,)), ((), ())),
                                preferred_element_type=jnp.float32) * causal
        num = num + jnp.dot(A, v, preferred_element_type=jnp.float32)
        den = den + jnp.sum(A, axis=-1, keepdims=True)
        head_outs.append(num / den)                                    # (T, Dh)

        # fold this chunk into the carried prefix state
        state_ref[h] = state + jax.lax.dot_general(
            k_prime, v, (((0,), (0,)), ((), ())),
            preferred_element_type=jnp.float32)
        ksum_ref[h] = ksum + jnp.sum(k_prime, axis=0, keepdims=True)
        kmax_ref[h] = m_new

    # single lane-dense (T, E) store covering all heads
    o_ref[0] = jnp.concatenate(head_outs, axis=-1).astype(o_ref.dtype)


def favor_causal_attention(qkv, proj_blk, head_sq, num_heads):
    B, S, three_e = qkv.shape
    E = three_e // 3
    head_dim = E // num_heads
    M = proj_blk.shape[1] // num_heads
    chunk = _attn_chunk(S)
    n_chunks = S // chunk
    return pl.pallas_call(
        functools.partial(_favor_attn_kernel, num_heads=num_heads,
                          head_dim=head_dim, nb_features=M),
        out_shape=jax.ShapeDtypeStruct((B, S, E), jnp.bfloat16),
        grid=(B, n_chunks),
        in_specs=[pl.BlockSpec((1, chunk, three_e), lambda b, c: (b, c, 0)),
                  pl.BlockSpec((E, num_heads * M), lambda b, c: (0, 0)),
                  pl.BlockSpec((E, num_heads), lambda b, c: (0, 0))],
        out_specs=pl.BlockSpec((1, chunk, E), lambda b, c: (b, c, 0)),
        scratch_shapes=[
            pltpu.VMEM((num_heads, M, head_dim), jnp.float32),
            pltpu.VMEM((num_heads, 1, M), jnp.float32),
            pltpu.VMEM((num_heads, 1, 1), jnp.float32),
        ],
        compiler_params=pltpu.CompilerParams(
            dimension_semantics=("parallel", "arbitrary"),
            vmem_limit_bytes=_VMEM_LIMIT),
    )(qkv, proj_blk, head_sq)


# --------------------------------------------------------------------------
# Parameter construction (deterministic, synthetic)
# --------------------------------------------------------------------------
def sinusoidal_pe(max_len, embed_size):
    pos = jnp.arange(max_len, dtype=jnp.float32)[:, None]
    div = jnp.exp(jnp.arange(0, embed_size, 2, dtype=jnp.float32)
                  * (-math.log(10000.0) / embed_size))
    pe = jnp.zeros((max_len, embed_size), jnp.float32)
    pe = pe.at[:, 0::2].set(jnp.sin(pos * div))
    pe = pe.at[:, 1::2].set(jnp.cos(pos * div))
    return pe


def init_params(key, vocab_size, embed_size, num_heads, num_layers,
                max_seq_len, nb_features):
    E, H, M = embed_size, num_heads, nb_features
    Dh = E // H
    dn = 1.0 / math.sqrt(math.sqrt(Dh))     # data_normalizer
    scale = 0.02
    keys = jax.random.split(key, 2 + num_layers)

    def dense(k, fan_in, fan_out):
        # weights stored bf16 for MXU throughput / halved HBM + VMEM bytes
        return (scale * jax.random.normal(k, (fan_in, fan_out),
                                          jnp.float32)).astype(jnp.bfloat16)

    # per-head sum-of-squares reducer (0.5 * dn^2 folded in): (q*q) @ head_sq
    # gives the FAVOR+ diag term for every head in one tiny matmul.
    head_sq = jnp.zeros((E, H), jnp.float32)
    for h in range(H):
        head_sq = head_sq.at[h * Dh:(h + 1) * Dh, h].set(0.5 * dn * dn)

    layers = []
    for li in range(num_layers):
        lk = jax.random.split(keys[2 + li], 5)
        # shared random-feature projection, stacked block-diagonally so the
        # q_dash/k_dash matmul contracts over E for all heads at once.
        # TODO(synk): plain Gaussian features (reference uses orthogonal ones).
        proj = jax.random.normal(lk[2], (Dh, M), jnp.float32) * dn
        proj_blk = jnp.zeros((E, H * M), jnp.float32)
        for h in range(H):
            proj_blk = proj_blk.at[h * Dh:(h + 1) * Dh, h * M:(h + 1) * M].set(proj)
        layers.append(dict(
            attn_ln_g=jnp.ones((E,), jnp.float32),
            attn_ln_b=jnp.zeros((E,), jnp.float32),
            w_qkv=dense(lk[0], E, 3 * E), b_qkv=jnp.zeros((3 * E,), jnp.float32),
            wo=dense(lk[1], E, E), bo=jnp.zeros((E,), jnp.float32),
            proj_blk=proj_blk.astype(jnp.bfloat16),
            ff_ln_g=jnp.ones((E,), jnp.float32),
            ff_ln_b=jnp.zeros((E,), jnp.float32),
            w1=dense(lk[3], E, 4 * E), b1=jnp.zeros((4 * E,), jnp.float32),
            w2=dense(lk[4], 4 * E, E), b2=jnp.zeros((E,), jnp.float32),
        ))

    return dict(
        embedding=jax.random.normal(keys[0], (vocab_size, E), jnp.float32),
        pos_enc=sinusoidal_pe(max_seq_len, E),
        ln_g=jnp.ones((E,), jnp.float32),
        ln_b=jnp.zeros((E,), jnp.float32),
        w_out=dense(keys[1], E, vocab_size),
        b_out=jnp.zeros((vocab_size,), jnp.float32),
        head_sq=head_sq,
        layers=layers,
    )


# --------------------------------------------------------------------------
# Forward pass (mirrors PerformerModel.forward, dropout in eval mode)
# --------------------------------------------------------------------------
def performer_model_forward(params, src, tgt, *, num_heads):
    # TODO(synk): the reference feeds tgt_embed into a self-attention-only
    # Performer; it has no effect on the output, so the dead tgt path is dropped.
    del tgt
    B, S = src.shape
    E = params["embedding"].shape[1]

    pe = params["pos_enc"][:S]
    # TODO(synk): embedding gather stays in XLA (no clean simple Pallas gather).
    src_e = jnp.take(params["embedding"], src, axis=0) + pe[None]

    # model-level LayerNorm starts the f32 residual stream
    x = layernorm(src_e.reshape(B * S, E), params["ln_g"], params["ln_b"])

    for layer in params["layers"]:
        # x = x + Wo @ FAVOR+(LN(x)); LN fused into the QKV matmul, residual
        # fused into the Wo matmul; qkv / attn activations handed off in bf16.
        qkv = ln_linear(x, layer["attn_ln_g"], layer["attn_ln_b"],
                        layer["w_qkv"], layer["b_qkv"],
                        out_dtype=jnp.bfloat16)                       # (B*S, 3E)
        attn = favor_causal_attention(qkv.reshape(B, S, 3 * E),
                                      layer["proj_blk"], params["head_sq"],
                                      num_heads)                      # (B,S,E) bf16
        x = linear(attn.reshape(B * S, E), layer["wo"], layer["bo"],
                   residual=x)                                        # f32

        # x = x + FFN(LN(x)); ff_mult = 4, GELU; hidden handed off in bf16
        hid = ln_linear(x, layer["ff_ln_g"], layer["ff_ln_b"],
                        layer["w1"], layer["b1"], activation="gelu",
                        out_dtype=jnp.bfloat16)                       # (B*S, 4E)
        x = linear(hid, layer["w2"], layer["b2"], residual=x)

    # lm head: weight-major grid so the (E, vocab) weight streams ~once
    logits = linear(x.astype(jnp.bfloat16), params["w_out"], params["b_out"],
                    weight_major=True)                                # (B*S, V)
    return logits.reshape(B, S, -1)


# --------------------------------------------------------------------------
if __name__ == "__main__":
    vocab_size = 64
    embed_size = 32
    num_heads = 4
    hidden_size = 128     # kept in the reference config; ff hidden = 4 * embed
    num_layers = 2
    max_seq_len = 8
    B, S = 2, 8
    nb_features = 16      # ~ head_dim * log(head_dim) for head_dim = 8

    key = jax.random.PRNGKey(0)
    kp, ks, kt = jax.random.split(key, 3)
    params = init_params(kp, vocab_size, embed_size, num_heads,
                         num_layers, max_seq_len, nb_features)

    src = jax.random.randint(ks, (B, S), 1, vocab_size, dtype=jnp.int32)
    tgt = jax.random.randint(kt, (B, S), 1, vocab_size, dtype=jnp.int32)

    fwd = jax.jit(functools.partial(performer_model_forward, num_heads=num_heads))
    out = jax.block_until_ready(fwd(params, src, tgt))

    assert out.shape == (B, S, vocab_size), out.shape
    assert jnp.all(jnp.isfinite(out))
    print("KERNEL_OK")
</pallas_src>

<mosaic_0001>
module attributes {stable_mosaic.version = 11 : i64} {
  func.func @_layernorm_kernel(%arg0: i32, %arg1: memref<16x32xf32, #tpu.memory_space<vmem>>, %arg2: memref<1x32xf32, #tpu.memory_space<vmem>>, %arg3: memref<1x32xf32, #tpu.memory_space<vmem>>, %arg4: memref<16x32xf32, #tpu.memory_space<vmem>>) attributes {dimension_semantics = [#tpu.dimension_semantics<parallel>], iteration_bounds = array<i64: 1>, scalar_prefetch = 0 : i64, scratch_operands = 0 : i64, tpu.core_type = #tpu.core_type<tc>, window_params = [{transform_indices = @transform_0, window_bounds = array<i64: 16, 32>}, {pipeline_mode = #tpu.pipeline_mode<synchronous>, transform_indices = @transform_1, window_bounds = array<i64: 1, 32>}, {pipeline_mode = #tpu.pipeline_mode<synchronous>, transform_indices = @transform_2, window_bounds = array<i64: 1, 32>}, {transform_indices = @transform_3, window_bounds = array<i64: 16, 32>}]} {
    %c0 = arith.constant 0 : index
    %c0_0 = arith.constant 0 : index
    %0 = vector.load %arg1[%c0, %c0_0] : memref<16x32xf32, #tpu.memory_space<vmem>>, vector<16x32xf32>
    %cst = arith.constant dense<0.000000e+00> : vector<16xf32>
    %1 = vector.multi_reduction <add>, %0, %cst [1] : vector<16x32xf32> to vector<16xf32>
    %2 = vector.shape_cast %1 : vector<16xf32> to vector<16x1xf32>
    %cst_1 = arith.constant 3.200000e+01 : f32
    %3 = vector.broadcast %cst_1 : f32 to vector<16x1xf32>
    %4 = arith.divf %2, %3 : vector<16x1xf32>
    %5 = vector.broadcast %4 : vector<16x1xf32> to vector<16x32xf32>
    %6 = arith.subf %0, %5 : vector<16x32xf32>
    %7 = arith.mulf %6, %6 : vector<16x32xf32>
    %cst_2 = arith.constant dense<0.000000e+00> : vector<16xf32>
    %8 = vector.multi_reduction <add>, %7, %cst_2 [1] : vector<16x32xf32> to vector<16xf32>
    %9 = vector.shape_cast %8 : vector<16xf32> to vector<16x1xf32>
    %cst_3 = arith.constant 3.200000e+01 : f32
    %10 = vector.broadcast %cst_3 : f32 to vector<16x1xf32>
    %11 = arith.divf %9, %10 : vector<16x1xf32>
    %12 = vector.broadcast %4 : vector<16x1xf32> to vector<16x32xf32>
    %13 = arith.subf %0, %12 : vector<16x32xf32>
    %cst_4 = arith.constant 9.99999974E-6 : f32
    %14 = vector.broadcast %cst_4 : f32 to vector<16x1xf32>
    %15 = arith.addf %11, %14 : vector<16x1xf32>
    %16 = math.rsqrt %15 : vector<16x1xf32>
    %17 = vector.broadcast %16 : vector<16x1xf32> to vector<16x32xf32>
    %18 = arith.mulf %13, %17 : vector<16x32xf32>
    %c0_5 = arith.constant 0 : index
    %c0_6 = arith.constant 0 : index
    %19 = vector.load %arg2[%c0_5, %c0_6] : memref<1x32xf32, #tpu.memory_space<vmem>>, vector<1x32xf32>
    %20 = vector.broadcast %19 : vector<1x32xf32> to vector<16x32xf32>
    %21 = arith.mulf %18, %20 : vector<16x32xf32>
    %c0_7 = arith.constant 0 : index
    %c0_8 = arith.constant 0 : index
    %22 = vector.load %arg3[%c0_7, %c0_8] : memref<1x32xf32, #tpu.memory_space<vmem>>, vector<1x32xf32>
    %23 = vector.broadcast %22 : vector<1x32xf32> to vector<16x32xf32>
    %24 = arith.addf %21, %23 : vector<16x32xf32>
    %c0_9 = arith.constant 0 : index
    %c0_10 = arith.constant 0 : index
    %25 = vector.load %arg4[%c0_9, %c0_10] : memref<16x32xf32, #tpu.memory_space<vmem>>, vector<16x32xf32>
    tpu.vector_store %arg4[%c0_9, %c0_10], %24 {strides = array<i32>} : memref<16x32xf32, #tpu.memory_space<vmem>>, vector<16x32xf32>,
    return
  }
  func.func @transform_0(%arg0: i32) -> (i32, i32) {
    %c0_i32 = arith.constant 0 : i32
    %c0_i32_0 = arith.constant 0 : i32
    return %arg0, %c0_i32 : i32, i32
  }
  func.func @transform_1(%arg0: i32) -> (i32, i32) {
    %c0_i32 = arith.constant 0 : i32
    %c0_i32_0 = arith.constant 0 : i32
    %c0_i32_1 = arith.constant 0 : i32
    return %c0_i32, %c0_i32_0 : i32, i32
  }
  func.func @transform_2(%arg0: i32) -> (i32, i32) {
    %c0_i32 = arith.constant 0 : i32
    %c0_i32_0 = arith.constant 0 : i32
    %c0_i32_1 = arith.constant 0 : i32
    return %c0_i32, %c0_i32_0 : i32, i32
  }
  func.func @transform_3(%arg0: i32) -> (i32, i32) {
    %c0_i32 = arith.constant 0 : i32
    %c0_i32_0 = arith.constant 0 : i32
    return %arg0, %c0_i32 : i32, i32
  }
}

module attributes {stable_mosaic.version = 11 : i64} {
  func.func @_ln_linear_kernel(%arg0: i32, %arg1: memref<16x32xf32, #tpu.memory_space<vmem>>, %arg2: memref<1x32xf32, #tpu.memory_space<vmem>>, %arg3: memref<1x32xf32, #tpu.memory_space<vmem>>, %arg4: memref<32x96xbf16, #tpu.memory_space<vmem>>, %arg5: memref<1x96xf32, #tpu.memory_space<vmem>>, %arg6: memref<16x96xbf16, #tpu.memory_space<vmem>>) attributes {dimension_semantics = [#tpu.dimension_semantics<parallel>], iteration_bounds = array<i64: 1>, scalar_prefetch = 0 : i64, scratch_operands = 0 : i64, tpu.core_type = #tpu.core_type<tc>, window_params = [{transform_indices = @transform_0, window_bounds = array<i64: 16, 32>}, {pipeline_mode = #tpu.pipeline_mode<synchronous>, transform_indices = @transform_1, window_bounds = array<i64: 1, 32>}, {pipeline_mode = #tpu.pipeline_mode<synchronous>, transform_indices = @transform_2, window_bounds = array<i64: 1, 32>}, {pipeline_mode = #tpu.pipeline_mode<synchronous>, transform_indices = @transform_3, window_bounds = array<i64: 32, 96>}, {pipeline_mode = #tpu.pipeline_mode<synchronous>, transform_indices = @transform_4, window_bounds = array<i64: 1, 96>}, {transform_indices = @transform_5, window_bounds = array<i64: 16, 96>}]} {
    %c0 = arith.constant 0 : index
    %c0_0 = arith.constant 0 : index
    %0 = vector.load %arg1[%c0, %c0_0] : memref<16x32xf32, #tpu.memory_space<vmem>>, vector<16x32xf32>
    %cst = arith.constant dense<0.000000e+00> : vector<16xf32>
    %1 = vector.multi_reduction <add>, %0, %cst [1] : vector<16x32xf32> to vector<16xf32>
    %2 = vector.shape_cast %1 : vector<16xf32> to vector<16x1xf32>
    %cst_1 = arith.constant 3.200000e+01 : f32
    %3 = vector.broadcast %cst_1 : f32 to vector<16x1xf32>
    %4 = arith.divf %2, %3 : vector<16x1xf32>
    %5 = vector.broadcast %4 : vector<16x1xf32> to vector<16x32xf32>
    %6 = arith.subf %0, %5 : vector<16x32xf32>
    %7 = arith.mulf %6, %6 : vector<16x32xf32>
    %cst_2 = arith.constant dense<0.000000e+00> : vector<16xf32>
    %8 = vector.multi_reduction <add>, %7, %cst_2 [1] : vector<16x32xf32> to vector<16xf32>
    %9 = vector.shape_cast %8 : vector<16xf32> to vector<16x1xf32>
    %cst_3 = arith.constant 3.200000e+01 : f32
    %10 = vector.broadcast %cst_3 : f32 to vector<16x1xf32>
    %11 = arith.divf %9, %10 : vector<16x1xf32>
    %12 = vector.broadcast %4 : vector<16x1xf32> to vector<16x32xf32>
    %13 = arith.subf %0, %12 : vector<16x32xf32>
    %cst_4 = arith.constant 9.99999974E-6 : f32
    %14 = vector.broadcast %cst_4 : f32 to vector<16x1xf32>
    %15 = arith.addf %11, %14 : vector<16x1xf32>
    %16 = math.rsqrt %15 : vector<16x1xf32>
    %17 = vector.broadcast %16 : vector<16x1xf32> to vector<16x32xf32>
    %18 = arith.mulf %13, %17 : vector<16x32xf32>
    %c0_5 = arith.constant 0 : index
    %c0_6 = arith.constant 0 : index
    %19 = vector.load %arg2[%c0_5, %c0_6] : memref<1x32xf32, #tpu.memory_space<vmem>>, vector<1x32xf32>
    %20 = vector.broadcast %19 : vector<1x32xf32> to vector<16x32xf32>
    %21 = arith.mulf %18, %20 : vector<16x32xf32>
    %c0_7 = arith.constant 0 : index
    %c0_8 = arith.constant 0 : index
    %22 = vector.load %arg3[%c0_7, %c0_8] : memref<1x32xf32, #tpu.memory_space<vmem>>, vector<1x32xf32>
    %23 = vector.broadcast %22 : vector<1x32xf32> to vector<16x32xf32>
    %24 = arith.addf %21, %23 : vector<16x32xf32>
    %25 = arith.truncf %24 : vector<16x32xf32> to vector<16x32xbf16>
    %c0_9 = arith.constant 0 : index
    %c0_10 = arith.constant 0 : index
    %26 = vector.load %arg4[%c0_9, %c0_10] : memref<32x96xbf16, #tpu.memory_space<vmem>>, vector<32x96xbf16>
    %cst_11 = arith.constant dense<0.000000e+00> : vector<16x96xf32>
    %27 = tpu.matmul %25, %26, %cst_11 {dimension_numbers = #tpu.dot_dimension_numbers<[1], [0], [0], [1], [0, 0, 1, 1], [], []>} : vector<16x32xbf16>, vector<32x96xbf16>, vector<16x96xf32> -> vector<16x96xf32>
    %c0_12 = arith.constant 0 : index
    %c0_13 = arith.constant 0 : index
    %28 = vector.load %arg5[%c0_12, %c0_13] : memref<1x96xf32, #tpu.memory_space<vmem>>, vector<1x96xf32>
    %29 = vector.broadcast %28 : vector<1x96xf32> to vector<16x96xf32>
    %30 = arith.addf %27, %29 : vector<16x96xf32>
    %31 = arith.truncf %30 : vector<16x96xf32> to vector<16x96xbf16>
    %c0_14 = arith.constant 0 : index
    %c0_15 = arith.constant 0 : index
    %32 = vector.load %arg6[%c0_14, %c0_15] : memref<16x96xbf16, #tpu.memory_space<vmem>>, vector<16x96xbf16>
    tpu.vector_store %arg6[%c0_14, %c0_15], %31 {strides = array<i32>} : memref<16x96xbf16, #tpu.memory_space<vmem>>, vector<16x96xbf16>,
    return
  }
  func.func @transform_0(%arg0: i32) -> (i32, i32) {
    %c0_i32 = arith.constant 0 : i32
    %c0_i32_0 = arith.constant 0 : i32
    return %arg0, %c0_i32 : i32, i32
  }
  func.func @transform_1(%arg0: i32) -> (i32, i32) {
    %c0_i32 = arith.constant 0 : i32
    %c0_i32_0 = arith.constant 0 : i32
    %c0_i32_1 = arith.constant 0 : i32
    return %c0_i32, %c0_i32_0 : i32, i32
  }
  func.func @transform_2(%arg0: i32) -> (i32, i32) {
    %c0_i32 = arith.constant 0 : i32
    %c0_i32_0 = arith.constant 0 : i32
    %c0_i32_1 = arith.constant 0 : i32
    return %c0_i32, %c0_i32_0 : i32, i32
  }
  func.func @transform_3(%arg0: i32) -> (i32, i32) {
    %c0_i32 = arith.constant 0 : i32
    %c0_i32_0 = arith.constant 0 : i32
    %c0_i32_1 = arith.constant 0 : i32
    return %c0_i32, %c0_i32_0 : i32, i32
  }
  func.func @transform_4(%arg0: i32) -> (i32, i32) {
    %c0_i32 = arith.constant 0 : i32
    %c0_i32_0 = arith.constant 0 : i32
    %c0_i32_1 = arith.constant 0 : i32
    return %c0_i32, %c0_i32_0 : i32, i32
  }
  func.func @transform_5(%arg0: i32) -> (i32, i32) {
    %c0_i32 = arith.constant 0 : i32
    %c0_i32_0 = arith.constant 0 : i32
    return %arg0, %c0_i32 : i32, i32
  }
}

module attributes {stable_mosaic.version = 11 : i64} {
  func.func @_linear_res_kernel(%arg0: i32, %arg1: i32, %arg2: memref<16x32xbf16, #tpu.memory_space<vmem>>, %arg3: memref<32x32xbf16, #tpu.memory_space<vmem>>, %arg4: memref<1x32xf32, #tpu.memory_space<vmem>>, %arg5: memref<16x32xf32, #tpu.memory_space<vmem>>, %arg6: memref<16x32xf32, #tpu.memory_space<vmem>>) attributes {dimension_semantics = [#tpu.dimension_semantics<parallel>, #tpu.dimension_semantics<parallel>], iteration_bounds = array<i64: 1, 1>, scalar_prefetch = 0 : i64, scratch_operands = 0 : i64, tpu.core_type = #tpu.core_type<tc>, window_params = [{transform_indices = @transform_0, window_bounds = array<i64: 16, 32>}, {transform_indices = @transform_1, window_bounds = array<i64: 32, 32>}, {transform_indices = @transform_2, window_bounds = array<i64: 1, 32>}, {transform_indices = @transform_3, window_bounds = array<i64: 16, 32>}, {transform_indices = @transform_4, window_bounds = array<i64: 16, 32>}]} {
    %c0 = arith.constant 0 : index
    %c0_0 = arith.constant 0 : index
    %0 = vector.load %arg2[%c0, %c0_0] : memref<16x32xbf16, #tpu.memory_space<vmem>>, vector<16x32xbf16>
    %c0_1 = arith.constant 0 : index
    %c0_2 = arith.constant 0 : index
    %1 = vector.load %arg3[%c0_1, %c0_2] : memref<32x32xbf16, #tpu.memory_space<vmem>>, vector<32x32xbf16>
    %cst = arith.constant dense<0.000000e+00> : vector<16x32xf32>
    %2 = tpu.matmul %0, %1, %cst {dimension_numbers = #tpu.dot_dimension_numbers<[1], [0], [0], [1], [0, 0, 1, 1], [], []>} : vector<16x32xbf16>, vector<32x32xbf16>, vector<16x32xf32> -> vector<16x32xf32>
    %c0_3 = arith.constant 0 : index
    %c0_4 = arith.constant 0 : index
    %3 = vector.load %arg4[%c0_3, %c0_4] : memref<1x32xf32, #tpu.memory_space<vmem>>, vector<1x32xf32>
    %4 = vector.broadcast %3 : vector<1x32xf32> to vector<16x32xf32>
    %5 = arith.addf %2, %4 : vector<16x32xf32>
    %c0_5 = arith.constant 0 : index
    %c0_6 = arith.constant 0 : index
    %6 = vector.load %arg5[%c0_5, %c0_6] : memref<16x32xf32, #tpu.memory_space<vmem>>, vector<16x32xf32>
    %7 = arith.addf %5, %6 : vector<16x32xf32>
    %c0_7 = arith.constant 0 : index
    %c0_8 = arith.constant 0 : index
    %8 = vector.load %arg6[%c0_7, %c0_8] : memref<16x32xf32, #tpu.memory_space<vmem>>, vector<16x32xf32>
    tpu.vector_store %arg6[%c0_7, %c0_8], %7 {strides = array<i32>} : memref<16x32xf32, #tpu.memory_space<vmem>>, vector<16x32xf32>,
    return
  }
  func.func @transform_0(%arg0: i32, %arg1: i32) -> (i32, i32) {
    %c0_i32 = arith.constant 0 : i32
    %c0_i32_0 = arith.constant 0 : i32
    return %arg0, %c0_i32 : i32, i32
  }
  func.func @transform_1(%arg0: i32, %arg1: i32) -> (i32, i32) {
    %c0_i32 = arith.constant 0 : i32
    %c0_i32_0 = arith.constant 0 : i32
    return %c0_i32, %arg1 : i32, i32
  }
  func.func @transform_2(%arg0: i32, %arg1: i32) -> (i32, i32) {
    %c0_i32 = arith.constant 0 : i32
    %c0_i32_0 = arith.constant 0 : i32
    return %c0_i32, %arg1 : i32, i32
  }
  func.func @transform_3(%arg0: i32, %arg1: i32) -> (i32, i32) {
    %c0_i32 = arith.constant 0 : i32
    return %arg0, %arg1 : i32, i32
  }
  func.func @transform_4(%arg0: i32, %arg1: i32) -> (i32, i32) {
    %c0_i32 = arith.constant 0 : i32
    return %arg0, %arg1 : i32, i32
  }
}

module attributes {stable_mosaic.version = 11 : i64} {
  func.func @_favor_attn_kernel(%arg0: i32, %arg1: i32, %arg2: memref<1x8x96xbf16, #tpu.memory_space<vmem>>, %arg3: memref<32x64xbf16, #tpu.memory_space<vmem>>, %arg4: memref<32x4xf32, #tpu.memory_space<vmem>>, %arg5: memref<1x8x32xbf16, #tpu.memory_space<vmem>>, %arg6: memref<4x16x8xf32, #tpu.memory_space<vmem>>, %arg7: memref<4x1x16xf32, #tpu.memory_space<vmem>>, %arg8: memref<4x1x1xf32, #tpu.memory_space<vmem>>) attributes {dimension_semantics = [#tpu.dimension_semantics<parallel>, #tpu.dimension_semantics<arbitrary>], iteration_bounds = array<i64: 2, 1>, scalar_prefetch = 0 : i64, scratch_operands = 3 : i64, tpu.core_type = #tpu.core_type<tc>, window_params = [{transform_indices = @transform_0, window_bounds = array<i64: 1, 8, 96>}, {pipeline_mode = #tpu.pipeline_mode<synchronous>, transform_indices = @transform_1, window_bounds = array<i64: 32, 64>}, {pipeline_mode = #tpu.pipeline_mode<synchronous>, transform_indices = @transform_2, window_bounds = array<i64: 32, 4>}, {transform_indices = @transform_3, window_bounds = array<i64: 1, 8, 32>}]} {
    %c0_i32 = arith.constant 0 : i32
    %0 = arith.cmpi eq, %arg1, %c0_i32 : i32
    %1 = arith.extui %0 : i1 to i32
    %c0_i32_0 = arith.constant 0 : i32
    %2 = arith.cmpi ne, %1, %c0_i32_0 : i32
    scf.if %2 {
      %cst_138 = arith.constant 0.000000e+00 : f32
      %299 = vector.broadcast %cst_138 : f32 to vector<4x16x8xf32>
      %c0_139 = arith.constant 0 : index
      %c0_140 = arith.constant 0 : index
      %c0_141 = arith.constant 0 : index
      %300 = vector.load %arg6[%c0_139, %c0_140, %c0_141] : memref<4x16x8xf32, #tpu.memory_space<vmem>>, vector<4x16x8xf32>
      tpu.vector_store %arg6[%c0_139, %c0_140, %c0_141], %299 {strides = array<i32>} : memref<4x16x8xf32, #tpu.memory_space<vmem>>, vector<4x16x8xf32>,
      %cst_142 = arith.constant 0.000000e+00 : f32
      %301 = vector.broadcast %cst_142 : f32 to vector<4x1x16xf32>
      %c0_143 = arith.constant 0 : index
      %c0_144 = arith.constant 0 : index
      %c0_145 = arith.constant 0 : index
      %302 = vector.load %arg7[%c0_143, %c0_144, %c0_145] : memref<4x1x16xf32, #tpu.memory_space<vmem>>, vector<4x1x16xf32>
      tpu.vector_store %arg7[%c0_143, %c0_144, %c0_145], %301 {strides = array<i32>} : memref<4x1x16xf32, #tpu.memory_space<vmem>>, vector<4x1x16xf32>,
      %cst_146 = arith.constant -1.000000e+30 : f32
      %303 = vector.broadcast %cst_146 : f32 to vector<4x1x1xf32>
      %c0_147 = arith.constant 0 : index
      %c0_148 = arith.constant 0 : index
      %c0_149 = arith.constant 0 : index
      %304 = vector.load %arg8[%c0_147, %c0_148, %c0_149] : memref<4x1x1xf32, #tpu.memory_space<vmem>>, vector<4x1x1xf32>
      tpu.vector_store %arg8[%c0_147, %c0_148, %c0_149], %303 {strides = array<i32>} : memref<4x1x1xf32, #tpu.memory_space<vmem>>, vector<4x1x1xf32>,
    } else {
    }
    %c0 = arith.constant 0 : index
    %c0_1 = arith.constant 0 : index
    %c0_2 = arith.constant 0 : index
    %3 = vector.load %arg2[%c0, %c0_1, %c0_2] : memref<1x8x96xbf16, #tpu.memory_space<vmem>>, vector<1x8x96xbf16>
    %4 = vector.shape_cast %3 : vector<1x8x96xbf16> to vector<8x96xbf16>
    %5 = vector.extract_strided_slice %4 {offsets = [0, 0], sizes = [8, 32], strides = [1, 1]} : vector<8x96xbf16> to vector<8x32xbf16>
    %6 = vector.extract_strided_slice %4 {offsets = [0, 32], sizes = [8, 32], strides = [1, 1]} : vector<8x96xbf16> to vector<8x32xbf16>
    %7 = arith.extf %5 : vector<8x32xbf16> to vector<8x32xf32>
    %8 = arith.extf %6 : vector<8x32xbf16> to vector<8x32xf32>
    %c0_3 = arith.constant 0 : index
    %c0_4 = arith.constant 0 : index
    %9 = vector.load %arg3[%c0_3, %c0_4] : memref<32x64xbf16, #tpu.memory_space<vmem>>, vector<32x64xbf16>
    %c0_5 = arith.constant 0 : index
    %c0_6 = arith.constant 0 : index
    %10 = vector.load %arg4[%c0_5, %c0_6] : memref<32x4xf32, #tpu.memory_space<vmem>>, vector<32x4xf32>
    %cst = arith.constant dense<0.000000e+00> : vector<8x64xf32>
    %11 = tpu.matmul %5, %9, %cst {dimension_numbers = #tpu.dot_dimension_numbers<[1], [0], [0], [1], [0, 0, 1, 1], [], []>} : vector<8x32xbf16>, vector<32x64xbf16>, vector<8x64xf32> -> vector<8x64xf32>
    %cst_7 = arith.constant dense<0.000000e+00> : vector<8x64xf32>
    %12 = tpu.matmul %6, %9, %cst_7 {dimension_numbers = #tpu.dot_dimension_numbers<[1], [0], [0], [1], [0, 0, 1, 1], [], []>} : vector<8x32xbf16>, vector<32x64xbf16>, vector<8x64xf32> -> vector<8x64xf32>
    %13 = arith.mulf %7, %7 : vector<8x32xf32>
    %cst_8 = arith.constant dense<0.000000e+00> : vector<8x4xf32>
    %14 = tpu.matmul %13, %10, %cst_8 {dimension_numbers = #tpu.dot_dimension_numbers<[1], [0], [0], [1], [0, 0, 1, 1], [], []>} : vector<8x32xf32>, vector<32x4xf32>, vector<8x4xf32> -> vector<8x4xf32>
    %15 = arith.mulf %8, %8 : vector<8x32xf32>
    %cst_9 = arith.constant dense<0.000000e+00> : vector<8x4xf32>
    %16 = tpu.matmul %15, %10, %cst_9 {dimension_numbers = #tpu.dot_dimension_numbers<[1], [0], [0], [1], [0, 0, 1, 1], [], []>} : vector<8x32xf32>, vector<32x4xf32>, vector<8x4xf32> -> vector<8x4xf32>
    %17 = tpu.iota {dimensions = array<i32: 0>} : vector<8x8xi32>
    %18 = tpu.iota {dimensions = array<i32: 1>} : vector<8x8xi32>
    %19 = arith.cmpi sge, %17, %18 : vector<8x8xi32>
    %20 = arith.extui %19 : vector<8x8xi1> to vector<8x8xi32>
    %21 = arith.sitofp %20 : vector<8x8xi32> to vector<8x8xf32>
    %22 = vector.extract_strided_slice %11 {offsets = [0, 0], sizes = [8, 16], strides = [1, 1]} : vector<8x64xf32> to vector<8x16xf32>
    %23 = vector.extract_strided_slice %12 {offsets = [0, 0], sizes = [8, 16], strides = [1, 1]} : vector<8x64xf32> to vector<8x16xf32>
    %24 = vector.extract_strided_slice %14 {offsets = [0, 0], sizes = [8, 1], strides = [1, 1]} : vector<8x4xf32> to vector<8x1xf32>
    %25 = vector.extract_strided_slice %16 {offsets = [0, 0], sizes = [8, 1], strides = [1, 1]} : vector<8x4xf32> to vector<8x1xf32>
    %26 = vector.extract_strided_slice %4 {offsets = [0, 64], sizes = [8, 8], strides = [1, 1]} : vector<8x96xbf16> to vector<8x8xbf16>
    %27 = arith.extf %26 : vector<8x8xbf16> to vector<8x8xf32>
    %28 = vector.broadcast %24 : vector<8x1xf32> to vector<8x16xf32>
    %29 = arith.subf %22, %28 : vector<8x16xf32>
    %cst_10 = arith.constant dense<0xFF800000> : vector<8xf32>
    %30 = vector.multi_reduction <maximumf>, %22, %cst_10 [1] : vector<8x16xf32> to vector<8xf32>
    %31 = vector.shape_cast %30 : vector<8xf32> to vector<8x1xf32>
    %32 = vector.broadcast %31 : vector<8x1xf32> to vector<8x16xf32>
    %33 = arith.subf %29, %32 : vector<8x16xf32>
    %34 = math.exp %33 : vector<8x16xf32>
    %cst_11 = arith.constant 9.99999974E-5 : f32
    %35 = vector.broadcast %cst_11 : f32 to vector<8x16xf32>
    %36 = arith.addf %34, %35 : vector<8x16xf32>
    %cst_12 = arith.constant 2.500000e-01 : f32
    %37 = vector.broadcast %cst_12 : f32 to vector<8x16xf32>
    %38 = arith.mulf %37, %36 : vector<8x16xf32>
    %c0_13 = arith.constant 0 : index
    %c0_14 = arith.constant 0 : index
    %c0_15 = arith.constant 0 : index
    %39 = vector.load %arg8[%c0_13, %c0_14, %c0_15] : memref<4x1x1xf32, #tpu.memory_space<vmem>>, vector<1x1x1xf32>
    %40 = vector.shape_cast %39 : vector<1x1x1xf32> to vector<1x1xf32>
    %cst_16 = arith.constant dense<0xFF800000> : vector<8xf32>
    %41 = vector.multi_reduction <maximumf>, %23, %cst_16 [1] : vector<8x16xf32> to vector<8xf32>
    %42 = vector.shape_cast %41 : vector<8xf32> to vector<8x1xf32>
    %cst_17 = arith.constant dense<0xFF800000> : vector<1xf32>
    %43 = vector.multi_reduction <maximumf>, %42, %cst_17 [0] : vector<8x1xf32> to vector<1xf32>
    %44 = vector.shape_cast %43 : vector<1xf32> to vector<1x1xf32>
    %45 = arith.maximumf %40, %44 : vector<1x1xf32>
    %46 = arith.subf %40, %45 : vector<1x1xf32>
    %47 = math.exp %46 : vector<1x1xf32>
    %c0_18 = arith.constant 0 : index
    %c0_19 = arith.constant 0 : index
    %c0_20 = arith.constant 0 : index
    %48 = vector.load %arg6[%c0_18, %c0_19, %c0_20] : memref<4x16x8xf32, #tpu.memory_space<vmem>>, vector<1x16x8xf32>
    %49 = vector.shape_cast %48 : vector<1x16x8xf32> to vector<16x8xf32>
    %50 = vector.broadcast %47 : vector<1x1xf32> to vector<16x8xf32>
    %51 = arith.mulf %49, %50 : vector<16x8xf32>
    %c0_21 = arith.constant 0 : index
    %c0_22 = arith.constant 0 : index
    %c0_23 = arith.constant 0 : index
    %52 = vector.load %arg7[%c0_21, %c0_22, %c0_23] : memref<4x1x16xf32, #tpu.memory_space<vmem>>, vector<1x1x16xf32>
    %53 = vector.shape_cast %52 : vector<1x1x16xf32> to vector<1x16xf32>
    %54 = vector.broadcast %47 : vector<1x1xf32> to vector<1x16xf32>
    %55 = arith.mulf %53, %54 : vector<1x16xf32>
    %56 = vector.broadcast %25 : vector<8x1xf32> to vector<8x16xf32>
    %57 = arith.subf %23, %56 : vector<8x16xf32>
    %58 = vector.broadcast %45 : vector<1x1xf32> to vector<8x16xf32>
    %59 = arith.subf %57, %58 : vector<8x16xf32>
    %60 = math.exp %59 : vector<8x16xf32>
    %cst_24 = arith.constant 9.99999974E-5 : f32
    %61 = vector.broadcast %cst_24 : f32 to vector<8x16xf32>
    %62 = arith.addf %60, %61 : vector<8x16xf32>
    %cst_25 = arith.constant 2.500000e-01 : f32
    %63 = vector.broadcast %cst_25 : f32 to vector<8x16xf32>
    %64 = arith.mulf %63, %62 : vector<8x16xf32>
    %cst_26 = arith.constant dense<0.000000e+00> : vector<8x8xf32>
    %65 = tpu.matmul %38, %51, %cst_26 {dimension_numbers = #tpu.dot_dimension_numbers<[1], [0], [0], [1], [0, 0, 1, 1], [], []>} : vector<8x16xf32>, vector<16x8xf32>, vector<8x8xf32> -> vector<8x8xf32>
    %cst_27 = arith.constant dense<0.000000e+00> : vector<8x1xf32>
    %66 = tpu.matmul %38, %55, %cst_27 {dimension_numbers = #tpu.dot_dimension_numbers<[1], [1], [0], [0], [0, 0, 1, 0], [], []>} : vector<8x16xf32>, vector<1x16xf32>, vector<8x1xf32> -> vector<8x1xf32>
    %cst_28 = arith.constant dense<0.000000e+00> : vector<8x8xf32>
    %67 = tpu.matmul %38, %64, %cst_28 {dimension_numbers = #tpu.dot_dimension_numbers<[1], [1], [0], [0], [0, 0, 1, 0], [], []>} : vector<8x16xf32>, vector<8x16xf32>, vector<8x8xf32> -> vector<8x8xf32>
    %68 = arith.mulf %67, %21 : vector<8x8xf32>
    %cst_29 = arith.constant dense<0.000000e+00> : vector<8x8xf32>
    %69 = tpu.matmul %68, %27, %cst_29 {dimension_numbers = #tpu.dot_dimension_numbers<[1], [0], [0], [1], [0, 0, 1, 1], [], []>} : vector<8x8xf32>, vector<8x8xf32>, vector<8x8xf32> -> vector<8x8xf32>
    %70 = arith.addf %65, %69 : vector<8x8xf32>
    %cst_30 = arith.constant dense<0.000000e+00> : vector<8xf32>
    %71 = vector.multi_reduction <add>, %68, %cst_30 [1] : vector<8x8xf32> to vector<8xf32>
    %72 = vector.shape_cast %71 : vector<8xf32> to vector<8x1xf32>
    %73 = arith.addf %66, %72 : vector<8x1xf32>
    %74 = vector.broadcast %73 : vector<8x1xf32> to vector<8x8xf32>
    %75 = arith.divf %70, %74 : vector<8x8xf32>
    %cst_31 = arith.constant dense<0.000000e+00> : vector<16x8xf32>
    %76 = tpu.matmul %64, %27, %cst_31 {dimension_numbers = #tpu.dot_dimension_numbers<[0], [0], [1], [1], [0, 1, 1, 1], [], []>} : vector<8x16xf32>, vector<8x8xf32>, vector<16x8xf32> -> vector<16x8xf32>
    %77 = arith.addf %51, %76 : vector<16x8xf32>
    %c0_32 = arith.constant 0 : index
    %c0_33 = arith.constant 0 : index
    %c0_34 = arith.constant 0 : index
    %78 = vector.load %arg6[%c0_32, %c0_33, %c0_34] : memref<4x16x8xf32, #tpu.memory_space<vmem>>, vector<1x16x8xf32>
    %79 = vector.shape_cast %78 : vector<1x16x8xf32> to vector<16x8xf32>
    %80 = vector.shape_cast %77 : vector<16x8xf32> to vector<1x16x8xf32>
    tpu.vector_store %arg6[%c0_32, %c0_33, %c0_34], %80 {strides = array<i32>} : memref<4x16x8xf32, #tpu.memory_space<vmem>>, vector<1x16x8xf32>,
    %cst_35 = arith.constant dense<0.000000e+00> : vector<16xf32>
    %81 = vector.multi_reduction <add>, %64, %cst_35 [0] : vector<8x16xf32> to vector<16xf32>
    %82 = vector.shape_cast %81 : vector<16xf32> to vector<1x16xf32>
    %83 = arith.addf %55, %82 : vector<1x16xf32>
    %c0_36 = arith.constant 0 : index
    %c0_37 = arith.constant 0 : index
    %c0_38 = arith.constant 0 : index
    %84 = vector.load %arg7[%c0_36, %c0_37, %c0_38] : memref<4x1x16xf32, #tpu.memory_space<vmem>>, vector<1x1x16xf32>
    %85 = vector.shape_cast %84 : vector<1x1x16xf32> to vector<1x16xf32>
    %86 = vector.shape_cast %83 : vector<1x16xf32> to vector<1x1x16xf32>
    tpu.vector_store %arg7[%c0_36, %c0_37, %c0_38], %86 {strides = array<i32>} : memref<4x1x16xf32, #tpu.memory_space<vmem>>, vector<1x1x16xf32>,
    %c0_39 = arith.constant 0 : index
    %c0_40 = arith.constant 0 : index
    %c0_41 = arith.constant 0 : index
    %87 = vector.load %arg8[%c0_39, %c0_40, %c0_41] : memref<4x1x1xf32, #tpu.memory_space<vmem>>, vector<1x1x1xf32>
    %88 = vector.shape_cast %87 : vector<1x1x1xf32> to vector<1x1xf32>
    %89 = vector.shape_cast %45 : vector<1x1xf32> to vector<1x1x1xf32>
    tpu.vector_store %arg8[%c0_39, %c0_40, %c0_41], %89 {strides = array<i32>} : memref<4x1x1xf32, #tpu.memory_space<vmem>>, vector<1x1x1xf32>,
    %90 = vector.extract_strided_slice %11 {offsets = [0, 16], sizes = [8, 16], strides = [1, 1]} : vector<8x64xf32> to vector<8x16xf32>
    %91 = vector.extract_strided_slice %12 {offsets = [0, 16], sizes = [8, 16], strides = [1, 1]} : vector<8x64xf32> to vector<8x16xf32>
    %92 = vector.extract_strided_slice %14 {offsets = [0, 1], sizes = [8, 1], strides = [1, 1]} : vector<8x4xf32> to vector<8x1xf32>
    %93 = vector.extract_strided_slice %16 {offsets = [0, 1], sizes = [8, 1], strides = [1, 1]} : vector<8x4xf32> to vector<8x1xf32>
    %94 = vector.extract_strided_slice %4 {offsets = [0, 72], sizes = [8, 8], strides = [1, 1]} : vector<8x96xbf16> to vector<8x8xbf16>
    %95 = arith.extf %94 : vector<8x8xbf16> to vector<8x8xf32>
    %96 = vector.broadcast %92 : vector<8x1xf32> to vector<8x16xf32>
    %97 = arith.subf %90, %96 : vector<8x16xf32>
    %cst_42 = arith.constant dense<0xFF800000> : vector<8xf32>
    %98 = vector.multi_reduction <maximumf>, %90, %cst_42 [1] : vector<8x16xf32> to vector<8xf32>
    %99 = vector.shape_cast %98 : vector<8xf32> to vector<8x1xf32>
    %100 = vector.broadcast %99 : vector<8x1xf32> to vector<8x16xf32>
    %101 = arith.subf %97, %100 : vector<8x16xf32>
    %102 = math.exp %101 : vector<8x16xf32>
    %cst_43 = arith.constant 9.99999974E-5 : f32
    %103 = vector.broadcast %cst_43 : f32 to vector<8x16xf32>
    %104 = arith.addf %102, %103 : vector<8x16xf32>
    %cst_44 = arith.constant 2.500000e-01 : f32
    %105 = vector.broadcast %cst_44 : f32 to vector<8x16xf32>
    %106 = arith.mulf %105, %104 : vector<8x16xf32>
    %c1 = arith.constant 1 : index
    %c0_45 = arith.constant 0 : index
    %c0_46 = arith.constant 0 : index
    %107 = vector.load %arg8[%c1, %c0_45, %c0_46] : memref<4x1x1xf32, #tpu.memory_space<vmem>>, vector<1x1x1xf32>
    %108 = vector.shape_cast %107 : vector<1x1x1xf32> to vector<1x1xf32>
    %cst_47 = arith.constant dense<0xFF800000> : vector<8xf32>
    %109 = vector.multi_reduction <maximumf>, %91, %cst_47 [1] : vector<8x16xf32> to vector<8xf32>
    %110 = vector.shape_cast %109 : vector<8xf32> to vector<8x1xf32>
    %cst_48 = arith.constant dense<0xFF800000> : vector<1xf32>
    %111 = vector.multi_reduction <maximumf>, %110, %cst_48 [0] : vector<8x1xf32> to vector<1xf32>
    %112 = vector.shape_cast %111 : vector<1xf32> to vector<1x1xf32>
    %113 = arith.maximumf %108, %112 : vector<1x1xf32>
    %114 = arith.subf %108, %113 : vector<1x1xf32>
    %115 = math.exp %114 : vector<1x1xf32>
    %c1_49 = arith.constant 1 : index
    %c0_50 = arith.constant 0 : index
    %c0_51 = arith.constant 0 : index
    %116 = vector.load %arg6[%c1_49, %c0_50, %c0_51] : memref<4x16x8xf32, #tpu.memory_space<vmem>>, vector<1x16x8xf32>
    %117 = vector.shape_cast %116 : vector<1x16x8xf32> to vector<16x8xf32>
    %118 = vector.broadcast %115 : vector<1x1xf32> to vector<16x8xf32>
    %119 = arith.mulf %117, %118 : vector<16x8xf32>
    %c1_52 = arith.constant 1 : index
    %c0_53 = arith.constant 0 : index
    %c0_54 = arith.constant 0 : index
    %120 = vector.load %arg7[%c1_52, %c0_53, %c0_54] : memref<4x1x16xf32, #tpu.memory_space<vmem>>, vector<1x1x16xf32>
    %121 = vector.shape_cast %120 : vector<1x1x16xf32> to vector<1x16xf32>
    %122 = vector.broadcast %115 : vector<1x1xf32> to vector<1x16xf32>
    %123 = arith.mulf %121, %122 : vector<1x16xf32>
    %124 = vector.broadcast %93 : vector<8x1xf32> to vector<8x16xf32>
    %125 = arith.subf %91, %124 : vector<8x16xf32>
    %126 = vector.broadcast %113 : vector<1x1xf32> to vector<8x16xf32>
    %127 = arith.subf %125, %126 : vector<8x16xf32>
    %128 = math.exp %127 : vector<8x16xf32>
    %cst_55 = arith.constant 9.99999974E-5 : f32
    %129 = vector.broadcast %cst_55 : f32 to vector<8x16xf32>
    %130 = arith.addf %128, %129 : vector<8x16xf32>
    %cst_56 = arith.constant 2.500000e-01 : f32
    %131 = vector.broadcast %cst_56 : f32 to vector<8x16xf32>
    %132 = arith.mulf %131, %130 : vector<8x16xf32>
    %cst_57 = arith.constant dense<0.000000e+00> : vector<8x8xf32>
    %133 = tpu.matmul %106, %119, %cst_57 {dimension_numbers = #tpu.dot_dimension_numbers<[1], [0], [0], [1], [0, 0, 1, 1], [], []>} : vector<8x16xf32>, vector<16x8xf32>, vector<8x8xf32> -> vector<8x8xf32>
    %cst_58 = arith.constant dense<0.000000e+00> : vector<8x1xf32>
    %134 = tpu.matmul %106, %123, %cst_58 {dimension_numbers = #tpu.dot_dimension_numbers<[1], [1], [0], [0], [0, 0, 1, 0], [], []>} : vector<8x16xf32>, vector<1x16xf32>, vector<8x1xf32> -> vector<8x1xf32>
    %cst_59 = arith.constant dense<0.000000e+00> : vector<8x8xf32>
    %135 = tpu.matmul %106, %132, %cst_59 {dimension_numbers = #tpu.dot_dimension_numbers<[1], [1], [0], [0], [0, 0, 1, 0], [], []>} : vector<8x16xf32>, vector<8x16xf32>, vector<8x8xf32> -> vector<8x8xf32>
    %136 = arith.mulf %135, %21 : vector<8x8xf32>
    %cst_60 = arith.constant dense<0.000000e+00> : vector<8x8xf32>
    %137 = tpu.matmul %136, %95, %cst_60 {dimension_numbers = #tpu.dot_dimension_numbers<[1], [0], [0], [1], [0, 0, 1, 1], [], []>} : vector<8x8xf32>, vector<8x8xf32>, vector<8x8xf32> -> vector<8x8xf32>
    %138 = arith.addf %133, %137 : vector<8x8xf32>
    %cst_61 = arith.constant dense<0.000000e+00> : vector<8xf32>
    %139 = vector.multi_reduction <add>, %136, %cst_61 [1] : vector<8x8xf32> to vector<8xf32>
    %140 = vector.shape_cast %139 : vector<8xf32> to vector<8x1xf32>
    %141 = arith.addf %134, %140 : vector<8x1xf32>
    %142 = vector.broadcast %141 : vector<8x1xf32> to vector<8x8xf32>
    %143 = arith.divf %138, %142 : vector<8x8xf32>
    %cst_62 = arith.constant dense<0.000000e+00> : vector<16x8xf32>
    %144 = tpu.matmul %132, %95, %cst_62 {dimension_numbers = #tpu.dot_dimension_numbers<[0], [0], [1], [1], [0, 1, 1, 1], [], []>} : vector<8x16xf32>, vector<8x8xf32>, vector<16x8xf32> -> vector<16x8xf32>
    %145 = arith.addf %119, %144 : vector<16x8xf32>
    %c1_63 = arith.constant 1 : index
    %c0_64 = arith.constant 0 : index
    %c0_65 = arith.constant 0 : index
    %146 = vector.load %arg6[%c1_63, %c0_64, %c0_65] : memref<4x16x8xf32, #tpu.memory_space<vmem>>, vector<1x16x8xf32>
    %147 = vector.shape_cast %146 : vector<1x16x8xf32> to vector<16x8xf32>
    %148 = vector.shape_cast %145 : vector<16x8xf32> to vector<1x16x8xf32>
    tpu.vector_store %arg6[%c1_63, %c0_64, %c0_65], %148 {strides = array<i32>} : memref<4x16x8xf32, #tpu.memory_space<vmem>>, vector<1x16x8xf32>,
    %cst_66 = arith.constant dense<0.000000e+00> : vector<16xf32>
    %149 = vector.multi_reduction <add>, %132, %cst_66 [0] : vector<8x16xf32> to vector<16xf32>
    %150 = vector.shape_cast %149 : vector<16xf32> to vector<1x16xf32>
    %151 = arith.addf %123, %150 : vector<1x16xf32>
    %c1_67 = arith.constant 1 : index
    %c0_68 = arith.constant 0 : index
    %c0_69 = arith.constant 0 : index
    %152 = vector.load %arg7[%c1_67, %c0_68, %c0_69] : memref<4x1x16xf32, #tpu.memory_space<vmem>>, vector<1x1x16xf32>
    %153 = vector.shape_cast %152 : vector<1x1x16xf32> to vector<1x16xf32>
    %154 = vector.shape_cast %151 : vector<1x16xf32> to vector<1x1x16xf32>
    tpu.vector_store %arg7[%c1_67, %c0_68, %c0_69], %154 {strides = array<i32>} : memref<4x1x16xf32, #tpu.memory_space<vmem>>, vector<1x1x16xf32>,
    %c1_70 = arith.constant 1 : index
    %c0_71 = arith.constant 0 : index
    %c0_72 = arith.constant 0 : index
    %155 = vector.load %arg8[%c1_70, %c0_71, %c0_72] : memref<4x1x1xf32, #tpu.memory_space<vmem>>, vector<1x1x1xf32>
    %156 = vector.shape_cast %155 : vector<1x1x1xf32> to vector<1x1xf32>
    %157 = vector.shape_cast %113 : vector<1x1xf32> to vector<1x1x1xf32>
    tpu.vector_store %arg8[%c1_70, %c0_71, %c0_72], %157 {strides = array<i32>} : memref<4x1x1xf32, #tpu.memory_space<vmem>>, vector<1x1x1xf32>,
    %158 = vector.extract_strided_slice %11 {offsets = [0, 32], sizes = [8, 16], strides = [1, 1]} : vector<8x64xf32> to vector<8x16xf32>
    %159 = vector.extract_strided_slice %12 {offsets = [0, 32], sizes = [8, 16], strides = [1, 1]} : vector<8x64xf32> to vector<8x16xf32>
    %160 = vector.extract_strided_slice %14 {offsets = [0, 2], sizes = [8, 1], strides = [1, 1]} : vector<8x4xf32> to vector<8x1xf32>
    %161 = vector.extract_strided_slice %16 {offsets = [0, 2], sizes = [8, 1], strides = [1, 1]} : vector<8x4xf32> to vector<8x1xf32>
    %162 = vector.extract_strided_slice %4 {offsets = [0, 80], sizes = [8, 8], strides = [1, 1]} : vector<8x96xbf16> to vector<8x8xbf16>
    %163 = arith.extf %162 : vector<8x8xbf16> to vector<8x8xf32>
    %164 = vector.broadcast %160 : vector<8x1xf32> to vector<8x16xf32>
    %165 = arith.subf %158, %164 : vector<8x16xf32>
    %cst_73 = arith.constant dense<0xFF800000> : vector<8xf32>
    %166 = vector.multi_reduction <maximumf>, %158, %cst_73 [1] : vector<8x16xf32> to vector<8xf32>
    %167 = vector.shape_cast %166 : vector<8xf32> to vector<8x1xf32>
    %168 = vector.broadcast %167 : vector<8x1xf32> to vector<8x16xf32>
    %169 = arith.subf %165, %168 : vector<8x16xf32>
    %170 = math.exp %169 : vector<8x16xf32>
    %cst_74 = arith.constant 9.99999974E-5 : f32
    %171 = vector.broadcast %cst_74 : f32 to vector<8x16xf32>
    %172 = arith.addf %170, %171 : vector<8x16xf32>
    %cst_75 = arith.constant 2.500000e-01 : f32
    %173 = vector.broadcast %cst_75 : f32 to vector<8x16xf32>
    %174 = arith.mulf %173, %172 : vector<8x16xf32>
    %c2 = arith.constant 2 : index
    %c0_76 = arith.constant 0 : index
    %c0_77 = arith.constant 0 : index
    %175 = vector.load %arg8[%c2, %c0_76, %c0_77] : memref<4x1x1xf32, #tpu.memory_space<vmem>>, vector<1x1x1xf32>
    %176 = vector.shape_cast %175 : vector<1x1x1xf32> to vector<1x1xf32>
    %cst_78 = arith.constant dense<0xFF800000> : vector<8xf32>
    %177 = vector.multi_reduction <maximumf>, %159, %cst_78 [1] : vector<8x16xf32> to vector<8xf32>
    %178 = vector.shape_cast %177 : vector<8xf32> to vector<8x1xf32>
    %cst_79 = arith.constant dense<0xFF800000> : vector<1xf32>
    %179 = vector.multi_reduction <maximumf>, %178, %cst_79 [0] : vector<8x1xf32> to vector<1xf32>
    %180 = vector.shape_cast %179 : vector<1xf32> to vector<1x1xf32>
    %181 = arith.maximumf %176, %180 : vector<1x1xf32>
    %182 = arith.subf %176, %181 : vector<1x1xf32>
    %183 = math.exp %182 : vector<1x1xf32>
    %c2_80 = arith.constant 2 : index
    %c0_81 = arith.constant 0 : index
    %c0_82 = arith.constant 0 : index
    %184 = vector.load %arg6[%c2_80, %c0_81, %c0_82] : memref<4x16x8xf32, #tpu.memory_space<vmem>>, vector<1x16x8xf32>
    %185 = vector.shape_cast %184 : vector<1x16x8xf32> to vector<16x8xf32>
    %186 = vector.broadcast %183 : vector<1x1xf32> to vector<16x8xf32>
    %187 = arith.mulf %185, %186 : vector<16x8xf32>
    %c2_83 = arith.constant 2 : index
    %c0_84 = arith.constant 0 : index
    %c0_85 = arith.constant 0 : index
    %188 = vector.load %arg7[%c2_83, %c0_84, %c0_85] : memref<4x1x16xf32, #tpu.memory_space<vmem>>, vector<1x1x16xf32>
    %189 = vector.shape_cast %188 : vector<1x1x16xf32> to vector<1x16xf32>
    %190 = vector.broadcast %183 : vector<1x1xf32> to vector<1x16xf32>
    %191 = arith.mulf %189, %190 : vector<1x16xf32>
    %192 = vector.broadcast %161 : vector<8x1xf32> to vector<8x16xf32>
    %193 = arith.subf %159, %192 : vector<8x16xf32>
    %194 = vector.broadcast %181 : vector<1x1xf32> to vector<8x16xf32>
    %195 = arith.subf %193, %194 : vector<8x16xf32>
    %196 = math.exp %195 : vector<8x16xf32>
    %cst_86 = arith.constant 9.99999974E-5 : f32
    %197 = vector.broadcast %cst_86 : f32 to vector<8x16xf32>
    %198 = arith.addf %196, %197 : vector<8x16xf32>
    %cst_87 = arith.constant 2.500000e-01 : f32
    %199 = vector.broadcast %cst_87 : f32 to vector<8x16xf32>
    %200 = arith.mulf %199, %198 : vector<8x16xf32>
    %cst_88 = arith.constant dense<0.000000e+00> : vector<8x8xf32>
    %201 = tpu.matmul %174, %187, %cst_88 {dimension_numbers = #tpu.dot_dimension_numbers<[1], [0], [0], [1], [0, 0, 1, 1], [], []>} : vector<8x16xf32>, vector<16x8xf32>, vector<8x8xf32> -> vector<8x8xf32>
    %cst_89 = arith.constant dense<0.000000e+00> : vector<8x1xf32>
    %202 = tpu.matmul %174, %191, %cst_89 {dimension_numbers = #tpu.dot_dimension_numbers<[1], [1], [0], [0], [0, 0, 1, 0], [], []>} : vector<8x16xf32>, vector<1x16xf32>, vector<8x1xf32> -> vector<8x1xf32>
    %cst_90 = arith.constant dense<0.000000e+00> : vector<8x8xf32>
    %203 = tpu.matmul %174, %200, %cst_90 {dimension_numbers = #tpu.dot_dimension_numbers<[1], [1], [0], [0], [0, 0, 1, 0], [], []>} : vector<8x16xf32>, vector<8x16xf32>, vector<8x8xf32> -> vector<8x8xf32>
    %204 = arith.mulf %203, %21 : vector<8x8xf32>
    %cst_91 = arith.constant dense<0.000000e+00> : vector<8x8xf32>
    %205 = tpu.matmul %204, %163, %cst_91 {dimension_numbers = #tpu.dot_dimension_numbers<[1], [0], [0], [1], [0, 0, 1, 1], [], []>} : vector<8x8xf32>, vector<8x8xf32>, vector<8x8xf32> -> vector<8x8xf32>
    %206 = arith.addf %201, %205 : vector<8x8xf32>
    %cst_92 = arith.constant dense<0.000000e+00> : vector<8xf32>
    %207 = vector.multi_reduction <add>, %204, %cst_92 [1] : vector<8x8xf32> to vector<8xf32>
    %208 = vector.shape_cast %207 : vector<8xf32> to vector<8x1xf32>
    %209 = arith.addf %202, %208 : vector<8x1xf32>
    %210 = vector.broadcast %209 : vector<8x1xf32> to vector<8x8xf32>
    %211 = arith.divf %206, %210 : vector<8x8xf32>
    %cst_93 = arith.constant dense<0.000000e+00> : vector<16x8xf32>
    %212 = tpu.matmul %200, %163, %cst_93 {dimension_numbers = #tpu.dot_dimension_numbers<[0], [0], [1], [1], [0, 1, 1, 1], [], []>} : vector<8x16xf32>, vector<8x8xf32>, vector<16x8xf32> -> vector<16x8xf32>
    %213 = arith.addf %187, %212 : vector<16x8xf32>
    %c2_94 = arith.constant 2 : index
    %c0_95 = arith.constant 0 : index
    %c0_96 = arith.constant 0 : index
    %214 = vector.load %arg6[%c2_94, %c0_95, %c0_96] : memref<4x16x8xf32, #tpu.memory_space<vmem>>, vector<1x16x8xf32>
    %215 = vector.shape_cast %214 : vector<1x16x8xf32> to vector<16x8xf32>
    %216 = vector.shape_cast %213 : vector<16x8xf32> to vector<1x16x8xf32>
    tpu.vector_store %arg6[%c2_94, %c0_95, %c0_96], %216 {strides = array<i32>} : memref<4x16x8xf32, #tpu.memory_space<vmem>>, vector<1x16x8xf32>,
    %cst_97 = arith.constant dense<0.000000e+00> : vector<16xf32>
    %217 = vector.multi_reduction <add>, %200, %cst_97 [0] : vector<8x16xf32> to vector<16xf32>
    %218 = vector.shape_cast %217 : vector<16xf32> to vector<1x16xf32>
    %219 = arith.addf %191, %218 : vector<1x16xf32>
    %c2_98 = arith.constant 2 : index
    %c0_99 = arith.constant 0 : index
    %c0_100 = arith.constant 0 : index
    %220 = vector.load %arg7[%c2_98, %c0_99, %c0_100] : memref<4x1x16xf32, #tpu.memory_space<vmem>>, vector<1x1x16xf32>
    %221 = vector.shape_cast %220 : vector<1x1x16xf32> to vector<1x16xf32>
    %222 = vector.shape_cast %219 : vector<1x16xf32> to vector<1x1x16xf32>
    tpu.vector_store %arg7[%c2_98, %c0_99, %c0_100], %222 {strides = array<i32>} : memref<4x1x16xf32, #tpu.memory_space<vmem>>, vector<1x1x16xf32>,
    %c2_101 = arith.constant 2 : index
    %c0_102 = arith.constant 0 : index
    %c0_103 = arith.constant 0 : index
    %223 = vector.load %arg8[%c2_101, %c0_102, %c0_103] : memref<4x1x1xf32, #tpu.memory_space<vmem>>, vector<1x1x1xf32>
    %224 = vector.shape_cast %223 : vector<1x1x1xf32> to vector<1x1xf32>
    %225 = vector.shape_cast %181 : vector<1x1xf32> to vector<1x1x1xf32>
    tpu.vector_store %arg8[%c2_101, %c0_102, %c0_103], %225 {strides = array<i32>} : memref<4x1x1xf32, #tpu.memory_space<vmem>>, vector<1x1x1xf32>,
    %226 = vector.extract_strided_slice %11 {offsets = [0, 48], sizes = [8, 16], strides = [1, 1]} : vector<8x64xf32> to vector<8x16xf32>
    %227 = vector.extract_strided_slice %12 {offsets = [0, 48], sizes = [8, 16], strides = [1, 1]} : vector<8x64xf32> to vector<8x16xf32>
    %228 = vector.extract_strided_slice %14 {offsets = [0, 3], sizes = [8, 1], strides = [1, 1]} : vector<8x4xf32> to vector<8x1xf32>
    %229 = vector.extract_strided_slice %16 {offsets = [0, 3], sizes = [8, 1], strides = [1, 1]} : vector<8x4xf32> to vector<8x1xf32>
    %230 = vector.extract_strided_slice %4 {offsets = [0, 88], sizes = [8, 8], strides = [1, 1]} : vector<8x96xbf16> to vector<8x8xbf16>
    %231 = arith.extf %230 : vector<8x8xbf16> to vector<8x8xf32>
    %232 = vector.broadcast %228 : vector<8x1xf32> to vector<8x16xf32>
    %233 = arith.subf %226, %232 : vector<8x16xf32>
    %cst_104 = arith.constant dense<0xFF800000> : vector<8xf32>
    %234 = vector.multi_reduction <maximumf>, %226, %cst_104 [1] : vector<8x16xf32> to vector<8xf32>
    %235 = vector.shape_cast %234 : vector<8xf32> to vector<8x1xf32>
    %236 = vector.broadcast %235 : vector<8x1xf32> to vector<8x16xf32>
    %237 = arith.subf %233, %236 : vector<8x16xf32>
    %238 = math.exp %237 : vector<8x16xf32>
    %cst_105 = arith.constant 9.99999974E-5 : f32
    %239 = vector.broadcast %cst_105 : f32 to vector<8x16xf32>
    %240 = arith.addf %238, %239 : vector<8x16xf32>
    %cst_106 = arith.constant 2.500000e-01 : f32
    %241 = vector.broadcast %cst_106 : f32 to vector<8x16xf32>
    %242 = arith.mulf %241, %240 : vector<8x16xf32>
    %c3 = arith.constant 3 : index
    %c0_107 = arith.constant 0 : index
    %c0_108 = arith.constant 0 : index
    %243 = vector.load %arg8[%c3, %c0_107, %c0_108] : memref<4x1x1xf32, #tpu.memory_space<vmem>>, vector<1x1x1xf32>
    %244 = vector.shape_cast %243 : vector<1x1x1xf32> to vector<1x1xf32>
    %cst_109 = arith.constant dense<0xFF800000> : vector<8xf32>
    %245 = vector.multi_reduction <maximumf>, %227, %cst_109 [1] : vector<8x16xf32> to vector<8xf32>
    %246 = vector.shape_cast %245 : vector<8xf32> to vector<8x1xf32>
    %cst_110 = arith.constant dense<0xFF800000> : vector<1xf32>
    %247 = vector.multi_reduction <maximumf>, %246, %cst_110 [0] : vector<8x1xf32> to vector<1xf32>
    %248 = vector.shape_cast %247 : vector<1xf32> to vector<1x1xf32>
    %249 = arith.maximumf %244, %248 : vector<1x1xf32>
    %250 = arith.subf %244, %249 : vector<1x1xf32>
    %251 = math.exp %250 : vector<1x1xf32>
    %c3_111 = arith.constant 3 : index
    %c0_112 = arith.constant 0 : index
    %c0_113 = arith.constant 0 : index
    %252 = vector.load %arg6[%c3_111, %c0_112, %c0_113] : memref<4x16x8xf32, #tpu.memory_space<vmem>>, vector<1x16x8xf32>
    %253 = vector.shape_cast %252 : vector<1x16x8xf32> to vector<16x8xf32>
    %254 = vector.broadcast %251 : vector<1x1xf32> to vector<16x8xf32>
    %255 = arith.mulf %253, %254 : vector<16x8xf32>
    %c3_114 = arith.constant 3 : index
    %c0_115 = arith.constant 0 : index
    %c0_116 = arith.constant 0 : index
    %256 = vector.load %arg7[%c3_114, %c0_115, %c0_116] : memref<4x1x16xf32, #tpu.memory_space<vmem>>, vector<1x1x16xf32>
    %257 = vector.shape_cast %256 : vector<1x1x16xf32> to vector<1x16xf32>
    %258 = vector.broadcast %251 : vector<1x1xf32> to vector<1x16xf32>
    %259 = arith.mulf %257, %258 : vector<1x16xf32>
    %260 = vector.broadcast %229 : vector<8x1xf32> to vector<8x16xf32>
    %261 = arith.subf %227, %260 : vector<8x16xf32>
    %262 = vector.broadcast %249 : vector<1x1xf32> to vector<8x16xf32>
    %263 = arith.subf %261, %262 : vector<8x16xf32>
    %264 = math.exp %263 : vector<8x16xf32>
    %cst_117 = arith.constant 9.99999974E-5 : f32
    %265 = vector.broadcast %cst_117 : f32 to vector<8x16xf32>
    %266 = arith.addf %264, %265 : vector<8x16xf32>
    %cst_118 = arith.constant 2.500000e-01 : f32
    %267 = vector.broadcast %cst_118 : f32 to vector<8x16xf32>
    %268 = arith.mulf %267, %266 : vector<8x16xf32>
    %cst_119 = arith.constant dense<0.000000e+00> : vector<8x8xf32>
    %269 = tpu.matmul %242, %255, %cst_119 {dimension_numbers = #tpu.dot_dimension_numbers<[1], [0], [0], [1], [0, 0, 1, 1], [], []>} : vector<8x16xf32>, vector<16x8xf32>, vector<8x8xf32> -> vector<8x8xf32>
    %cst_120 = arith.constant dense<0.000000e+00> : vector<8x1xf32>
    %270 = tpu.matmul %242, %259, %cst_120 {dimension_numbers = #tpu.dot_dimension_numbers<[1], [1], [0], [0], [0, 0, 1, 0], [], []>} : vector<8x16xf32>, vector<1x16xf32>, vector<8x1xf32> -> vector<8x1xf32>
    %cst_121 = arith.constant dense<0.000000e+00> : vector<8x8xf32>
    %271 = tpu.matmul %242, %268, %cst_121 {dimension_numbers = #tpu.dot_dimension_numbers<[1], [1], [0], [0], [0, 0, 1, 0], [], []>} : vector<8x16xf32>, vector<8x16xf32>, vector<8x8xf32> -> vector<8x8xf32>
    %272 = arith.mulf %271, %21 : vector<8x8xf32>
    %cst_122 = arith.constant dense<0.000000e+00> : vector<8x8xf32>
    %273 = tpu.matmul %272, %231, %cst_122 {dimension_numbers = #tpu.dot_dimension_numbers<[1], [0], [0], [1], [0, 0, 1, 1], [], []>} : vector<8x8xf32>, vector<8x8xf32>, vector<8x8xf32> -> vector<8x8xf32>
    %274 = arith.addf %269, %273 : vector<8x8xf32>
    %cst_123 = arith.constant dense<0.000000e+00> : vector<8xf32>
    %275 = vector.multi_reduction <add>, %272, %cst_123 [1] : vector<8x8xf32> to vector<8xf32>
    %276 = vector.shape_cast %275 : vector<8xf32> to vector<8x1xf32>
    %277 = arith.addf %270, %276 : vector<8x1xf32>
    %278 = vector.broadcast %277 : vector<8x1xf32> to vector<8x8xf32>
    %279 = arith.divf %274, %278 : vector<8x8xf32>
    %cst_124 = arith.constant dense<0.000000e+00> : vector<16x8xf32>
    %280 = tpu.matmul %268, %231, %cst_124 {dimension_numbers = #tpu.dot_dimension_numbers<[0], [0], [1], [1], [0, 1, 1, 1], [], []>} : vector<8x16xf32>, vector<8x8xf32>, vector<16x8xf32> -> vector<16x8xf32>
    %281 = arith.addf %255, %280 : vector<16x8xf32>
    %c3_125 = arith.constant 3 : index
    %c0_126 = arith.constant 0 : index
    %c0_127 = arith.constant 0 : index
    %282 = vector.load %arg6[%c3_125, %c0_126, %c0_127] : memref<4x16x8xf32, #tpu.memory_space<vmem>>, vector<1x16x8xf32>
    %283 = vector.shape_cast %282 : vector<1x16x8xf32> to vector<16x8xf32>
    %284 = vector.shape_cast %281 : vector<16x8xf32> to vector<1x16x8xf32>
    tpu.vector_store %arg6[%c3_125, %c0_126, %c0_127], %284 {strides = array<i32>} : memref<4x16x8xf32, #tpu.memory_space<vmem>>, vector<1x16x8xf32>,
    %cst_128 = arith.constant dense<0.000000e+00> : vector<16xf32>
    %285 = vector.multi_reduction <add>, %268, %cst_128 [0] : vector<8x16xf32> to vector<16xf32>
    %286 = vector.shape_cast %285 : vector<16xf32> to vector<1x16xf32>
    %287 = arith.addf %259, %286 : vector<1x16xf32>
    %c3_129 = arith.constant 3 : index
    %c0_130 = arith.constant 0 : index
    %c0_131 = arith.constant 0 : index
    %288 = vector.load %arg7[%c3_129, %c0_130, %c0_131] : memref<4x1x16xf32, #tpu.memory_space<vmem>>, vector<1x1x16xf32>
    %289 = vector.shape_cast %288 : vector<1x1x16xf32> to vector<1x16xf32>
    %290 = vector.shape_cast %287 : vector<1x16xf32> to vector<1x1x16xf32>
    tpu.vector_store %arg7[%c3_129, %c0_130, %c0_131], %290 {strides = array<i32>} : memref<4x1x16xf32, #tpu.memory_space<vmem>>, vector<1x1x16xf32>,
    %c3_132 = arith.constant 3 : index
    %c0_133 = arith.constant 0 : index
    %c0_134 = arith.constant 0 : index
    %291 = vector.load %arg8[%c3_132, %c0_133, %c0_134] : memref<4x1x1xf32, #tpu.memory_space<vmem>>, vector<1x1x1xf32>
    %292 = vector.shape_cast %291 : vector<1x1x1xf32> to vector<1x1xf32>
    %293 = vector.shape_cast %249 : vector<1x1xf32> to vector<1x1x1xf32>
    tpu.vector_store %arg8[%c3_132, %c0_133, %c0_134], %293 {strides = array<i32>} : memref<4x1x1xf32, #tpu.memory_space<vmem>>, vector<1x1x1xf32>,
    %294 = tpu.concatenate %75, %143, %211, %279 in 1 : vector<8x8xf32>, vector<8x8xf32>, vector<8x8xf32>, vector<8x8xf32> -> vector<8x32xf32>
    %295 = arith.truncf %294 : vector<8x32xf32> to vector<8x32xbf16>
    %c0_135 = arith.constant 0 : index
    %c0_136 = arith.constant 0 : index
    %c0_137 = arith.constant 0 : index
    %296 = vector.load %arg5[%c0_135, %c0_136, %c0_137] : memref<1x8x32xbf16, #tpu.memory_space<vmem>>, vector<1x8x32xbf16>
    %297 = vector.shape_cast %296 : vector<1x8x32xbf16> to vector<8x32xbf16>
    %298 = vector.shape_cast %295 : vector<8x32xbf16> to vector<1x8x32xbf16>
    tpu.vector_store %arg5[%c0_135, %c0_136, %c0_137], %298 {strides = array<i32>} : memref<1x8x32xbf16, #tpu.memory_space<vmem>>, vector<1x8x32xbf16>,
    return
  }
  func.func @transform_0(%arg0: i32, %arg1: i32) -> (i32, i32, i32) {
    %c0_i32 = arith.constant 0 : i32
    %c0_i32_0 = arith.constant 0 : i32
    return %arg0, %arg1, %c0_i32 : i32, i32, i32
  }
  func.func @transform_1(%arg0: i32, %arg1: i32) -> (i32, i32) {
    %c0_i32 = arith.constant 0 : i32
    %c0_i32_0 = arith.constant 0 : i32
    %c0_i32_1 = arith.constant 0 : i32
    return %c0_i32, %c0_i32_0 : i32, i32
  }
  func.func @transform_2(%arg0: i32, %arg1: i32) -> (i32, i32) {
    %c0_i32 = arith.constant 0 : i32
    %c0_i32_0 = arith.constant 0 : i32
    %c0_i32_1 = arith.constant 0 : i32
    return %c0_i32, %c0_i32_0 : i32, i32
  }
  func.func @transform_3(%arg0: i32, %arg1: i32) -> (i32, i32, i32) {
    %c0_i32 = arith.constant 0 : i32
    %c0_i32_0 = arith.constant 0 : i32
    return %arg0, %arg1, %c0_i32 : i32, i32, i32
  }
}

module attributes {stable_mosaic.version = 11 : i64} {
  func.func @_ln_linear_kernel(%arg0: i32, %arg1: memref<16x32xf32, #tpu.memory_space<vmem>>, %arg2: memref<1x32xf32, #tpu.memory_space<vmem>>, %arg3: memref<1x32xf32, #tpu.memory_space<vmem>>, %arg4: memref<32x128xbf16, #tpu.memory_space<vmem>>, %arg5: memref<1x128xf32, #tpu.memory_space<vmem>>, %arg6: memref<16x128xbf16, #tpu.memory_space<vmem>>) attributes {dimension_semantics = [#tpu.dimension_semantics<parallel>], iteration_bounds = array<i64: 1>, scalar_prefetch = 0 : i64, scratch_operands = 0 : i64, tpu.core_type = #tpu.core_type<tc>, window_params = [{transform_indices = @transform_0, window_bounds = array<i64: 16, 32>}, {pipeline_mode = #tpu.pipeline_mode<synchronous>, transform_indices = @transform_1, window_bounds = array<i64: 1, 32>}, {pipeline_mode = #tpu.pipeline_mode<synchronous>, transform_indices = @transform_2, window_bounds = array<i64: 1, 32>}, {pipeline_mode = #tpu.pipeline_mode<synchronous>, transform_indices = @transform_3, window_bounds = array<i64: 32, 128>}, {pipeline_mode = #tpu.pipeline_mode<synchronous>, transform_indices = @transform_4, window_bounds = array<i64: 1, 128>}, {transform_indices = @transform_5, window_bounds = array<i64: 16, 128>}]} {
    %c0 = arith.constant 0 : index
    %c0_0 = arith.constant 0 : index
    %0 = vector.load %arg1[%c0, %c0_0] : memref<16x32xf32, #tpu.memory_space<vmem>>, vector<16x32xf32>
    %cst = arith.constant dense<0.000000e+00> : vector<16xf32>
    %1 = vector.multi_reduction <add>, %0, %cst [1] : vector<16x32xf32> to vector<16xf32>
    %2 = vector.shape_cast %1 : vector<16xf32> to vector<16x1xf32>
    %cst_1 = arith.constant 3.200000e+01 : f32
    %3 = vector.broadcast %cst_1 : f32 to vector<16x1xf32>
    %4 = arith.divf %2, %3 : vector<16x1xf32>
    %5 = vector.broadcast %4 : vector<16x1xf32> to vector<16x32xf32>
    %6 = arith.subf %0, %5 : vector<16x32xf32>
    %7 = arith.mulf %6, %6 : vector<16x32xf32>
    %cst_2 = arith.constant dense<0.000000e+00> : vector<16xf32>
    %8 = vector.multi_reduction <add>, %7, %cst_2 [1] : vector<16x32xf32> to vector<16xf32>
    %9 = vector.shape_cast %8 : vector<16xf32> to vector<16x1xf32>
    %cst_3 = arith.constant 3.200000e+01 : f32
    %10 = vector.broadcast %cst_3 : f32 to vector<16x1xf32>
    %11 = arith.divf %9, %10 : vector<16x1xf32>
    %12 = vector.broadcast %4 : vector<16x1xf32> to vector<16x32xf32>
    %13 = arith.subf %0, %12 : vector<16x32xf32>
    %cst_4 = arith.constant 9.99999974E-6 : f32
    %14 = vector.broadcast %cst_4 : f32 to vector<16x1xf32>
    %15 = arith.addf %11, %14 : vector<16x1xf32>
    %16 = math.rsqrt %15 : vector<16x1xf32>
    %17 = vector.broadcast %16 : vector<16x1xf32> to vector<16x32xf32>
    %18 = arith.mulf %13, %17 : vector<16x32xf32>
    %c0_5 = arith.constant 0 : index
    %c0_6 = arith.constant 0 : index
    %19 = vector.load %arg2[%c0_5, %c0_6] : memref<1x32xf32, #tpu.memory_space<vmem>>, vector<1x32xf32>
    %20 = vector.broadcast %19 : vector<1x32xf32> to vector<16x32xf32>
    %21 = arith.mulf %18, %20 : vector<16x32xf32>
    %c0_7 = arith.constant 0 : index
    %c0_8 = arith.constant 0 : index
    %22 = vector.load %arg3[%c0_7, %c0_8] : memref<1x32xf32, #tpu.memory_space<vmem>>, vector<1x32xf32>
    %23 = vector.broadcast %22 : vector<1x32xf32> to vector<16x32xf32>
    %24 = arith.addf %21, %23 : vector<16x32xf32>
    %25 = arith.truncf %24 : vector<16x32xf32> to vector<16x32xbf16>
    %c0_9 = arith.constant 0 : index
    %c0_10 = arith.constant 0 : index
    %26 = vector.load %arg4[%c0_9, %c0_10] : memref<32x128xbf16, #tpu.memory_space<vmem>>, vector<32x128xbf16>
    %cst_11 = arith.constant dense<0.000000e+00> : vector<16x128xf32>
    %27 = tpu.matmul %25, %26, %cst_11 {dimension_numbers = #tpu.dot_dimension_numbers<[1], [0], [0], [1], [0, 0, 1, 1], [], []>} : vector<16x32xbf16>, vector<32x128xbf16>, vector<16x128xf32> -> vector<16x128xf32>
    %c0_12 = arith.constant 0 : index
    %c0_13 = arith.constant 0 : index
    %28 = vector.load %arg5[%c0_12, %c0_13] : memref<1x128xf32, #tpu.memory_space<vmem>>, vector<1x128xf32>
    %29 = vector.broadcast %28 : vector<1x128xf32> to vector<16x128xf32>
    %30 = arith.addf %27, %29 : vector<16x128xf32>
    %31 = arith.mulf %30, %30 : vector<16x128xf32>
    %32 = arith.mulf %30, %31 : vector<16x128xf32>
    %cst_14 = arith.constant 4.471500e-02 : f32
    %33 = vector.broadcast %cst_14 : f32 to vector<16x128xf32>
    %34 = arith.mulf %33, %32 : vector<16x128xf32>
    %35 = arith.addf %30, %34 : vector<16x128xf32>
    %cst_15 = arith.constant 0.797884583 : f32
    %36 = vector.broadcast %cst_15 : f32 to vector<16x128xf32>
    %37 = arith.mulf %36, %35 : vector<16x128xf32>
    %38 = math.tanh %37 : vector<16x128xf32>
    %cst_16 = arith.constant 1.000000e+00 : f32
    %39 = vector.broadcast %cst_16 : f32 to vector<16x128xf32>
    %40 = arith.addf %39, %38 : vector<16x128xf32>
    %cst_17 = arith.constant 5.000000e-01 : f32
    %41 = vector.broadcast %cst_17 : f32 to vector<16x128xf32>
    %42 = arith.mulf %41, %40 : vector<16x128xf32>
    %43 = arith.mulf %30, %42 : vector<16x128xf32>
    %44 = arith.truncf %43 : vector<16x128xf32> to vector<16x128xbf16>
    %c0_18 = arith.constant 0 : index
    %c0_19 = arith.constant 0 : index
    %45 = vector.load %arg6[%c0_18, %c0_19] : memref<16x128xbf16, #tpu.memory_space<vmem>>, vector<16x128xbf16>
    tpu.vector_store %arg6[%c0_18, %c0_19], %44 {strides = array<i32>} : memref<16x128xbf16, #tpu.memory_space<vmem>>, vector<16x128xbf16>,
    return
  }
  func.func @transform_0(%arg0: i32) -> (i32, i32) {
    %c0_i32 = arith.constant 0 : i32
    %c0_i32_0 = arith.constant 0 : i32
    return %arg0, %c0_i32 : i32, i32
  }
  func.func @transform_1(%arg0: i32) -> (i32, i32) {
    %c0_i32 = arith.constant 0 : i32
    %c0_i32_0 = arith.constant 0 : i32
    %c0_i32_1 = arith.constant 0 : i32
    return %c0_i32, %c0_i32_0 : i32, i32
  }
  func.func @transform_2(%arg0: i32) -> (i32, i32) {
    %c0_i32 = arith.constant 0 : i32
    %c0_i32_0 = arith.constant 0 : i32
    %c0_i32_1 = arith.constant 0 : i32
    return %c0_i32, %c0_i32_0 : i32, i32
  }
  func.func @transform_3(%arg0: i32) -> (i32, i32) {
    %c0_i32 = arith.constant 0 : i32
    %c0_i32_0 = arith.constant 0 : i32
    %c0_i32_1 = arith.constant 0 : i32
    return %c0_i32, %c0_i32_0 : i32, i32
  }
  func.func @transform_4(%arg0: i32) -> (i32, i32) {
    %c0_i32 = arith.constant 0 : i32
    %c0_i32_0 = arith.constant 0 : i32
    %c0_i32_1 = arith.constant 0 : i32
    return %c0_i32, %c0_i32_0 : i32, i32
  }
  func.func @transform_5(%arg0: i32) -> (i32, i32) {
    %c0_i32 = arith.constant 0 : i32
    %c0_i32_0 = arith.constant 0 : i32
    return %arg0, %c0_i32 : i32, i32
  }
}

module attributes {stable_mosaic.version = 11 : i64} {
  func.func @_linear_res_kernel(%arg0: i32, %arg1: i32, %arg2: memref<16x128xbf16, #tpu.memory_space<vmem>>, %arg3: memref<128x32xbf16, #tpu.memory_space<vmem>>, %arg4: memref<1x32xf32, #tpu.memory_space<vmem>>, %arg5: memref<16x32xf32, #tpu.memory_space<vmem>>, %arg6: memref<16x32xf32, #tpu.memory_space<vmem>>) attributes {dimension_semantics = [#tpu.dimension_semantics<parallel>, #tpu.dimension_semantics<parallel>], iteration_bounds = array<i64: 1, 1>, scalar_prefetch = 0 : i64, scratch_operands = 0 : i64, tpu.core_type = #tpu.core_type<tc>, window_params = [{transform_indices = @transform_0, window_bounds = array<i64: 16, 128>}, {transform_indices = @transform_1, window_bounds = array<i64: 128, 32>}, {transform_indices = @transform_2, window_bounds = array<i64: 1, 32>}, {transform_indices = @transform_3, window_bounds = array<i64: 16, 32>}, {transform_indices = @transform_4, window_bounds = array<i64: 16, 32>}]} {
    %c0 = arith.constant 0 : index
    %c0_0 = arith.constant 0 : index
    %0 = vector.load %arg2[%c0, %c0_0] : memref<16x128xbf16, #tpu.memory_space<vmem>>, vector<16x128xbf16>
    %c0_1 = arith.constant 0 : index
    %c0_2 = arith.constant 0 : index
    %1 = vector.load %arg3[%c0_1, %c0_2] : memref<128x32xbf16, #tpu.memory_space<vmem>>, vector<128x32xbf16>
    %cst = arith.constant dense<0.000000e+00> : vector<16x32xf32>
    %2 = tpu.matmul %0, %1, %cst {dimension_numbers = #tpu.dot_dimension_numbers<[1], [0], [0], [1], [0, 0, 1, 1], [], []>} : vector<16x128xbf16>, vector<128x32xbf16>, vector<16x32xf32> -> vector<16x32xf32>
    %c0_3 = arith.constant 0 : index
    %c0_4 = arith.constant 0 : index
    %3 = vector.load %arg4[%c0_3, %c0_4] : memref<1x32xf32, #tpu.memory_space<vmem>>, vector<1x32xf32>
    %4 = vector.broadcast %3 : vector<1x32xf32> to vector<16x32xf32>
    %5 = arith.addf %2, %4 : vector<16x32xf32>
    %c0_5 = arith.constant 0 : index
    %c0_6 = arith.constant 0 : index
    %6 = vector.load %arg5[%c0_5, %c0_6] : memref<16x32xf32, #tpu.memory_space<vmem>>, vector<16x32xf32>
    %7 = arith.addf %5, %6 : vector<16x32xf32>
    %c0_7 = arith.constant 0 : index
    %c0_8 = arith.constant 0 : index
    %8 = vector.load %arg6[%c0_7, %c0_8] : memref<16x32xf32, #tpu.memory_space<vmem>>, vector<16x32xf32>
    tpu.vector_store %arg6[%c0_7, %c0_8], %7 {strides = array<i32>} : memref<16x32xf32, #tpu.memory_space<vmem>>, vector<16x32xf32>,
    return
  }
  func.func @transform_0(%arg0: i32, %arg1: i32) -> (i32, i32) {
    %c0_i32 = arith.constant 0 : i32
    %c0_i32_0 = arith.constant 0 : i32
    return %arg0, %c0_i32 : i32, i32
  }
  func.func @transform_1(%arg0: i32, %arg1: i32) -> (i32, i32) {
    %c0_i32 = arith.constant 0 : i32
    %c0_i32_0 = arith.constant 0 : i32
    return %c0_i32, %arg1 : i32, i32
  }
  func.func @transform_2(%arg0: i32, %arg1: i32) -> (i32, i32) {
    %c0_i32 = arith.constant 0 : i32
    %c0_i32_0 = arith.constant 0 : i32
    return %c0_i32, %arg1 : i32, i32
  }
  func.func @transform_3(%arg0: i32, %arg1: i32) -> (i32, i32) {
    %c0_i32 = arith.constant 0 : i32
    return %arg0, %arg1 : i32, i32
  }
  func.func @transform_4(%arg0: i32, %arg1: i32) -> (i32, i32) {
    %c0_i32 = arith.constant 0 : i32
    return %arg0, %arg1 : i32, i32
  }
}

module attributes {stable_mosaic.version = 11 : i64} {
  func.func @_linear_kernel(%arg0: i32, %arg1: i32, %arg2: memref<16x32xbf16, #tpu.memory_space<vmem>>, %arg3: memref<32x64xbf16, #tpu.memory_space<vmem>>, %arg4: memref<1x64xf32, #tpu.memory_space<vmem>>, %arg5: memref<16x64xf32, #tpu.memory_space<vmem>>) attributes {dimension_semantics = [#tpu.dimension_semantics<parallel>, #tpu.dimension_semantics<parallel>], iteration_bounds = array<i64: 1, 1>, scalar_prefetch = 0 : i64, scratch_operands = 0 : i64, tpu.core_type = #tpu.core_type<tc>, window_params = [{transform_indices = @transform_0, window_bounds = array<i64: 16, 32>}, {transform_indices = @transform_1, window_bounds = array<i64: 32, 64>}, {transform_indices = @transform_2, window_bounds = array<i64: 1, 64>}, {transform_indices = @transform_3, window_bounds = array<i64: 16, 64>}]} {
    %c0 = arith.constant 0 : index
    %c0_0 = arith.constant 0 : index
    %0 = vector.load %arg2[%c0, %c0_0] : memref<16x32xbf16, #tpu.memory_space<vmem>>, vector<16x32xbf16>
    %c0_1 = arith.constant 0 : index
    %c0_2 = arith.constant 0 : index
    %1 = vector.load %arg3[%c0_1, %c0_2] : memref<32x64xbf16, #tpu.memory_space<vmem>>, vector<32x64xbf16>
    %cst = arith.constant dense<0.000000e+00> : vector<16x64xf32>
    %2 = tpu.matmul %0, %1, %cst {dimension_numbers = #tpu.dot_dimension_numbers<[1], [0], [0], [1], [0, 0, 1, 1], [], []>} : vector<16x32xbf16>, vector<32x64xbf16>, vector<16x64xf32> -> vector<16x64xf32>
    %c0_3 = arith.constant 0 : index
    %c0_4 = arith.constant 0 : index
    %3 = vector.load %arg4[%c0_3, %c0_4] : memref<1x64xf32, #tpu.memory_space<vmem>>, vector<1x64xf32>
    %4 = vector.broadcast %3 : vector<1x64xf32> to vector<16x64xf32>
    %5 = arith.addf %2, %4 : vector<16x64xf32>
    %c0_5 = arith.constant 0 : index
    %c0_6 = arith.constant 0 : index
    %6 = vector.load %arg5[%c0_5, %c0_6] : memref<16x64xf32, #tpu.memory_space<vmem>>, vector<16x64xf32>
    tpu.vector_store %arg5[%c0_5, %c0_6], %5 {strides = array<i32>} : memref<16x64xf32, #tpu.memory_space<vmem>>, vector<16x64xf32>,
    return
  }
  func.func @transform_0(%arg0: i32, %arg1: i32) -> (i32, i32) {
    %c0_i32 = arith.constant 0 : i32
    %c0_i32_0 = arith.constant 0 : i32
    return %arg1, %c0_i32 : i32, i32
  }
  func.func @transform_1(%arg0: i32, %arg1: i32) -> (i32, i32) {
    %c0_i32 = arith.constant 0 : i32
    %c0_i32_0 = arith.constant 0 : i32
    return %c0_i32, %arg0 : i32, i32
  }
  func.func @transform_2(%arg0: i32, %arg1: i32) -> (i32, i32) {
    %c0_i32 = arith.constant 0 : i32
    %c0_i32_0 = arith.constant 0 : i32
    return %c0_i32, %arg0 : i32, i32
  }
  func.func @transform_3(%arg0: i32, %arg1: i32) -> (i32, i32) {
    %c0_i32 = arith.constant 0 : i32
    return %arg1, %arg0 : i32, i32
  }
}

</mosaic_0001>

<llo_original>
// kernel: performer_model_forward.15
$region0: #{performer_model_forward.15}
  #allocation0 [shape = 'u32[]', space=smem, size = 0x4, offset = 0x4, fixed_abs, tag = 'smem constant byte address 0x4 - core index']
  #allocation1 [shape = 'u32[144,128]{1,0:T(1,128)}', space=vmem, size = 0x12000, scoped, tag = 'internal scratch']
  %s0 = inlined_call_operand.vmem [shape: bf16[16,32], index: 0, kind: input, shape index: {}]
  %s1 = inlined_call_operand.vmem [shape: bf16[32,32], index: 1, kind: input, shape index: {}]
  %s2 = inlined_call_operand.vmem [shape: f32[1,32], index: 2, kind: input, shape index: {}]
  %s3 = inlined_call_operand.vmem [shape: f32[16,32], index: 3, kind: input, shape index: {}]
  %s4 = inlined_call_operand.vmem [shape: f32[16,32], index: 4, kind: output, shape index: {}]
  %s5 = sld [smem:[#allocation0]]
  $region26: #{performer_model_forward.15} parent=0
    _
  %s7 = ssub.s32 1, %s5
  %s8 = scalar_select 0, %s7, %s5
  // Predicated region
  $region2: #{performer_model_forward.15} parent=0 // pred_check
    _
  $region3: #{performer_model_forward.15} parent=0 // pred_check_branch
    %10 = sbr.rel (0) target = $region5
  $region4: #{performer_model_forward.15} parent=0 // pred_region
    _
  $region5: #{performer_model_forward.15} parent=0 // pred_fallthru
    _
  // Predicated region
  $region6: #{performer_model_forward.15} parent=0 // pred_check
    _
  $region7: #{performer_model_forward.15} parent=0 // pred_check_branch
    %12 = sbr.rel (0) target = $region9
  $region8: #{performer_model_forward.15} parent=0 // pred_region
    _
  $region9: #{performer_model_forward.15} parent=0 // pred_fallthru
    _
  // Predicated region
  $region10: #{performer_model_forward.15} parent=0 // pred_check
    _
  $region11: #{performer_model_forward.15} parent=0 // pred_check_branch
    %14 = sbr.rel (0) target = $region13
  $region12: #{performer_model_forward.15} parent=0 // pred_region
    _
  $region13: #{performer_model_forward.15} parent=0 // pred_fallthru
    _
  // Predicated region
  $region14: #{performer_model_forward.15} parent=0 // pred_check
    _
  $region15: #{performer_model_forward.15} parent=0 // pred_check_branch
    %16 = sbr.rel (0) target = $region17
  $region16: #{performer_model_forward.15} parent=0 // pred_region
    _
  $region17: #{performer_model_forward.15} parent=0 // pred_fallthru
    _
  %v18 = vld [vmem:[%s0] sm:$0xf]
  %v19 = vld [vmem:[%s0 + $0x4] sm:$0xf]
  %v20 = vld [vmem:[%s1] sm:$0xf]
  %v21 = vld [vmem:[%s1 + $0x4] sm:$0xf]
  %v22 = vld [vmem:[%s1 + $0x8] sm:$0xf]
  %v23 = vld [vmem:[%s1 + $0xc] sm:$0xf]
  %v24 = vld [vmem:[%s2] sm:$0x1]
  %v26 = vlaneseq
  %v27 = vshrl.u32 %v26, 7
  %v28 = vsub.s32 0, %v27
  %v29 = vrot.slane %v24, %v28
  %v33 = vunpack.c.l.b16 %v18
  %v34 = vunpack.c.l.b16 %v19
  %v35 = vpack.c.b16 %v34, %v33
  %v40 = vunpack.c.l.b16 %v20
  %v41 = vunpack.c.l.b16 %v21
  %v42 = vunpack.c.l.b16 %v22
  %v43 = vunpack.c.l.b16 %v23
  %v44 = vpack.c.b16 %v41, %v40
  %v45 = vpack.c.b16 %v43, %v42
  %vm48 = vcmask 261120
  %v50 = vsel %vm48, %v35, 0
  %52 = vmatprep.subr.bf16.mxu0 0
  %53 = vmatpush1.bf16.msra.mxu0 %v44
  %54 = vmatprep.subr.bf16.mxu0 0
  %55 = vmatpush1.bf16.msra.mxu0 %v45
  %56 = vmatprep.subr.bf16.mxu0 0
  %57 = vmatpush1.bf16.msra.mxu0 0
  %58 = vmatprep.subr.bf16.mxu0 0
  %59 = vmatpush1.bf16.msra.mxu0 0
  %60 = vmatprep.subr.bf16.mxu0 0
  %61 = vmatpush1.bf16.msra.mxu0 0
  %62 = vmatprep.subr.bf16.mxu0 0
  %63 = vmatpush1.bf16.msra.mxu0 0
  %64 = vmatprep.subr.bf16.mxu0 0
  %65 = vmatpush1.bf16.msra.mxu0 0
  %66 = vmatprep.subr.bf16.mxu0 0
  %67 = vmatpush1.bf16.msra.mxu0 0
  %68 = vmatprep.subr.bf16.mxu0 0
  %69 = vmatpush1.bf16.msra.mxu0 0
  %70 = vmatprep.subr.bf16.mxu0 0
  %71 = vmatpush1.bf16.msra.mxu0 0
  %72 = vmatprep.subr.bf16.mxu0 0
  %73 = vmatpush1.bf16.msra.mxu0 0
  %74 = vmatprep.subr.bf16.mxu0 0
  %75 = vmatpush1.bf16.msra.mxu0 0
  %76 = vmatprep.subr.bf16.mxu0 0
  %77 = vmatpush1.bf16.msra.mxu0 0
  %78 = vmatprep.subr.bf16.mxu0 0
  %79 = vmatpush1.bf16.msra.mxu0 0
  %80 = vmatprep.subr.bf16.mxu0 0
  %81 = vmatpush1.bf16.msra.mxu0 0
  %82 = vmatprep.subr.bf16.mxu0 0
  %83 = vmatpush1.bf16.msra.mxu0 0
  %84 = vmatprep.mubr.bf16.mxu0 0
  %85 = vmatmul.mubr.bf16.gmra.mrb[0].mxu0 %v50
  %v86 = vpop.f32.mrb[0].mxu0
  %v87 = vadd.f32 %v29, %v86
  %v88 = vpop.f32.mrb[0].mxu0
  %v89 = vpop.f32.mrb[0].mxu0
  %v90 = vadd.f32 %v29, %v89
  %v91 = vpop.f32.mrb[0].mxu0
  %92 = vdwg.mxu0
  %v93 = vld [vmem:[%s3] sm:$0xff]
  %v94 = vld [vmem:[%s3 + $0x8] sm:$0xff]
  %v95 = vadd.f32 %v87, %v93
  %v96 = vadd.f32 %v90, %v94
  %97 = vst.msk [vmem:[%s4] sm:$0xff] %vm48, %v95
  %98 = vst.msk [vmem:[%s4 + $0x8] sm:$0xff] %vm48, %v96
  // Predicated region
  $region18: #{performer_model_forward.15} parent=0 // pred_check
    _
  $region19: #{performer_model_forward.15} parent=0 // pred_check_branch
    %100 = sbr.rel (0) target = $region21
  $region20: #{performer_model_forward.15} parent=0 // pred_region
    _
  $region21: #{performer_model_forward.15} parent=0 // pred_fallthru
    _
  // Predicated region
  $region22: #{performer_model_forward.15} parent=0 // pred_check
    _
  $region23: #{performer_model_forward.15} parent=0 // pred_check_branch
    %102 = sbr.rel (0) target = $region25
  $region24: #{performer_model_forward.15} parent=0 // pred_region
    _
  $region25: #{performer_model_forward.15} parent=0 // pred_fallthru
    _

// kernel: performer_model_forward.12
$region0: #{performer_model_forward.12}
  #allocation0 [shape = 'u32[]', space=smem, size = 0x4, offset = 0x4, fixed_abs, tag = 'smem constant byte address 0x4 - core index']
  #allocation1 [shape = 'u32[144,128]{1,0:T(1,128)}', space=vmem, size = 0x12000, scoped, tag = 'internal scratch']
  %s0 = inlined_call_operand.vmem [shape: f32[16,32], index: 0, kind: input, shape index: {}]
  %s1 = inlined_call_operand.vmem [shape: f32[1,32], index: 1, kind: input, shape index: {}]
  %s2 = inlined_call_operand.vmem [shape: f32[1,32], index: 2, kind: input, shape index: {}]
  %s3 = inlined_call_operand.vmem [shape: f32[16,32], index: 3, kind: output, shape index: {}]
  %s4 = sld [smem:[#allocation0]]
  $region22: #{performer_model_forward.12} parent=0
    _
  %s6 = ssub.s32 1, %s4
  %s7 = scalar_select 0, %s6, %s4
  // Predicated region
  $region2: #{performer_model_forward.12} parent=0 // pred_check
    _
  $region3: #{performer_model_forward.12} parent=0 // pred_check_branch
    %9 = sbr.rel (0) target = $region5
  $region4: #{performer_model_forward.12} parent=0 // pred_region
    _
  $region5: #{performer_model_forward.12} parent=0 // pred_fallthru
    _
  // Predicated region
  $region6: #{performer_model_forward.12} parent=0 // pred_check
    _
  $region7: #{performer_model_forward.12} parent=0 // pred_check_branch
    %11 = sbr.rel (0) target = $region9
  $region8: #{performer_model_forward.12} parent=0 // pred_region
    _
  $region9: #{performer_model_forward.12} parent=0 // pred_fallthru
    _
  // Predicated region
  $region10: #{performer_model_forward.12} parent=0 // pred_check
    _
  $region11: #{performer_model_forward.12} parent=0 // pred_check_branch
    %13 = sbr.rel (0) target = $region13
  $region12: #{performer_model_forward.12} parent=0 // pred_region
    _
  $region13: #{performer_model_forward.12} parent=0 // pred_fallthru
    _
  %v14 = vld [vmem:[%s0] sm:$0xff]
  %v15 = vld [vmem:[%s0 + $0x8] sm:$0xff]
  %vm16 = vcmask 261120
  %v17 = vsel %vm16, %v14, 0.0
  %18 = vadd.xlane.f32.xlu0 %v17
  %v19 = vpop.xlane.xlu0 %18
  %v20 = vsel %vm16, %v15, 0.0
  %21 = vadd.xlane.f32.xlu0 %v20
  %v22 = vpop.xlane.xlu0 %21
  %v23 = vrcp.pop 32.0
  %v24 = vmul.f32 %v19, %v23
  %v25 = vmul.f32 %v22, %v23
  %v26 = vsub.f32 %v14, %v24
  %v27 = vsub.f32 %v15, %v25
  %v28 = vmul.f32 %v26, %v26
  %v29 = vmul.f32 %v27, %v27
  %v30 = vsel %vm16, %v28, 0.0
  %31 = vadd.xlane.f32.xlu0 %v30
  %v32 = vpop.xlane.xlu0 %31
  %v33 = vsel %vm16, %v29, 0.0
  %34 = vadd.xlane.f32.xlu0 %v33
  %v35 = vpop.xlane.xlu0 %34
  %v36 = vmul.f32 %v32, %v23
  %v37 = vmul.f32 %v35, %v23
  %v38 = vadd.f32 %v36, 1e-05
  %v39 = vadd.f32 %v37, 1e-05
  %v40 = vrsqrt.pop %v38
  %v41 = vrsqrt.pop %v39
  %v42 = vmul.f32 %v26, %v40
  %v43 = vmul.f32 %v27, %v41
  %v44 = vld [vmem:[%s1] sm:$0x1]
  %v46 = vlaneseq
  %v47 = vshrl.u32 %v46, 7
  %v48 = vsub.s32 0, %v47
  %v49 = vrot.slane %v44, %v48
  %v51 = vmul.f32 %v42, %v49
  %v52 = vmul.f32 %v43, %v49
  %v53 = vld [vmem:[%s2] sm:$0x1]
  %v55 = vlaneseq
  %v56 = vshrl.u32 %v55, 7
  %v57 = vsub.s32 0, %v56
  %v58 = vrot.slane %v53, %v57
  %v60 = vadd.f32 %v51, %v58
  %v61 = vadd.f32 %v52, %v58
  %62 = vst.msk [vmem:[%s3] sm:$0xff] %vm16, %v60
  %63 = vst.msk [vmem:[%s3 + $0x8] sm:$0xff] %vm16, %v61
  // Predicated region
  $region14: #{performer_model_forward.12} parent=0 // pred_check
    _
  $region15: #{performer_model_forward.12} parent=0 // pred_check_branch
    %65 = sbr.rel (0) target = $region17
  $region16: #{performer_model_forward.12} parent=0 // pred_region
    _
  $region17: #{performer_model_forward.12} parent=0 // pred_fallthru
    _
  // Predicated region
  $region18: #{performer_model_forward.12} parent=0 // pred_check
    _
  $region19: #{performer_model_forward.12} parent=0 // pred_check_branch
    %67 = sbr.rel (0) target = $region21
  $region20: #{performer_model_forward.12} parent=0 // pred_region
    _
  $region21: #{performer_model_forward.12} parent=0 // pred_fallthru
    _

// kernel: performer_model_forward.13
$region0: #{performer_model_forward.13}
  #allocation0 [shape = 'u32[]', space=smem, size = 0x4, offset = 0x4, fixed_abs, tag = 'smem constant byte address 0x4 - core index']
  #allocation1 [shape = 'u32[144,128]{1,0:T(1,128)}', space=vmem, size = 0x12000, scoped, tag = 'internal scratch']
  %s0 = inlined_call_operand.vmem [shape: f32[16,32], index: 0, kind: input, shape index: {}]
  %s1 = inlined_call_operand.vmem [shape: f32[1,32], index: 1, kind: input, shape index: {}]
  %s2 = inlined_call_operand.vmem [shape: f32[1,32], index: 2, kind: input, shape index: {}]
  %s3 = inlined_call_operand.vmem [shape: bf16[32,96], index: 3, kind: input, shape index: {}]
  %s4 = inlined_call_operand.vmem [shape: f32[1,96], index: 4, kind: input, shape index: {}]
  %s5 = inlined_call_operand.vmem [shape: bf16[16,96], index: 5, kind: output, shape index: {}]
  %s6 = sld [smem:[#allocation0]]
  $region30: #{performer_model_forward.13} parent=0
    _
  %s8 = ssub.s32 1, %s6
  %s9 = scalar_select 0, %s8, %s6
  // Predicated region
  $region2: #{performer_model_forward.13} parent=0 // pred_check
    _
  $region3: #{performer_model_forward.13} parent=0 // pred_check_branch
    %11 = sbr.rel (0) target = $region5
  $region4: #{performer_model_forward.13} parent=0 // pred_region
    _
  $region5: #{performer_model_forward.13} parent=0 // pred_fallthru
    _
  // Predicated region
  $region6: #{performer_model_forward.13} parent=0 // pred_check
    _
  $region7: #{performer_model_forward.13} parent=0 // pred_check_branch
    %13 = sbr.rel (0) target = $region9
  $region8: #{performer_model_forward.13} parent=0 // pred_region
    _
  $region9: #{performer_model_forward.13} parent=0 // pred_fallthru
    _
  // Predicated region
  $region10: #{performer_model_forward.13} parent=0 // pred_check
    _
  $region11: #{performer_model_forward.13} parent=0 // pred_check_branch
    %15 = sbr.rel (0) target = $region13
  $region12: #{performer_model_forward.13} parent=0 // pred_region
    _
  $region13: #{performer_model_forward.13} parent=0 // pred_fallthru
    _
  // Predicated region
  $region14: #{performer_model_forward.13} parent=0 // pred_check
    _
  $region15: #{performer_model_forward.13} parent=0 // pred_check_branch
    %17 = sbr.rel (0) target = $region17
  $region16: #{performer_model_forward.13} parent=0 // pred_region
    _
  $region17: #{performer_model_forward.13} parent=0 // pred_fallthru
    _
  // Predicated region
  $region18: #{performer_model_forward.13} parent=0 // pred_check
    _
  $region19: #{performer_model_forward.13} parent=0 // pred_check_branch
    %19 = sbr.rel (0) target = $region21
  $region20: #{performer_model_forward.13} parent=0 // pred_region
    _
  $region21: #{performer_model_forward.13} parent=0 // pred_fallthru
    _
  %v21 = vld [vmem:[%s0] sm:$0xff]
  %v22 = vld [vmem:[%s0 + $0x8] sm:$0xff]
  %vm23 = vcmask 261120
  %v24 = vsel %vm23, %v21, 0.0
  %25 = vadd.xlane.f32.xlu0 %v24
  %v26 = vpop.xlane.xlu0 %25
  %v27 = vsel %vm23, %v22, 0.0
  %28 = vadd.xlane.f32.xlu0 %v27
  %v29 = vpop.xlane.xlu0 %28
  %v30 = vrcp.pop 32.0
  %v31 = vmul.f32 %v26, %v30
  %v32 = vmul.f32 %v29, %v30
  %v33 = vsub.f32 %v21, %v31
  %v34 = vsub.f32 %v22, %v32
  %v35 = vmul.f32 %v33, %v33
  %v36 = vmul.f32 %v34, %v34
  %v37 = vsel %vm23, %v35, 0.0
  %38 = vadd.xlane.f32.xlu0 %v37
  %v39 = vpop.xlane.xlu0 %38
  %v40 = vsel %vm23, %v36, 0.0
  %41 = vadd.xlane.f32.xlu0 %v40
  %v42 = vpop.xlane.xlu0 %41
  %v43 = vmul.f32 %v39, %v30
  %v44 = vmul.f32 %v42, %v30
  %v45 = vadd.f32 %v43, 1e-05
  %v46 = vadd.f32 %v44, 1e-05
  %v47 = vrsqrt.pop %v45
  %v48 = vrsqrt.pop %v46
  %v49 = vmul.f32 %v33, %v47
  %v50 = vmul.f32 %v34, %v48
  %v51 = vld [vmem:[%s1] sm:$0x1]
  %v53 = vlaneseq
  %v54 = vshrl.u32 %v53, 7
  %v55 = vsub.s32 0, %v54
  %v56 = vrot.slane %v51, %v55
  %v58 = vmul.f32 %v49, %v56
  %v59 = vmul.f32 %v50, %v56
  %v60 = vld [vmem:[%s2] sm:$0x1]
  %v62 = vlaneseq
  %v63 = vshrl.u32 %v62, 7
  %v64 = vsub.s32 0, %v63
  %v65 = vrot.slane %v60, %v64
  %v67 = vadd.f32 %v58, %v65
  %v68 = vadd.f32 %v59, %v65
  %v69 = vpack.c.bf16 %v68, %v67
  %v70 = vld [vmem:[%s3] sm:$0xf]
  %v71 = vld [vmem:[%s3 + $0x4] sm:$0xf]
  %v72 = vld [vmem:[%s3 + $0x8] sm:$0xf]
  %v73 = vld [vmem:[%s3 + $0xc] sm:$0xf]
  %v74 = vld [vmem:[%s4] sm:$0x1]
  %v76 = vlaneseq
  %v77 = vshrl.u32 %v76, 7
  %v78 = vsub.s32 0, %v77
  %v79 = vrot.slane %v74, %v78
  %v85 = vunpack.c.l.b16 %v70
  %v86 = vunpack.c.l.b16 %v71
  %v87 = vunpack.c.l.b16 %v72
  %v88 = vunpack.c.l.b16 %v73
  %v89 = vpack.c.b16 %v86, %v85
  %v90 = vpack.c.b16 %v88, %v87
  %v94 = vsel %vm23, %v69, 0
  %96 = vmatprep.subr.bf16.mxu0 0
  %97 = vmatpush1.bf16.msra.mxu0 %v89
  %98 = vmatprep.subr.bf16.mxu0 0
  %99 = vmatpush1.bf16.msra.mxu0 %v90
  %100 = vmatprep.subr.bf16.mxu0 0
  %101 = vmatpush1.bf16.msra.mxu0 0
  %102 = vmatprep.subr.bf16.mxu0 0
  %103 = vmatpush1.bf16.msra.mxu0 0
  %104 = vmatprep.subr.bf16.mxu0 0
  %105 = vmatpush1.bf16.msra.mxu0 0
  %106 = vmatprep.subr.bf16.mxu0 0
  %107 = vmatpush1.bf16.msra.mxu0 0
  %108 = vmatprep.subr.bf16.mxu0 0
  %109 = vmatpush1.bf16.msra.mxu0 0
  %110 = vmatprep.subr.bf16.mxu0 0
  %111 = vmatpush1.bf16.msra.mxu0 0
  %112 = vmatprep.subr.bf16.mxu0 0
  %113 = vmatpush1.bf16.msra.mxu0 0
  %114 = vmatprep.subr.bf16.mxu0 0
  %115 = vmatpush1.bf16.msra.mxu0 0
  %116 = vmatprep.subr.bf16.mxu0 0
  %117 = vmatpush1.bf16.msra.mxu0 0
  %118 = vmatprep.subr.bf16.mxu0 0
  %119 = vmatpush1.bf16.msra.mxu0 0
  %120 = vmatprep.subr.bf16.mxu0 0
  %121 = vmatpush1.bf16.msra.mxu0 0
  %122 = vmatprep.subr.bf16.mxu0 0
  %123 = vmatpush1.bf16.msra.mxu0 0
  %124 = vmatprep.subr.bf16.mxu0 0
  %125 = vmatpush1.bf16.msra.mxu0 0
  %126 = vmatprep.subr.bf16.mxu0 0
  %127 = vmatpush1.bf16.msra.mxu0 0
  %128 = vmatprep.mubr.bf16.mxu0 0
  %129 = vmatmul.mubr.bf16.gmra.mrb[0].mxu0 %v94
  %v130 = vpop.f32.mrb[0].mxu0
  %v131 = vadd.f32 %v79, %v130
  %v132 = vpop.f32.mrb[0].mxu0
  %v133 = vpop.f32.mrb[0].mxu0
  %v134 = vadd.f32 %v79, %v133
  %v135 = vpop.f32.mrb[0].mxu0
  %136 = vdwg.mxu0
  %v137 = vpack.c.bf16 %v134, %v131
  %v139 = vunpack.c.l.b16 %v137
  %v140 = vunpack.c.h.b16 %v137
  %v141 = vpack.c.b16 %v139, %v139
  %v142 = vpack.c.b16 %v140, %v140
  %vm145 = vcmask 781312
  %146 = vst.msk [vmem:[%s5] sm:$0xf] %vm145, %v141
  %147 = vst.msk [vmem:[%s5 + $0x4] sm:$0xf] %vm145, %v142
  // Predicated region
  $region22: #{performer_model_forward.13} parent=0 // pred_check
    _
  $region23: #{performer_model_forward.13} parent=0 // pred_check_branch
    %149 = sbr.rel (0) target = $region25
  $region24: #{performer_model_forward.13} parent=0 // pred_region
    _
  $region25: #{performer_model_forward.13} parent=0 // pred_fallthru
    _
  // Predicated region
  $region26: #{performer_model_forward.13} parent=0 // pred_check
    _
  $region27: #{performer_model_forward.13} parent=0 // pred_check_branch
    %151 = sbr.rel (0) target = $region29
  $region28: #{performer_model_forward.13} parent=0 // pred_region
    _
  $region29: #{performer_model_forward.13} parent=0 // pred_fallthru
    _

// kernel: performer_model_forward.17
$region0: #{performer_model_forward.17}
  #allocation0 [shape = 'u32[]', space=smem, size = 0x4, offset = 0x4, fixed_abs, tag = 'smem constant byte address 0x4 - core index']
  #allocation1 [shape = 'u32[144,128]{1,0:T(1,128)}', space=vmem, size = 0x12000, scoped, tag = 'internal scratch']
  %s0 = inlined_call_operand.vmem [shape: bf16[16,128], index: 0, kind: input, shape index: {}]
  %s1 = inlined_call_operand.vmem [shape: bf16[128,32], index: 1, kind: input, shape index: {}]
  %s2 = inlined_call_operand.vmem [shape: f32[1,32], index: 2, kind: input, shape index: {}]
  %s3 = inlined_call_operand.vmem [shape: f32[16,32], index: 3, kind: input, shape index: {}]
  %s4 = inlined_call_operand.vmem [shape: f32[16,32], index: 4, kind: output, shape index: {}]
  %s5 = sld [smem:[#allocation0]]
  $region26: #{performer_model_forward.17} parent=0
    _
  %s7 = ssub.s32 1, %s5
  %s8 = scalar_select 0, %s7, %s5
  // Predicated region
  $region2: #{performer_model_forward.17} parent=0 // pred_check
    _
  $region3: #{performer_model_forward.17} parent=0 // pred_check_branch
    %10 = sbr.rel (0) target = $region5
  $region4: #{performer_model_forward.17} parent=0 // pred_region
    _
  $region5: #{performer_model_forward.17} parent=0 // pred_fallthru
    _
  // Predicated region
  $region6: #{performer_model_forward.17} parent=0 // pred_check
    _
  $region7: #{performer_model_forward.17} parent=0 // pred_check_branch
    %12 = sbr.rel (0) target = $region9
  $region8: #{performer_model_forward.17} parent=0 // pred_region
    _
  $region9: #{performer_model_forward.17} parent=0 // pred_fallthru
    _
  // Predicated region
  $region10: #{performer_model_forward.17} parent=0 // pred_check
    _
  $region11: #{performer_model_forward.17} parent=0 // pred_check_branch
    %14 = sbr.rel (0) target = $region13
  $region12: #{performer_model_forward.17} parent=0 // pred_region
    _
  $region13: #{performer_model_forward.17} parent=0 // pred_fallthru
    _
  // Predicated region
  $region14: #{performer_model_forward.17} parent=0 // pred_check
    _
  $region15: #{performer_model_forward.17} parent=0 // pred_check_branch
    %16 = sbr.rel (0) target = $region17
  $region16: #{performer_model_forward.17} parent=0 // pred_region
    _
  $region17: #{performer_model_forward.17} parent=0 // pred_fallthru
    _
  %v18 = vld [vmem:[%s0] sm:$0xf]
  %v19 = vld [vmem:[%s0 + $0x4] sm:$0xf]
  %v20 = vld [vmem:[%s1] sm:$0xf]
  %v21 = vld [vmem:[%s1 + $0x4] sm:$0xf]
  %v22 = vld [vmem:[%s1 + $0x8] sm:$0xf]
  %v23 = vld [vmem:[%s1 + $0xc] sm:$0xf]
  %v24 = vld [vmem:[%s1 + $0x10] sm:$0xf]
  %v25 = vld [vmem:[%s1 + $0x14] sm:$0xf]
  %v26 = vld [vmem:[%s1 + $0x18] sm:$0xf]
  %v27 = vld [vmem:[%s1 + $0x1c] sm:$0xf]
  %v28 = vld [vmem:[%s1 + $0x20] sm:$0xf]
  %v29 = vld [vmem:[%s1 + $0x24] sm:$0xf]
  %v30 = vld [vmem:[%s1 + $0x28] sm:$0xf]
  %v31 = vld [vmem:[%s1 + $0x2c] sm:$0xf]
  %v32 = vld [vmem:[%s1 + $0x30] sm:$0xf]
  %v33 = vld [vmem:[%s1 + $0x34] sm:$0xf]
  %v34 = vld [vmem:[%s1 + $0x38] sm:$0xf]
  %v35 = vld [vmem:[%s1 + $0x3c] sm:$0xf]
  %v36 = vld [vmem:[%s2] sm:$0x1]
  %v38 = vlaneseq
  %v39 = vshrl.u32 %v38, 7
  %v40 = vsub.s32 0, %v39
  %v41 = vrot.slane %v36, %v40
  %v45 = vunpack.c.l.b16 %v18
  %v46 = vunpack.c.l.b16 %v19
  %v47 = vpack.c.b16 %v46, %v45
  %v65 = vunpack.c.l.b16 %v20
  %v66 = vunpack.c.l.b16 %v21
  %v67 = vunpack.c.l.b16 %v22
  %v68 = vunpack.c.l.b16 %v23
  %v69 = vunpack.c.l.b16 %v24
  %v70 = vunpack.c.l.b16 %v25
  %v71 = vunpack.c.l.b16 %v26
  %v72 = vunpack.c.l.b16 %v27
  %v73 = vunpack.c.l.b16 %v28
  %v74 = vunpack.c.l.b16 %v29
  %v75 = vunpack.c.l.b16 %v30
  %v76 = vunpack.c.l.b16 %v31
  %v77 = vunpack.c.l.b16 %v32
  %v78 = vunpack.c.l.b16 %v33
  %v79 = vunpack.c.l.b16 %v34
  %v80 = vunpack.c.l.b16 %v35
  %v81 = vpack.c.b16 %v66, %v65
  %v82 = vpack.c.b16 %v68, %v67
  %v83 = vpack.c.b16 %v70, %v69
  %v84 = vpack.c.b16 %v72, %v71
  %v85 = vpack.c.b16 %v74, %v73
  %v86 = vpack.c.b16 %v76, %v75
  %v87 = vpack.c.b16 %v78, %v77
  %v88 = vpack.c.b16 %v80, %v79
  %97 = vmatprep.subr.bf16.mxu0 0
  %98 = vmatpush1.bf16.msra.mxu0 %v81
  %99 = vmatprep.subr.bf16.mxu0 0
  %100 = vmatpush1.bf16.msra.mxu0 %v82
  %101 = vmatprep.subr.bf16.mxu0 0
  %102 = vmatpush1.bf16.msra.mxu0 %v83
  %103 = vmatprep.subr.bf16.mxu0 0
  %104 = vmatpush1.bf16.msra.mxu0 %v84
  %105 = vmatprep.subr.bf16.mxu0 0
  %106 = vmatpush1.bf16.msra.mxu0 %v85
  %107 = vmatprep.subr.bf16.mxu0 0
  %108 = vmatpush1.bf16.msra.mxu0 %v86
  %109 = vmatprep.subr.bf16.mxu0 0
  %110 = vmatpush1.bf16.msra.mxu0 %v87
  %111 = vmatprep.subr.bf16.mxu0 0
  %112 = vmatpush1.bf16.msra.mxu0 %v88
  %113 = vmatprep.subr.bf16.mxu0 0
  %114 = vmatpush1.bf16.msra.mxu0 0
  %115 = vmatprep.subr.bf16.mxu0 0
  %116 = vmatpush1.bf16.msra.mxu0 0
  %117 = vmatprep.subr.bf16.mxu0 0
  %118 = vmatpush1.bf16.msra.mxu0 0
  %119 = vmatprep.subr.bf16.mxu0 0
  %120 = vmatpush1.bf16.msra.mxu0 0
  %121 = vmatprep.subr.bf16.mxu0 0
  %122 = vmatpush1.bf16.msra.mxu0 0
  %123 = vmatprep.subr.bf16.mxu0 0
  %124 = vmatpush1.bf16.msra.mxu0 0
  %125 = vmatprep.subr.bf16.mxu0 0
  %126 = vmatpush1.bf16.msra.mxu0 0
  %127 = vmatprep.subr.bf16.mxu0 0
  %128 = vmatpush1.bf16.msra.mxu0 0
  %129 = vmatprep.mubr.bf16.mxu0 0
  %130 = vmatmul.mubr.bf16.gmra.mrb[0].mxu0 %v47
  %v131 = vpop.f32.mrb[0].mxu0
  %v132 = vadd.f32 %v41, %v131
  %v133 = vpop.f32.mrb[0].mxu0
  %v134 = vpop.f32.mrb[0].mxu0
  %v135 = vadd.f32 %v41, %v134
  %v136 = vpop.f32.mrb[0].mxu0
  %137 = vdwg.mxu0
  %v138 = vld [vmem:[%s3] sm:$0xff]
  %v139 = vld [vmem:[%s3 + $0x8] sm:$0xff]
  %v140 = vadd.f32 %v132, %v138
  %v141 = vadd.f32 %v135, %v139
  %vm142 = vcmask 261120
  %143 = vst.msk [vmem:[%s4] sm:$0xff] %vm142, %v140
  %144 = vst.msk [vmem:[%s4 + $0x8] sm:$0xff] %vm142, %v141
  // Predicated region
  $region18: #{performer_model_forward.17} parent=0 // pred_check
    _
  $region19: #{performer_model_forward.17} parent=0 // pred_check_branch
    %146 = sbr.rel (0) target = $region21
  $region20: #{performer_model_forward.17} parent=0 // pred_region
    _
  $region21: #{performer_model_forward.17} parent=0 // pred_fallthru
    _
  // Predicated region
  $region22: #{performer_model_forward.17} parent=0 // pred_check
    _
  $region23: #{performer_model_forward.17} parent=0 // pred_check_branch
    %148 = sbr.rel (0) target = $region25
  $region24: #{performer_model_forward.17} parent=0 // pred_region
    _
  $region25: #{performer_model_forward.17} parent=0 // pred_fallthru
    _

// kernel: performer_model_forward.16
$region0: #{performer_model_forward.16}
  #allocation0 [shape = 'u32[]', space=smem, size = 0x4, offset = 0x4, fixed_abs, tag = 'smem constant byte address 0x4 - core index']
  #allocation1 [shape = 'u32[144,128]{1,0:T(1,128)}', space=vmem, size = 0x12000, scoped, tag = 'internal scratch']
  %s0 = inlined_call_operand.vmem [shape: f32[16,32], index: 0, kind: input, shape index: {}]
  %s1 = inlined_call_operand.vmem [shape: f32[1,32], index: 1, kind: input, shape index: {}]
  %s2 = inlined_call_operand.vmem [shape: f32[1,32], index: 2, kind: input, shape index: {}]
  %s3 = inlined_call_operand.vmem [shape: bf16[32,128], index: 3, kind: input, shape index: {}]
  %s4 = inlined_call_operand.vmem [shape: f32[1,128], index: 4, kind: input, shape index: {}]
  %s5 = inlined_call_operand.vmem [shape: bf16[16,128], index: 5, kind: output, shape index: {}]
  %s6 = sld [smem:[#allocation0]]
  $region30: #{performer_model_forward.16} parent=0
    _
  %s8 = ssub.s32 1, %s6
  %s9 = scalar_select 0, %s8, %s6
  // Predicated region
  $region2: #{performer_model_forward.16} parent=0 // pred_check
    _
  $region3: #{performer_model_forward.16} parent=0 // pred_check_branch
    %11 = sbr.rel (0) target = $region5
  $region4: #{performer_model_forward.16} parent=0 // pred_region
    _
  $region5: #{performer_model_forward.16} parent=0 // pred_fallthru
    _
  // Predicated region
  $region6: #{performer_model_forward.16} parent=0 // pred_check
    _
  $region7: #{performer_model_forward.16} parent=0 // pred_check_branch
    %13 = sbr.rel (0) target = $region9
  $region8: #{performer_model_forward.16} parent=0 // pred_region
    _
  $region9: #{performer_model_forward.16} parent=0 // pred_fallthru
    _
  // Predicated region
  $region10: #{performer_model_forward.16} parent=0 // pred_check
    _
  $region11: #{performer_model_forward.16} parent=0 // pred_check_branch
    %15 = sbr.rel (0) target = $region13
  $region12: #{performer_model_forward.16} parent=0 // pred_region
    _
  $region13: #{performer_model_forward.16} parent=0 // pred_fallthru
    _
  // Predicated region
  $region14: #{performer_model_forward.16} parent=0 // pred_check
    _
  $region15: #{performer_model_forward.16} parent=0 // pred_check_branch
    %17 = sbr.rel (0) target = $region17
  $region16: #{performer_model_forward.16} parent=0 // pred_region
    _
  $region17: #{performer_model_forward.16} parent=0 // pred_fallthru
    _
  // Predicated region
  $region18: #{performer_model_forward.16} parent=0 // pred_check
    _
  $region19: #{performer_model_forward.16} parent=0 // pred_check_branch
    %19 = sbr.rel (0) target = $region21
  $region20: #{performer_model_forward.16} parent=0 // pred_region
    _
  $region21: #{performer_model_forward.16} parent=0 // pred_fallthru
    _
  %v21 = vld [vmem:[%s0] sm:$0xff]
  %v22 = vld [vmem:[%s0 + $0x8] sm:$0xff]
  %vm23 = vcmask 261120
  %v24 = vsel %vm23, %v21, 0.0
  %25 = vadd.xlane.f32.xlu0 %v24
  %v26 = vpop.xlane.xlu0 %25
  %v27 = vsel %vm23, %v22, 0.0
  %28 = vadd.xlane.f32.xlu0 %v27
  %v29 = vpop.xlane.xlu0 %28
  %v30 = vrcp.pop 32.0
  %v31 = vmul.f32 %v26, %v30
  %v32 = vmul.f32 %v29, %v30
  %v33 = vsub.f32 %v21, %v31
  %v34 = vsub.f32 %v22, %v32
  %v35 = vmul.f32 %v33, %v33
  %v36 = vmul.f32 %v34, %v34
  %v37 = vsel %vm23, %v35, 0.0
  %38 = vadd.xlane.f32.xlu0 %v37
  %v39 = vpop.xlane.xlu0 %38
  %v40 = vsel %vm23, %v36, 0.0
  %41 = vadd.xlane.f32.xlu0 %v40
  %v42 = vpop.xlane.xlu0 %41
  %v43 = vmul.f32 %v39, %v30
  %v44 = vmul.f32 %v42, %v30
  %v45 = vadd.f32 %v43, 1e-05
  %v46 = vadd.f32 %v44, 1e-05
  %v47 = vrsqrt.pop %v45
  %v48 = vrsqrt.pop %v46
  %v49 = vmul.f32 %v33, %v47
  %v50 = vmul.f32 %v34, %v48
  %v51 = vld [vmem:[%s1] sm:$0x1]
  %v53 = vlaneseq
  %v54 = vshrl.u32 %v53, 7
  %v55 = vsub.s32 0, %v54
  %v56 = vrot.slane %v51, %v55
  %v58 = vmul.f32 %v49, %v56
  %v59 = vmul.f32 %v50, %v56
  %v60 = vld [vmem:[%s2] sm:$0x1]
  %v62 = vlaneseq
  %v63 = vshrl.u32 %v62, 7
  %v64 = vsub.s32 0, %v63
  %v65 = vrot.slane %v60, %v64
  %v67 = vadd.f32 %v58, %v65
  %v68 = vadd.f32 %v59, %v65
  %v69 = vpack.c.bf16 %v68, %v67
  %v70 = vld [vmem:[%s3] sm:$0xf]
  %v71 = vld [vmem:[%s3 + $0x4] sm:$0xf]
  %v72 = vld [vmem:[%s3 + $0x8] sm:$0xf]
  %v73 = vld [vmem:[%s3 + $0xc] sm:$0xf]
  %v74 = vld [vmem:[%s4] sm:$0x1]
  %v76 = vlaneseq
  %v77 = vshrl.u32 %v76, 7
  %v78 = vsub.s32 0, %v77
  %v79 = vrot.slane %v74, %v78
  %v85 = vunpack.c.l.b16 %v70
  %v86 = vunpack.c.l.b16 %v71
  %v87 = vunpack.c.l.b16 %v72
  %v88 = vunpack.c.l.b16 %v73
  %v89 = vpack.c.b16 %v86, %v85
  %v90 = vpack.c.b16 %v88, %v87
  %v94 = vsel %vm23, %v69, 0
  %96 = vmatprep.subr.bf16.mxu0 0
  %97 = vmatpush1.bf16.msra.mxu0 %v89
  %98 = vmatprep.subr.bf16.mxu0 0
  %99 = vmatpush1.bf16.msra.mxu0 %v90
  %100 = vmatprep.subr.bf16.mxu0 0
  %101 = vmatpush1.bf16.msra.mxu0 0
  %102 = vmatprep.subr.bf16.mxu0 0
  %103 = vmatpush1.bf16.msra.mxu0 0
  %104 = vmatprep.subr.bf16.mxu0 0
  %105 = vmatpush1.bf16.msra.mxu0 0
  %106 = vmatprep.subr.bf16.mxu0 0
  %107 = vmatpush1.bf16.msra.mxu0 0
  %108 = vmatprep.subr.bf16.mxu0 0
  %109 = vmatpush1.bf16.msra.mxu0 0
  %110 = vmatprep.subr.bf16.mxu0 0
  %111 = vmatpush1.bf16.msra.mxu0 0
  %112 = vmatprep.subr.bf16.mxu0 0
  %113 = vmatpush1.bf16.msra.mxu0 0
  %114 = vmatprep.subr.bf16.mxu0 0
  %115 = vmatpush1.bf16.msra.mxu0 0
  %116 = vmatprep.subr.bf16.mxu0 0
  %117 = vmatpush1.bf16.msra.mxu0 0
  %118 = vmatprep.subr.bf16.mxu0 0
  %119 = vmatpush1.bf16.msra.mxu0 0
  %120 = vmatprep.subr.bf16.mxu0 0
  %121 = vmatpush1.bf16.msra.mxu0 0
  %122 = vmatprep.subr.bf16.mxu0 0
  %123 = vmatpush1.bf16.msra.mxu0 0
  %124 = vmatprep.subr.bf16.mxu0 0
  %125 = vmatpush1.bf16.msra.mxu0 0
  %126 = vmatprep.subr.bf16.mxu0 0
  %127 = vmatpush1.bf16.msra.mxu0 0
  %128 = vmatprep.mubr.bf16.mxu0 0
  %129 = vmatmul.mubr.bf16.gmra.mrb[0].mxu0 %v94
  %v130 = vpop.f32.mrb[0].mxu0
  %v131 = vadd.f32 %v79, %v130
  %v132 = vpop.f32.mrb[0].mxu0
  %v133 = vpop.f32.mrb[0].mxu0
  %v134 = vadd.f32 %v79, %v133
  %v135 = vpop.f32.mrb[0].mxu0
  %136 = vdwg.mxu0
  %v137 = vmul.f32 %v131, %v131
  %v138 = vmul.f32 %v134, %v134
  %v139 = vmul.f32 %v131, %v137
  %v140 = vmul.f32 %v134, %v138
  %v141 = vmul.f32 %v139, 0.044715
  %v142 = vmul.f32 %v140, 0.044715
  %v143 = vadd.f32 %v131, %v141
  %v144 = vadd.f32 %v134, %v142
  %v145 = vmul.f32 %v143, 0.7978846
  %v146 = vmul.f32 %v144, 0.7978846
  %v147 = vtanh.pop %v145
  %v148 = vtanh.pop %v146
  %v149 = vadd.f32 %v147, 1.0
  %v150 = vadd.f32 %v148, 1.0
  %v151 = vmul.f32 %v149, 0.5
  %v152 = vmul.f32 %v150, 0.5
  %v153 = vmul.f32 %v131, %v151
  %v154 = vmul.f32 %v134, %v152
  %v155 = vpack.c.bf16 %v154, %v153
  %v157 = vunpack.c.l.b16 %v155
  %v158 = vunpack.c.h.b16 %v155
  %v159 = vpack.c.b16 %v157, %v157
  %v160 = vpack.c.b16 %v158, %v158
  %163 = vst [vmem:[%s5] sm:$0xf] %v159
  %164 = vst [vmem:[%s5 + $0x4] sm:$0xf] %v160
  // Predicated region
  $region22: #{performer_model_forward.16} parent=0 // pred_check
    _
  $region23: #{performer_model_forward.16} parent=0 // pred_check_branch
    %166 = sbr.rel (0) target = $region25
  $region24: #{performer_model_forward.16} parent=0 // pred_region
    _
  $region25: #{performer_model_forward.16} parent=0 // pred_fallthru
    _
  // Predicated region
  $region26: #{performer_model_forward.16} parent=0 // pred_check
    _
  $region27: #{performer_model_forward.16} parent=0 // pred_check_branch
    %168 = sbr.rel (0) target = $region29
  $region28: #{performer_model_forward.16} parent=0 // pred_region
    _
  $region29: #{performer_model_forward.16} parent=0 // pred_fallthru
    _

// kernel: performer_model_forward.23
$region0: #{performer_model_forward.23}
  #allocation0 [shape = 'u32[]', space=smem, size = 0x4, offset = 0x4, fixed_abs, tag = 'smem constant byte address 0x4 - core index']
  #allocation1 [shape = 'u32[144,128]{1,0:T(1,128)}', space=vmem, size = 0x12000, scoped, tag = 'internal scratch']
  %s0 = inlined_call_operand.vmem [shape: bf16[16,32], index: 0, kind: input, shape index: {}]
  %s1 = inlined_call_operand.vmem [shape: bf16[32,64], index: 1, kind: input, shape index: {}]
  %s2 = inlined_call_operand.vmem [shape: f32[1,64], index: 2, kind: input, shape index: {}]
  %s3 = inlined_call_operand.hbm [shape: f32[16,64], index: 3, kind: output, shape index: {}]
  %s4 = sld [smem:[#allocation0]]
  $region22: #{performer_model_forward.23} parent=0
    _
  %s6 = ssub.s32 1, %s4
  %s7 = scalar_select 0, %s6, %s4
  $region1: #{performer_model_forward.23} parent=0
    #allocation2 [shape = 'u8[8192]{0}', space=vmem, size = 0x2000, scoped, tag = 'output window, operand 0, single buffered']
    #allocation3 [shape = 's32[1]{0}', space=sflag, size = 0x4, scoped, tag = 'scoped memory for performer_model_forward.23']
    %8 = vsyncpa [#allocation3], 0
    // Predicated region
    $region2: #{performer_model_forward.23} parent=1 // pred_check
      _
    $region3: #{performer_model_forward.23} parent=1 // pred_check_branch
      %10 = sbr.rel (0) target = $region5
    $region4: #{performer_model_forward.23} parent=1 // pred_region
      _
    $region5: #{performer_model_forward.23} parent=1 // pred_fallthru
      _
    // Predicated region
    $region6: #{performer_model_forward.23} parent=1 // pred_check
      _
    $region7: #{performer_model_forward.23} parent=1 // pred_check_branch
      %12 = sbr.rel (0) target = $region9
    $region8: #{performer_model_forward.23} parent=1 // pred_region
      _
    $region9: #{performer_model_forward.23} parent=1 // pred_fallthru
      _
    // Predicated region
    $region10: #{performer_model_forward.23} parent=1 // pred_check
      _
    $region11: #{performer_model_forward.23} parent=1 // pred_check_branch
      %14 = sbr.rel (0) target = $region13
    $region12: #{performer_model_forward.23} parent=1 // pred_region
      _
    $region13: #{performer_model_forward.23} parent=1 // pred_fallthru
      _
    %v16 = vld [vmem:[%s0] sm:$0xf]
    %v17 = vld [vmem:[%s0 + $0x4] sm:$0xf]
    %v18 = vld [vmem:[%s1] sm:$0xf]
    %v19 = vld [vmem:[%s1 + $0x4] sm:$0xf]
    %v20 = vld [vmem:[%s1 + $0x8] sm:$0xf]
    %v21 = vld [vmem:[%s1 + $0xc] sm:$0xf]
    %v22 = vld [vmem:[%s2] sm:$0x1]
    %v24 = vlaneseq
    %v25 = vshrl.u32 %v24, 7
    %v26 = vsub.s32 0, %v25
    %v27 = vrot.slane %v22, %v26
    %v31 = vunpack.c.l.b16 %v16
    %v32 = vunpack.c.l.b16 %v17
    %v33 = vpack.c.b16 %v32, %v31
    %v38 = vunpack.c.l.b16 %v18
    %v39 = vunpack.c.l.b16 %v19
    %v40 = vunpack.c.l.b16 %v20
    %v41 = vunpack.c.l.b16 %v21
    %v42 = vpack.c.b16 %v39, %v38
    %v43 = vpack.c.b16 %v41, %v40
    %vm46 = vcmask 261120
    %v48 = vsel %vm46, %v33, 0
    %50 = vmatprep.subr.bf16.mxu0 0
    %51 = vmatpush1.bf16.msra.mxu0 %v42
    %52 = vmatprep.subr.bf16.mxu0 0
    %53 = vmatpush1.bf16.msra.mxu0 %v43
    %54 = vmatprep.subr.bf16.mxu0 0
    %55 = vmatpush1.bf16.msra.mxu0 0
    %56 = vmatprep.subr.bf16.mxu0 0
    %57 = vmatpush1.bf16.msra.mxu0 0
    %58 = vmatprep.subr.bf16.mxu0 0
    %59 = vmatpush1.bf16.msra.mxu0 0
    %60 = vmatprep.subr.bf16.mxu0 0
    %61 = vmatpush1.bf16.msra.mxu0 0
    %62 = vmatprep.subr.bf16.mxu0 0
    %63 = vmatpush1.bf16.msra.mxu0 0
    %64 = vmatprep.subr.bf16.mxu0 0
    %65 = vmatpush1.bf16.msra.mxu0 0
    %66 = vmatprep.subr.bf16.mxu0 0
    %67 = vmatpush1.bf16.msra.mxu0 0
    %68 = vmatprep.subr.bf16.mxu0 0
    %69 = vmatpush1.bf16.msra.mxu0 0
    %70 = vmatprep.subr.bf16.mxu0 0
    %71 = vmatpush1.bf16.msra.mxu0 0
    %72 = vmatprep.subr.bf16.mxu0 0
    %73 = vmatpush1.bf16.msra.mxu0 0
    %74 = vmatprep.subr.bf16.mxu0 0
    %75 = vmatpush1.bf16.msra.mxu0 0
    %76 = vmatprep.subr.bf16.mxu0 0
    %77 = vmatpush1.bf16.msra.mxu0 0
    %78 = vmatprep.subr.bf16.mxu0 0
    %79 = vmatpush1.bf16.msra.mxu0 0
    %80 = vmatprep.subr.bf16.mxu0 0
    %81 = vmatpush1.bf16.msra.mxu0 0
    %82 = vmatprep.mubr.bf16.mxu0 0
    %83 = vmatmul.mubr.bf16.gmra.mrb[0].mxu0 %v48
    %v84 = vpop.f32.mrb[0].mxu0
    %v85 = vadd.f32 %v27, %v84
    %v86 = vpop.f32.mrb[0].mxu0
    %v87 = vpop.f32.mrb[0].mxu0
    %v88 = vadd.f32 %v27, %v87
    %v89 = vpop.f32.mrb[0].mxu0
    %90 = vdwg.mxu0
    %vm91 = vcmask 523264
    %92 = vst.msk [vmem:[#allocation2] sm:$0xff] %vm91, %v85
    %93 = vst.msk [vmem:[#allocation2 + $0x8] sm:$0xff] %vm91, %v88
    // Predicated region
    $region14: #{performer_model_forward.23} parent=1 // pred_check
      _
    $region15: #{performer_model_forward.23} parent=1 // pred_check_branch
      %95 = sbr.rel (0) target = $region17
    $region16: #{performer_model_forward.23} parent=1 // pred_region
      %s97 = ssub.s32 256, 256
      %98 = vsyncadd [#allocation3], %s97
      %s99 = sshll.u32 [#allocation2], 4
      %s100 = int_to_ptr.vmem [resolvable:$true] %s99
      %105 = dma.vmem_to_hbm [thread:$0]  %s100, 256, %s3, [#allocation3], 128, 128, 8
    $region17: #{performer_model_forward.23} parent=1 // pred_fallthru
      _
    // Predicated region
    $region18: #{performer_model_forward.23} parent=1 // pred_check
      _
    $region19: #{performer_model_forward.23} parent=1 // pred_check_branch
      %107 = sbr.rel (0) target = $region21
    $region20: #{performer_model_forward.23} parent=1 // pred_region
      %108 = dma.done [#allocation3], 256
    $region21: #{performer_model_forward.23} parent=1 // pred_fallthru
      _
    %109 = vsyncpa [#allocation3], 1

// kernel: performer_model_forward.14
$region0: #{performer_model_forward.14}
  #allocation0 [shape = 'u32[]', space=smem, size = 0x4, offset = 0x4, fixed_abs, tag = 'smem constant byte address 0x4 - core index']
  #allocation1 [shape = 'u32[144,128]{1,0:T(1,128)}', space=vmem, size = 0x12000, scoped, tag = 'internal scratch']
  #allocation2 [shape = 'f32[4,16,8]{2,1,0:T(8,128)}', space=vmem, size = 0x8000, scoped, tag = 'scratch operand']
  #allocation3 [shape = 'f32[4,1,16]{2,1,0:T(1,128)}', space=vmem, size = 0x800, scoped, tag = 'scratch operand']
  #allocation4 [shape = 'f32[4,1,1]{2,1,0:T(1,128)}', space=vmem, size = 0x800, scoped, tag = 'scratch operand']
  %s0 = inlined_call_operand.vmem [shape: bf16[2,8,96], index: 0, kind: input, shape index: {}]
  %s1 = inlined_call_operand.vmem [shape: bf16[32,64], index: 1, kind: input, shape index: {}]
  %s2 = inlined_call_operand.vmem [shape: f32[32,4], index: 2, kind: input, shape index: {}]
  %s3 = inlined_call_operand.vmem [shape: bf16[2,8,32], index: 3, kind: output, shape index: {}]
  %s4 = sld [smem:[#allocation0]]
  $region49: #{performer_model_forward.14} parent=0
    _
  %s6 = ssub.s32 1, %s4
  %s7 = scalar_select 0, %s6, %s4
  loop: start=0, step=1, limit=4
  $region2: #{performer_model_forward.14} parent=0 // loop_pre_header
    _
  $region3: #{performer_model_forward.14} parent=0 // loop_header
    %s9 = sphi 0, %s13
    %p10 = scmp.ge.s32.totalorder %s9, 4
    %s16 = sphi 0, %s28
    %s17 = sphi 0, %s24
    %s18 = sphi 0, %s16
    %s19 = sphi 0, %s17
    %s20 = sphi 0, %s18
    %s21 = sphi 0, %s19
    %s33 = sphi 0, %s35
    %s36 = sphi 0, %s33
    %s37 = sphi 0, %s36
    %s53 = sphi 0, %s37
    %s57 = sphi 0, %s57
    %s59 = sphi 0, %s57
    %s60 = sphi 0, %s59
    %s74 = sphi 0, %s60
    %s78 = sphi 0, %s78
    %s80 = sphi 0, %s78
    %s81 = sphi 0, %s80
    %s95 = sphi 0, %s81
    %s103 = sphi 0, %s105
    %s106 = sphi 0, %s103
    %s107 = sphi 0, %s106
    %s123 = sphi 0, %s107
  $region4: #{performer_model_forward.14} parent=0 // loop_header_branch
    %12 = sbr.rel (%p10) target = $region8
  $region5: #{performer_model_forward.14} parent=0 // loop_body
    %s14 = ssub.s32 %s9, 1
    %s15 = ssub.s32 %s9, 2
    %s22 = sadd.s32 1, %s17
    %p23 = scmp.ge.s32.totalorder %s22, 1
    %s24 = scalar_select %p23, 0, %s22
    %s25 = sadd.s32 1, %s16
    %s26 = scalar_select %p23, %s25, %s16
    %p27 = scmp.ge.s32.totalorder %s26, 2
    %s28 = scalar_select %p27, 0, %s26
    %s29 = ssub.s32 %s16, %s28
    %s30 = ssub.s32 %s17, %s24
    %s31 = sor.u32 %s29, %s30
    %p32 = scmp.eq.s32.totalorder %s31, 0
    %s34 = sadd.s32 %s33, 1
    %s35 = scalar_select %p32, %s33, %s34
    %p38 = pneg %p32
    %p39 = scmp.eq.s32.totalorder %s9, 1
    %p40 = por %p38, %p39
    %p41 = scmp.ne.s32.totalorder %s33, %s36
    %p42 = scmp.eq.s32.totalorder %s9, 0
    %p43 = por %p41, %p42
    %p44 = scmp.ne.s32.totalorder %s33, %s36
    %p45 = scmp.eq.s32.totalorder %s14, 1
    %p46 = por %p44, %p45
    %p47 = scmp.ne.s32.totalorder %s36, %s37
    %p48 = scmp.eq.s32.totalorder %s14, 0
    %p49 = por %p47, %p48
    %p50 = scmp.ne.s32.totalorder %s36, %s37
    %p51 = scmp.eq.s32.totalorder %s15, 1
    %p52 = por %p50, %p51
    %p54 = scmp.ne.s32.totalorder %s37, %s53
    %p55 = scmp.eq.s32.totalorder %s15, 0
    %p56 = por %p54, %p55
    %s58 = sadd.s32 %s57, 1
    %p61 = scmp.eq.s32.totalorder %s9, 1
    %p62 = scmp.ne.s32.totalorder %s57, %s59
    %p63 = scmp.eq.s32.totalorder %s9, 0
    %p64 = por %p62, %p63
    %p65 = scmp.ne.s32.totalorder %s57, %s59
    %p66 = scmp.eq.s32.totalorder %s14, 1
    %p67 = por %p65, %p66
    %p68 = scmp.ne.s32.totalorder %s59, %s60
    %p69 = scmp.eq.s32.totalorder %s14, 0
    %p70 = por %p68, %p69
    %p71 = scmp.ne.s32.totalorder %s59, %s60
    %p72 = scmp.eq.s32.totalorder %s15, 1
    %p73 = por %p71, %p72
    %p75 = scmp.ne.s32.totalorder %s60, %s74
    %p76 = scmp.eq.s32.totalorder %s15, 0
    %p77 = por %p75, %p76
    %s79 = sadd.s32 %s78, 1
    %p82 = scmp.eq.s32.totalorder %s9, 1
    %p83 = scmp.ne.s32.totalorder %s78, %s80
    %p84 = scmp.eq.s32.totalorder %s9, 0
    %p85 = por %p83, %p84
    %p86 = scmp.ne.s32.totalorder %s78, %s80
    %p87 = scmp.eq.s32.totalorder %s14, 1
    %p88 = por %p86, %p87
    %p89 = scmp.ne.s32.totalorder %s80, %s81
    %p90 = scmp.eq.s32.totalorder %s14, 0
    %p91 = por %p89, %p90
    %p92 = scmp.ne.s32.totalorder %s80, %s81
    %p93 = scmp.eq.s32.totalorder %s15, 1
    %p94 = por %p92, %p93
    %p96 = scmp.ne.s32.totalorder %s81, %s95
    %p97 = scmp.eq.s32.totalorder %s15, 0
    %p98 = por %p96, %p97
    %s99 = ssub.s32 %s16, %s28
    %s100 = ssub.s32 %s17, %s24
    %s101 = sor.u32 %s99, %s100
    %p102 = scmp.eq.s32.totalorder %s101, 0
    %s104 = sadd.s32 %s103, 1
    %s105 = scalar_select %p102, %s103, %s104
    %p108 = pneg %p102
    %p109 = scmp.eq.s32.totalorder %s9, 1
    %p110 = por %p108, %p109
    %p111 = scmp.ne.s32.totalorder %s103, %s106
    %p112 = scmp.eq.s32.totalorder %s9, 0
    %p113 = por %p111, %p112
    %p114 = scmp.ne.s32.totalorder %s103, %s106
    %p115 = scmp.eq.s32.totalorder %s14, 1
    %p116 = por %p114, %p115
    %p117 = scmp.ne.s32.totalorder %s106, %s107
    %p118 = scmp.eq.s32.totalorder %s14, 0
    %p119 = por %p117, %p118
    %p120 = scmp.ne.s32.totalorder %s106, %s107
    %p121 = scmp.eq.s32.totalorder %s15, 1
    %p122 = por %p120, %p121
    %p124 = scmp.ne.s32.totalorder %s107, %s123
    %p125 = scmp.eq.s32.totalorder %s15, 0
    %p126 = por %p124, %p125
    %p127 = scmp.le.s32.totalorder 1, %s9
    %p128 = scmp.lt.s32.totalorder %s9, 3
    %p129 = pnand %p127, %p128
    %p130 = pneg %p129
    // Predicated region
    $region9: #{performer_model_forward.14} parent=5 // pred_check
      _
    $region10: #{performer_model_forward.14} parent=5 // pred_check_branch
      %132 = sbr.rel (%p129) target = $region12
    $region11: #{performer_model_forward.14} parent=5 // pred_region
      %s133 = ssub.s32 %s9, 1
      // Predicated region
      $region13: #{performer_model_forward.14} parent=11 // pred_check
        %p134 = pneg %p70
      $region14: #{performer_model_forward.14} parent=11 // pred_check_branch
        %136 = sbr.rel (%p134) target = $region16
      $region15: #{performer_model_forward.14} parent=11 // pred_region
        _
      $region16: #{performer_model_forward.14} parent=11 // pred_fallthru
        _
      // Predicated region
      $region17: #{performer_model_forward.14} parent=11 // pred_check
        %p137 = pneg %p91
      $region18: #{performer_model_forward.14} parent=11 // pred_check_branch
        %139 = sbr.rel (%p137) target = $region20
      $region19: #{performer_model_forward.14} parent=11 // pred_region
        _
      $region20: #{performer_model_forward.14} parent=11 // pred_fallthru
        _
    $region12: #{performer_model_forward.14} parent=5 // pred_fallthru
      _
    %p140 = scmp.lt.s32.totalorder %s9, 2
    // Predicated region
    $region21: #{performer_model_forward.14} parent=5 // pred_check
      %p141 = pneg %p140
    $region22: #{performer_model_forward.14} parent=5 // pred_check_branch
      %143 = sbr.rel (%p141) target = $region24
    $region23: #{performer_model_forward.14} parent=5 // pred_region
      // Predicated region
      $region25: #{performer_model_forward.14} parent=23 // pred_check
        %p144 = pneg %p43
      $region26: #{performer_model_forward.14} parent=23 // pred_check_branch
        %146 = sbr.rel (%p144) target = $region28
      $region27: #{performer_model_forward.14} parent=23 // pred_region
        %p147 = scmp.lt.s32.totalorder %s16, 1
        %s148 = scalar_select %p147, %s16, 1
        %p149 = scmp.lt.s32.totalorder %s17, 0
        %s150 = scalar_select %p149, %s17, 0
        %s151 = sadd.s32 %s150, %s148
        %s152 = smul.addr %s151, 4
        %s153 = scalar_lea.vmem %s0, %s152
      $region28: #{performer_model_forward.14} parent=23 // pred_fallthru
        _
    $region24: #{performer_model_forward.14} parent=5 // pred_fallthru
      _
    %p154 = scmp.le.s32.totalorder 1, %s9
    %p155 = scmp.lt.s32.totalorder %s9, 3
    %p156 = pnand %p154, %p155
    %p157 = pneg %p156
    // Predicated region
    $region29: #{performer_model_forward.14} parent=5 // pred_check
      _
    $region30: #{performer_model_forward.14} parent=5 // pred_check_branch
      %159 = sbr.rel (%p156) target = $region32
    $region31: #{performer_model_forward.14} parent=5 // pred_region
      %s160 = ssub.s32 %s9, 1
      %p161 = scmp.lt.s32.totalorder %s18, 1
      %s162 = scalar_select %p161, %s18, 1
      %p163 = scmp.lt.s32.totalorder %s19, 0
      %s164 = scalar_select %p163, %s19, 0
      %s165 = sadd.s32 %s164, %s162
      %s166 = smul.addr %s165, 4
      %s167 = scalar_lea.vmem %s0, %s166
      %p168 = pneg %p49
      %p169 = pneg %p46
      %p170 = pneg %p70
      %p171 = pneg %p67
      %p172 = pneg %p91
      %p173 = pneg %p88
      %p174 = pneg %p119
      %p175 = pneg %p116
      %p176 = scmp.lt.s32.totalorder %s18, 1
      %s177 = scalar_select %p176, %s18, 1
      %p178 = scmp.lt.s32.totalorder %s19, 0
      %s179 = scalar_select %p178, %s19, 0
      %s180 = sadd.s32 %s179, %s177
      %s181 = smul.addr %s180, 4
      %s182 = scalar_lea.vmem %s3, %s181
      %p183 = scmp.lt.s32.totalorder %s18, 1
      %s184 = scalar_select %p183, %s18, 1
      %p185 = scmp.lt.s32.totalorder %s19, 0
      %s186 = scalar_select %p185, %s19, 0
      %s187 = sadd.s32 %s186, %s184
      %s188 = smul.addr %s187, 4
      %s189 = scalar_lea.vmem %s0, %s188
      %p190 = scmp.lt.s32.totalorder %s18, 1
      %s191 = scalar_select %p190, %s18, 1
      %p192 = scmp.lt.s32.totalorder %s19, 0
      %s193 = scalar_select %p192, %s19, 0
      %s194 = sadd.s32 %s193, %s191
      %s195 = smul.addr %s194, 4
      %s196 = scalar_lea.vmem %s3, %s195
      %p198 = scmp.eq.s32.totalorder %s19, 0
      // Predicated region
      $region33: #{performer_model_forward.14} parent=31 // pred_check
        %p199 = pneg %p198
      $region34: #{performer_model_forward.14} parent=31 // pred_check_branch
        %201 = sbr.rel (%p199) target = $region36
      $region35: #{performer_model_forward.14} parent=31 // pred_region
        %vm202 = vcmask 64512
        %203 = vst.msk [vmem:[#allocation2] sm:$0xff] %vm202, 0.0
        %204 = vst.msk [vmem:[#allocation2 + $0x8] sm:$0xff] %vm202, 0.0
        %205 = vst.msk [vmem:[#allocation2 + $0x10] sm:$0xff] %vm202, 0.0
        %206 = vst.msk [vmem:[#allocation2 + $0x18] sm:$0xff] %vm202, 0.0
        %207 = vst.msk [vmem:[#allocation2 + $0x20] sm:$0xff] %vm202, 0.0
        %208 = vst.msk [vmem:[#allocation2 + $0x28] sm:$0xff] %vm202, 0.0
        %209 = vst.msk [vmem:[#allocation2 + $0x30] sm:$0xff] %vm202, 0.0
        %210 = vst.msk [vmem:[#allocation2 + $0x38] sm:$0xff] %vm202, 0.0
        %vm211 = vcmask 122880
        %212 = vst.msk [vmem:[#allocation3] sm:$0x1] %vm211, 0.0
        %213 = vst.msk [vmem:[#allocation3 + $0x1] sm:$0x1] %vm211, 0.0
        %214 = vst.msk [vmem:[#allocation3 + $0x2] sm:$0x1] %vm211, 0.0
        %215 = vst.msk [vmem:[#allocation3 + $0x3] sm:$0x1] %vm211, 0.0
        %vm216 = vcmask 0
        %217 = vst.msk [vmem:[#allocation4] sm:$0x1] %vm216, -1e+30
        %218 = vst.msk [vmem:[#allocation4 + $0x1] sm:$0x1] %vm216, -1e+30
        %219 = vst.msk [vmem:[#allocation4 + $0x2] sm:$0x1] %vm216, -1e+30
        %220 = vst.msk [vmem:[#allocation4 + $0x3] sm:$0x1] %vm216, -1e+30
      $region36: #{performer_model_forward.14} parent=31 // pred_fallthru
        _
      %v221 = vld [vmem:[%s189] sm:$0xf]
      %v222 = vunpack.c.l.bf16 %v221
      %v223 = vld [vmem:[%s1] sm:$0xf]
      %v224 = vld [vmem:[%s1 + $0x4] sm:$0xf]
      %v225 = vld [vmem:[%s1 + $0x8] sm:$0xf]
      %v226 = vld [vmem:[%s1 + $0xc] sm:$0xf]
      %v227 = vld [vmem:[%s2] sm:$0xff]
      %v228 = vld [vmem:[%s2 + $0x8] sm:$0xff]
      %v229 = vld [vmem:[%s2 + $0x10] sm:$0xff]
      %v230 = vld [vmem:[%s2 + $0x18] sm:$0xff]
      %v235 = vunpack.c.l.b16 %v223
      %v236 = vunpack.c.l.b16 %v224
      %v237 = vunpack.c.l.b16 %v225
      %v238 = vunpack.c.l.b16 %v226
      %v239 = vpack.c.b16 %v236, %v235
      %v240 = vpack.c.b16 %v238, %v237
      %vm243 = vcmask 261120
      %v245 = vsel %vm243, %v221, 0
      %247 = vmatprep.subr.bf16.mxu0 0
      %248 = vmatpush1.bf16.msra.mxu0 %v239
      %249 = vmatprep.subr.bf16.mxu0 0
      %250 = vmatpush1.bf16.msra.mxu0 %v240
      %251 = vmatprep.subr.bf16.mxu0 0
      %252 = vmatpush1.bf16.msra.mxu0 0
      %253 = vmatprep.subr.bf16.mxu0 0
      %254 = vmatpush1.bf16.msra.mxu0 0
      %255 = vmatprep.subr.bf16.mxu0 0
      %256 = vmatpush1.bf16.msra.mxu0 0
      %257 = vmatprep.subr.bf16.mxu0 0
      %258 = vmatpush1.bf16.msra.mxu0 0
      %259 = vmatprep.subr.bf16.mxu0 0
      %260 = vmatpush1.bf16.msra.mxu0 0
      %261 = vmatprep.subr.bf16.mxu0 0
      %262 = vmatpush1.bf16.msra.mxu0 0
      %263 = vmatprep.subr.bf16.mxu0 0
      %264 = vmatpush1.bf16.msra.mxu0 0
      %265 = vmatprep.subr.bf16.mxu0 0
      %266 = vmatpush1.bf16.msra.mxu0 0
      %267 = vmatprep.subr.bf16.mxu0 0
      %268 = vmatpush1.bf16.msra.mxu0 0
      %269 = vmatprep.subr.bf16.mxu0 0
      %270 = vmatpush1.bf16.msra.mxu0 0
      %271 = vmatprep.subr.bf16.mxu0 0
      %272 = vmatpush1.bf16.msra.mxu0 0
      %273 = vmatprep.subr.bf16.mxu0 0
      %274 = vmatpush1.bf16.msra.mxu0 0
      %275 = vmatprep.subr.bf16.mxu0 0
      %276 = vmatpush1.bf16.msra.mxu0 0
      %277 = vmatprep.subr.bf16.mxu0 0
      %278 = vmatpush1.bf16.msra.mxu0 0
      %279 = vmatprep.mubr.bf16.mxu0 0
      %280 = vmatmul.mubr.bf16.gmra.mrb[0].mxu0 %v245
      %v281 = vpop.f32.mrb[0].mxu0
      %v282 = vadd.f32 0.0, %v281
      %v283 = vpop.f32.mrb[0].mxu0
      %v284 = vpop.f32.mrb[0].mxu0
      %v285 = vpop.f32.mrb[0].mxu0
      %286 = vdwg.mxu0
      %v288 = vunpack.c.l.b16 %v221
      %v289 = vpack.c.b16 %v288, %v288
      %290 = vrot.lane.b32.xlu0 %v289, 96
      %v291 = vpop.permute.xlu0 %290
      %v293 = vsel %vm243, %v291, 0
      %295 = vmatprep.subr.bf16.mxu0 0
      %296 = vmatpush1.bf16.msra.mxu0 %v239
      %297 = vmatprep.subr.bf16.mxu0 0
      %298 = vmatpush1.bf16.msra.mxu0 %v240
      %299 = vmatprep.subr.bf16.mxu0 0
      %300 = vmatpush1.bf16.msra.mxu0 0
      %301 = vmatprep.subr.bf16.mxu0 0
      %302 = vmatpush1.bf16.msra.mxu0 0
      %303 = vmatprep.subr.bf16.mxu0 0
      %304 = vmatpush1.bf16.msra.mxu0 0
      %305 = vmatprep.subr.bf16.mxu0 0
      %306 = vmatpush1.bf16.msra.mxu0 0
      %307 = vmatprep.subr.bf16.mxu0 0
      %308 = vmatpush1.bf16.msra.mxu0 0
      %309 = vmatprep.subr.bf16.mxu0 0
      %310 = vmatpush1.bf16.msra.mxu0 0
      %311 = vmatprep.subr.bf16.mxu0 0
      %312 = vmatpush1.bf16.msra.mxu0 0
      %313 = vmatprep.subr.bf16.mxu0 0
      %314 = vmatpush1.bf16.msra.mxu0 0
      %315 = vmatprep.subr.bf16.mxu0 0
      %316 = vmatpush1.bf16.msra.mxu0 0
      %317 = vmatprep.subr.bf16.mxu0 0
      %318 = vmatpush1.bf16.msra.mxu0 0
      %319 = vmatprep.subr.bf16.mxu0 0
      %320 = vmatpush1.bf16.msra.mxu0 0
      %321 = vmatprep.subr.bf16.mxu0 0
      %322 = vmatpush1.bf16.msra.mxu0 0
      %323 = vmatprep.subr.bf16.mxu0 0
      %324 = vmatpush1.bf16.msra.mxu0 0
      %325 = vmatprep.subr.bf16.mxu0 0
      %326 = vmatpush1.bf16.msra.mxu0 0
      %327 = vmatprep.mubr.bf16.mxu0 0
      %328 = vmatmul.mubr.bf16.gmra.mrb[0].mxu0 %v293
      %v329 = vpop.f32.mrb[0].mxu0
      %v330 = vadd.f32 0.0, %v329
      %v331 = vpop.f32.mrb[0].mxu0
      %v332 = vpop.f32.mrb[0].mxu0
      %v333 = vpop.f32.mrb[0].mxu0
      %334 = vdwg.mxu0
      %v335 = vmul.f32 %v222, %v222
      %v337 = vsel %vm243, %v335, 0
      %339 = vmatprep.subr.mxu0 0.0
      %340 = vmatpush1.msra.mxu0 %v227
      %341 = vmatprep.subr.mxu0 0.0
      %342 = vmatpush1.msra.mxu0 %v228
      %343 = vmatprep.subr.mxu0 0.0
      %344 = vmatpush1.msra.mxu0 %v229
      %345 = vmatprep.subr.mxu0 0.0
      %346 = vmatpush1.msra.mxu0 %v230
      %347 = vmatprep.subr.mxu0 0.0
      %348 = vmatpush1.msra.mxu0 0.0
      %349 = vmatprep.subr.mxu0 0.0
      %350 = vmatpush1.msra.mxu0 0.0
      %351 = vmatprep.subr.mxu0 0.0
      %352 = vmatpush1.msra.mxu0 0.0
      %353 = vmatprep.subr.mxu0 0.0
      %354 = vmatpush1.msra.mxu0 0.0
      %355 = vmatprep.subr.mxu0 0.0
      %356 = vmatpush1.msra.mxu0 0.0
      %357 = vmatprep.subr.mxu0 0.0
      %358 = vmatpush1.msra.mxu0 0.0
      %359 = vmatprep.subr.mxu0 0.0
      %360 = vmatpush1.msra.mxu0 0.0
      %361 = vmatprep.subr.mxu0 0.0
      %362 = vmatpush1.msra.mxu0 0.0
      %363 = vmatprep.subr.mxu0 0.0
      %364 = vmatpush1.msra.mxu0 0.0
      %365 = vmatprep.subr.mxu0 0.0
      %366 = vmatpush1.msra.mxu0 0.0
      %367 = vmatprep.subr.mxu0 0.0
      %368 = vmatpush1.msra.mxu0 0.0
      %369 = vmatprep.subr.mxu0 0.0
      %370 = vmatpush1.msra.mxu0 0.0
      %371 = vmatprep.subr.mxu0 0.0
      %372 = vmatpush1.msra.mxu0 0.0
      %373 = vmatprep.subr.mxu0 0.0
      %374 = vmatpush1.msra.mxu0 0.0
      %375 = vmatprep.subr.mxu0 0.0
      %376 = vmatpush1.msra.mxu0 0.0
      %377 = vmatprep.subr.mxu0 0.0
      %378 = vmatpush1.msra.mxu0 0.0
      %379 = vmatprep.subr.mxu0 0.0
      %380 = vmatpush1.msra.mxu0 0.0
      %381 = vmatprep.subr.mxu0 0.0
      %382 = vmatpush1.msra.mxu0 0.0
      %383 = vmatprep.subr.mxu0 0.0
      %384 = vmatpush1.msra.mxu0 0.0
      %385 = vmatprep.subr.mxu0 0.0
      %386 = vmatpush1.msra.mxu0 0.0
      %387 = vmatprep.subr.mxu0 0.0
      %388 = vmatpush1.msra.mxu0 0.0
      %389 = vmatprep.subr.mxu0 0.0
      %390 = vmatpush1.msra.mxu0 0.0
      %391 = vmatprep.subr.mxu0 0.0
      %392 = vmatpush1.msra.mxu0 0.0
      %393 = vmatprep.subr.mxu0 0.0
      %394 = vmatpush1.msra.mxu0 0.0
      %395 = vmatprep.subr.mxu0 0.0
      %396 = vmatpush1.msra.mxu0 0.0
      %397 = vmatprep.subr.mxu0 0.0
      %398 = vmatpush1.msra.mxu0 0.0
      %399 = vmatprep.subr.mxu0 0.0
      %400 = vmatpush1.msra.mxu0 0.0
      %401 = vmatprep.subr.mxu0 0.0
      %402 = vmatpush1.msra.mxu0 0.0
      %403 = vmatprep.mubr.f32.mxu0 0.0
      %404 = vmatmul.mubr.f32.gmra.mrb[0].mxu0 %v337
      %v405 = vpop.f32.mrb[0].mxu0
      %v406 = vadd.f32 0.0, %v405
      %v407 = vpop.f32.mrb[0].mxu0
      %408 = vdwg.mxu0
      %409 = vrot.lane.b32.xlu0 %v335, 96
      %v410 = vpop.permute.xlu0 %409
      %v411 = vsel %vm243, %v410, 0
      %413 = vmatprep.subr.mxu0 0.0
      %414 = vmatpush1.msra.mxu0 %v227
      %415 = vmatprep.subr.mxu0 0.0
      %416 = vmatpush1.msra.mxu0 %v228
      %417 = vmatprep.subr.mxu0 0.0
      %418 = vmatpush1.msra.mxu0 %v229
      %419 = vmatprep.subr.mxu0 0.0
      %420 = vmatpush1.msra.mxu0 %v230
      %421 = vmatprep.subr.mxu0 0.0
      %422 = vmatpush1.msra.mxu0 0.0
      %423 = vmatprep.subr.mxu0 0.0
      %424 = vmatpush1.msra.mxu0 0.0
      %425 = vmatprep.subr.mxu0 0.0
      %426 = vmatpush1.msra.mxu0 0.0
      %427 = vmatprep.subr.mxu0 0.0
      %428 = vmatpush1.msra.mxu0 0.0
      %429 = vmatprep.subr.mxu0 0.0
      %430 = vmatpush1.msra.mxu0 0.0
      %431 = vmatprep.subr.mxu0 0.0
      %432 = vmatpush1.msra.mxu0 0.0
      %433 = vmatprep.subr.mxu0 0.0
      %434 = vmatpush1.msra.mxu0 0.0
      %435 = vmatprep.subr.mxu0 0.0
      %436 = vmatpush1.msra.mxu0 0.0
      %437 = vmatprep.subr.mxu0 0.0
      %438 = vmatpush1.msra.mxu0 0.0
      %439 = vmatprep.subr.mxu0 0.0
      %440 = vmatpush1.msra.mxu0 0.0
      %441 = vmatprep.subr.mxu0 0.0
      %442 = vmatpush1.msra.mxu0 0.0
      %443 = vmatprep.subr.mxu0 0.0
      %444 = vmatpush1.msra.mxu0 0.0
      %445 = vmatprep.subr.mxu0 0.0
      %446 = vmatpush1.msra.mxu0 0.0
      %447 = vmatprep.subr.mxu0 0.0
      %448 = vmatpush1.msra.mxu0 0.0
      %449 = vmatprep.subr.mxu0 0.0
      %450 = vmatpush1.msra.mxu0 0.0
      %451 = vmatprep.subr.mxu0 0.0
      %452 = vmatpush1.msra.mxu0 0.0
      %453 = vmatprep.subr.mxu0 0.0
      %454 = vmatpush1.msra.mxu0 0.0
      %455 = vmatprep.subr.mxu0 0.0
      %456 = vmatpush1.msra.mxu0 0.0
      %457 = vmatprep.subr.mxu0 0.0
      %458 = vmatpush1.msra.mxu0 0.0
      %459 = vmatprep.subr.mxu0 0.0
      %460 = vmatpush1.msra.mxu0 0.0
      %461 = vmatprep.subr.mxu0 0.0
      %462 = vmatpush1.msra.mxu0 0.0
      %463 = vmatprep.subr.mxu0 0.0
      %464 = vmatpush1.msra.mxu0 0.0
      %465 = vmatprep.subr.mxu0 0.0
      %466 = vmatpush1.msra.mxu0 0.0
      %467 = vmatprep.subr.mxu0 0.0
      %468 = vmatpush1.msra.mxu0 0.0
      %469 = vmatprep.subr.mxu0 0.0
      %470 = vmatpush1.msra.mxu0 0.0
      %471 = vmatprep.subr.mxu0 0.0
      %472 = vmatpush1.msra.mxu0 0.0
      %473 = vmatprep.subr.mxu0 0.0
      %474 = vmatpush1.msra.mxu0 0.0
      %475 = vmatprep.subr.mxu0 0.0
      %476 = vmatpush1.msra.mxu0 0.0
      %477 = vmatprep.mubr.f32.mxu0 0.0
      %478 = vmatmul.mubr.f32.gmra.mrb[0].mxu0 %v411
      %v479 = vpop.f32.mrb[0].mxu0
      %v480 = vadd.f32 0.0, %v479
      %v481 = vpop.f32.mrb[0].mxu0
      %482 = vdwg.mxu0
      %v483 = vlaneseq
      %v484 = vshrl.u32 %v483, 7
      %v485 = vlaneseq
      %v486 = vand.u32 %v485, 127
      %vm487 = vcmp.ge.s32.totalorder %v484, %v486
      %v488 = vsel %vm487, 1, 0
      %v489 = vcvt.s32.f32 %v488
      %491 = vset.pattern.permute.xlu0 0
      %492 = vperm.xlu0 %491, %v406
      %v493 = vpop.permute.xlu0 %492
      %v495 = vsub.f32 %v282, %v493
      %vm496 = vcmask 130048
      %v497 = vsel %vm496, %v282, -inf
      %498 = vmax.xlane.f32.xlu0 %v497
      %v499 = vpop.xlane.xlu0 %498
      %v500 = vsub.f32 %v495, %v499
      %v501 = vmul.f32 %v500, 1.442695
      %v502 = vpow.pop %v501
      %v503 = vadd.f32 %v502, 0.0001
      %v504 = vmul.f32 %v503, 0.25
      %v505 = vld [vmem:[#allocation4] sm:$0x1]
      %v506 = vsel %vm496, %v330, -inf
      %507 = vmax.xlane.f32.xlu0 %v506
      %v508 = vpop.xlane.xlu0 %507
      %v509 = vrot.slane %v508, 4
      %v510 = vmax.f32 %v508, %v509
      %v511 = vrot.slane %v510, 2
      %v512 = vmax.f32 %v510, %v511
      %v513 = vrot.slane %v512, 1
      %v514 = vmax.f32 %v512, %v513
      %v515 = vmax.f32 %v505, %v514
      %v516 = vsub.f32 %v505, %v515
      %v517 = vmul.f32 %v516, 1.442695
      %v518 = vpow.pop %v517
      %v519 = vld [vmem:[#allocation2] sm:$0xff]
      %v520 = vld [vmem:[#allocation2 + $0x8] sm:$0xff]
      %v522 = vlaneseq
      %v523 = vshrl.u32 %v522, 7
      %v524 = vsub.s32 0, %v523
      %v525 = vrot.slane %v518, %v524
      %526 = vset.pattern.permute.xlu0 0
      %527 = vperm.xlu0 %526, %v525
      %v528 = vpop.permute.xlu0 %527
      %v530 = vmul.f32 %v519, %v528
      %v531 = vmul.f32 %v520, %v528
      %v532 = vld [vmem:[#allocation3] sm:$0x1]
      %533 = vset.pattern.permute.xlu0 0
      %534 = vperm.xlu0 %533, %v518
      %v535 = vpop.permute.xlu0 %534
      %v537 = vlaneseq
      %v538 = vshrl.u32 %v537, 7
      %v539 = vsub.s32 0, %v538
      %v540 = vrot.slane %v535, %v539
      %v541 = vmul.f32 %v532, %v540
      %543 = vset.pattern.permute.xlu0 0
      %544 = vperm.xlu0 %543, %v480
      %v545 = vpop.permute.xlu0 %544
      %v547 = vsub.f32 %v330, %v545
      %v549 = vlaneseq
      %v550 = vshrl.u32 %v549, 7
      %v551 = vsub.s32 0, %v550
      %v552 = vrot.slane %v515, %v551
      %553 = vset.pattern.permute.xlu0 0
      %554 = vperm.xlu0 %553, %v552
      %v555 = vpop.permute.xlu0 %554
      %v557 = vsub.f32 %v547, %v555
      %v558 = vmul.f32 %v557, 1.442695
      %v559 = vpow.pop %v558
      %v560 = vadd.f32 %v559, 0.0001
      %v561 = vmul.f32 %v560, 0.25
      %v563 = vsel %vm496, %v504, 0
      %v566 = vsel %vm496, %v561, 0
      %568 = vmatprep.subr.mxu0 0.0
      %569 = vmatpush1.xpose.msra.mxu0 %v566
      %570 = vmatprep.subr.mxu0 0.0
      %571 = vmatpush1.xpose.msra.mxu0 0.0
      %572 = vmatprep.subr.mxu0 0.0
      %573 = vmatpush1.xpose.msra.mxu0 0.0
      %574 = vmatprep.subr.mxu0 0.0
      %575 = vmatpush1.xpose.msra.mxu0 0.0
      %576 = vmatprep.subr.mxu0 0.0
      %577 = vmatpush1.xpose.msra.mxu0 0.0
      %578 = vmatprep.subr.mxu0 0.0
      %579 = vmatpush1.xpose.msra.mxu0 0.0
      %580 = vmatprep.subr.mxu0 0.0
      %581 = vmatpush1.xpose.msra.mxu0 0.0
      %582 = vmatprep.subr.mxu0 0.0
      %583 = vmatpush1.xpose.msra.mxu0 0.0
      %584 = vmatprep.subr.mxu0 0.0
      %585 = vmatpush1.xpose.msra.mxu0 0.0
      %586 = vmatprep.subr.mxu0 0.0
      %587 = vmatpush1.xpose.msra.mxu0 0.0
      %588 = vmatprep.subr.mxu0 0.0
      %589 = vmatpush1.xpose.msra.mxu0 0.0
      %590 = vmatprep.subr.mxu0 0.0
      %591 = vmatpush1.xpose.msra.mxu0 0.0
      %592 = vmatprep.subr.mxu0 0.0
      %593 = vmatpush1.xpose.msra.mxu0 0.0
      %594 = vmatprep.subr.mxu0 0.0
      %595 = vmatpush1.xpose.msra.mxu0 0.0
      %596 = vmatprep.subr.mxu0 0.0
      %597 = vmatpush1.xpose.msra.mxu0 0.0
      %598 = vmatprep.subr.mxu0 0.0
      %599 = vmatpush1.xpose.msra.mxu0 0.0
      %600 = vmatprep.subr.mxu0 0.0
      %601 = vmatpush1.xpose.msra.mxu0 0.0
      %602 = vmatprep.subr.mxu0 0.0
      %603 = vmatpush1.xpose.msra.mxu0 0.0
      %604 = vmatprep.subr.mxu0 0.0
      %605 = vmatpush1.xpose.msra.mxu0 0.0
      %606 = vmatprep.subr.mxu0 0.0
      %607 = vmatpush1.xpose.msra.mxu0 0.0
      %608 = vmatprep.subr.mxu0 0.0
      %609 = vmatpush1.xpose.msra.mxu0 0.0
      %610 = vmatprep.subr.mxu0 0.0
      %611 = vmatpush1.xpose.msra.mxu0 0.0
      %612 = vmatprep.subr.mxu0 0.0
      %613 = vmatpush1.xpose.msra.mxu0 0.0
      %614 = vmatprep.subr.mxu0 0.0
      %615 = vmatpush1.xpose.msra.mxu0 0.0
      %616 = vmatprep.subr.mxu0 0.0
      %617 = vmatpush1.xpose.msra.mxu0 0.0
      %618 = vmatprep.subr.mxu0 0.0
      %619 = vmatpush1.xpose.msra.mxu0 0.0
      %620 = vmatprep.subr.mxu0 0.0
      %621 = vmatpush1.xpose.msra.mxu0 0.0
      %622 = vmatprep.subr.mxu0 0.0
      %623 = vmatpush1.xpose.msra.mxu0 0.0
      %624 = vmatprep.subr.mxu0 0.0
      %625 = vmatpush1.xpose.msra.mxu0 0.0
      %626 = vmatprep.subr.mxu0 0.0
      %627 = vmatpush1.xpose.msra.mxu0 0.0
      %628 = vmatprep.subr.mxu0 0.0
      %629 = vmatpush1.xpose.msra.mxu0 0.0
      %630 = vmatprep.subr.mxu0 0.0
      %631 = vmatpush1.xpose.msra.mxu0 0.0
      %632 = vmatprep.mubr.f32.mxu0 0.0
      %633 = vmatmul.mubr.f32.gmra.mrb[0].mxu0 %v563
      %v634 = vpop.f32.mrb[0].mxu0
      %v635 = vadd.f32 0.0, %v634
      %v636 = vpop.f32.mrb[0].mxu0
      %637 = vdwg.mxu0
      %v638 = vmul.f32 %v635, %v489
      %640 = vrot.lane.b32.xlu0 %v222, 64
      %v641 = vpop.permute.xlu0 %640
      %vm643 = vcmask 64512
      %v645 = vsel %vm643, %v638, 0
      %647 = vmatprep.subr.mxu0 0.0
      %648 = vmatpush1.msra.mxu0 %v641
      %649 = vmatprep.subr.mxu0 0.0
      %650 = vmatpush1.msra.mxu0 0.0
      %651 = vmatprep.subr.mxu0 0.0
      %652 = vmatpush1.msra.mxu0 0.0
      %653 = vmatprep.subr.mxu0 0.0
      %654 = vmatpush1.msra.mxu0 0.0
      %655 = vmatprep.subr.mxu0 0.0
      %656 = vmatpush1.msra.mxu0 0.0
      %657 = vmatprep.subr.mxu0 0.0
      %658 = vmatpush1.msra.mxu0 0.0
      %659 = vmatprep.subr.mxu0 0.0
      %660 = vmatpush1.msra.mxu0 0.0
      %661 = vmatprep.subr.mxu0 0.0
      %662 = vmatpush1.msra.mxu0 0.0
      %663 = vmatprep.subr.mxu0 0.0
      %664 = vmatpush1.msra.mxu0 0.0
      %665 = vmatprep.subr.mxu0 0.0
      %666 = vmatpush1.msra.mxu0 0.0
      %667 = vmatprep.subr.mxu0 0.0
      %668 = vmatpush1.msra.mxu0 0.0
      %669 = vmatprep.subr.mxu0 0.0
      %670 = vmatpush1.msra.mxu0 0.0
      %671 = vmatprep.subr.mxu0 0.0
      %672 = vmatpush1.msra.mxu0 0.0
      %673 = vmatprep.subr.mxu0 0.0
      %674 = vmatpush1.msra.mxu0 0.0
      %675 = vmatprep.subr.mxu0 0.0
      %676 = vmatpush1.msra.mxu0 0.0
      %677 = vmatprep.subr.mxu0 0.0
      %678 = vmatpush1.msra.mxu0 0.0
      %679 = vmatprep.subr.mxu0 0.0
      %680 = vmatpush1.msra.mxu0 0.0
      %681 = vmatprep.subr.mxu0 0.0
      %682 = vmatpush1.msra.mxu0 0.0
      %683 = vmatprep.subr.mxu0 0.0
      %684 = vmatpush1.msra.mxu0 0.0
      %685 = vmatprep.subr.mxu0 0.0
      %686 = vmatpush1.msra.mxu0 0.0
      %687 = vmatprep.subr.mxu0 0.0
      %688 = vmatpush1.msra.mxu0 0.0
      %689 = vmatprep.subr.mxu0 0.0
      %690 = vmatpush1.msra.mxu0 0.0
      %691 = vmatprep.subr.mxu0 0.0
      %692 = vmatpush1.msra.mxu0 0.0
      %693 = vmatprep.subr.mxu0 0.0
      %694 = vmatpush1.msra.mxu0 0.0
      %695 = vmatprep.subr.mxu0 0.0
      %696 = vmatpush1.msra.mxu0 0.0
      %697 = vmatprep.subr.mxu0 0.0
      %698 = vmatpush1.msra.mxu0 0.0
      %699 = vmatprep.subr.mxu0 0.0
      %700 = vmatpush1.msra.mxu0 0.0
      %701 = vmatprep.subr.mxu0 0.0
      %702 = vmatpush1.msra.mxu0 0.0
      %703 = vmatprep.subr.mxu0 0.0
      %704 = vmatpush1.msra.mxu0 0.0
      %705 = vmatprep.subr.mxu0 0.0
      %706 = vmatpush1.msra.mxu0 0.0
      %707 = vmatprep.subr.mxu0 0.0
      %708 = vmatpush1.msra.mxu0 0.0
      %709 = vmatprep.subr.mxu0 0.0
      %710 = vmatpush1.msra.mxu0 0.0
      %711 = vmatprep.mubr.f32.mxu0 0.0
      %712 = vmatmul.mubr.f32.gmra.mrb[0].mxu0 %v645
      %v713 = vpop.f32.mrb[0].mxu0
      %v714 = vadd.f32 0.0, %v713
      %v715 = vpop.f32.mrb[0].mxu0
      %716 = vdwg.mxu0
      %717 = vmatprep.subr.mxu0 0.0
      %718 = vmatpush1.msra.mxu0 %v530
      %719 = vmatprep.subr.mxu0 0.0
      %720 = vmatpush1.msra.mxu0 %v531
      %721 = vmatprep.subr.mxu0 0.0
      %722 = vmatpush1.msra.mxu0 0.0
      %723 = vmatprep.subr.mxu0 0.0
      %724 = vmatpush1.msra.mxu0 0.0
      %725 = vmatprep.subr.mxu0 0.0
      %726 = vmatpush1.msra.mxu0 0.0
      %727 = vmatprep.subr.mxu0 0.0
      %728 = vmatpush1.msra.mxu0 0.0
      %729 = vmatprep.subr.mxu0 0.0
      %730 = vmatpush1.msra.mxu0 0.0
      %731 = vmatprep.subr.mxu0 0.0
      %732 = vmatpush1.msra.mxu0 0.0
      %733 = vmatprep.subr.mxu0 0.0
      %734 = vmatpush1.msra.mxu0 0.0
      %735 = vmatprep.subr.mxu0 0.0
      %736 = vmatpush1.msra.mxu0 0.0
      %737 = vmatprep.subr.mxu0 0.0
      %738 = vmatpush1.msra.mxu0 0.0
      %739 = vmatprep.subr.mxu0 0.0
      %740 = vmatpush1.msra.mxu0 0.0
      %741 = vmatprep.subr.mxu0 0.0
      %742 = vmatpush1.msra.mxu0 0.0
      %743 = vmatprep.subr.mxu0 0.0
      %744 = vmatpush1.msra.mxu0 0.0
      %745 = vmatprep.subr.mxu0 0.0
      %746 = vmatpush1.msra.mxu0 0.0
      %747 = vmatprep.subr.mxu0 0.0
      %748 = vmatpush1.msra.mxu0 0.0
      %749 = vmatprep.subr.mxu0 0.0
      %750 = vmatpush1.msra.mxu0 0.0
      %751 = vmatprep.subr.mxu0 0.0
      %752 = vmatpush1.msra.mxu0 0.0
      %753 = vmatprep.subr.mxu0 0.0
      %754 = vmatpush1.msra.mxu0 0.0
      %755 = vmatprep.subr.mxu0 0.0
      %756 = vmatpush1.msra.mxu0 0.0
      %757 = vmatprep.subr.mxu0 0.0
      %758 = vmatpush1.msra.mxu0 0.0
      %759 = vmatprep.subr.mxu0 0.0
      %760 = vmatpush1.msra.mxu0 0.0
      %761 = vmatprep.subr.mxu0 0.0
      %762 = vmatpush1.msra.mxu0 0.0
      %763 = vmatprep.subr.mxu0 0.0
      %764 = vmatpush1.msra.mxu0 0.0
      %765 = vmatprep.subr.mxu0 0.0
      %766 = vmatpush1.msra.mxu0 0.0
      %767 = vmatprep.subr.mxu0 0.0
      %768 = vmatpush1.msra.mxu0 0.0
      %769 = vmatprep.subr.mxu0 0.0
      %770 = vmatpush1.msra.mxu0 0.0
      %771 = vmatprep.subr.mxu0 0.0
      %772 = vmatpush1.msra.mxu0 0.0
      %773 = vmatprep.subr.mxu0 0.0
      %774 = vmatpush1.msra.mxu0 0.0
      %775 = vmatprep.subr.mxu0 0.0
      %776 = vmatpush1.msra.mxu0 0.0
      %777 = vmatprep.subr.mxu0 0.0
      %778 = vmatpush1.msra.mxu0 0.0
      %779 = vmatprep.subr.mxu0 0.0
      %780 = vmatpush1.msra.mxu0 0.0
      %781 = vmatprep.mubr.f32.mxu0 0.0
      %782 = vmatmul.mubr.f32.gmra.mrb[0].mxu0 %v563
      %v783 = vpop.f32.mrb[0].mxu0
      %v784 = vadd.f32 %v714, %v783
      %v785 = vpop.f32.mrb[0].mxu0
      %786 = vdwg.mxu0
      %v787 = vsel %vm643, %v638, 0.0
      %788 = vadd.xlane.f32.xlu0 %v787
      %v789 = vpop.xlane.xlu0 %788
      %v791 = vlaneseq
      %v792 = vshrl.u32 %v791, 7
      %v793 = vsub.s32 0, %v792
      %v794 = vrot.slane %v541, %v793
      %v796 = vmul.f32 %v504, %v794
      %v797 = vsel %vm496, %v796, 0.0
      %798 = vadd.xlane.f32.xlu0 %v797
      %v799 = vpop.xlane.xlu0 %798
      %v800 = vadd.f32 %v799, %v789
      %v801 = vrcp.pop %v800
      %v802 = vmul.f32 %v784, %v801
      %803 = vxpose.xlu0.b32.start [1/16] %v561, 128
      %804 = vxpose.xlu0.b32.cont [2/16] 0.0, 128
      %805 = vxpose.xlu0.b32.cont [3/16] 0.0, 128
      %806 = vxpose.xlu0.b32.cont [4/16] 0.0, 128
      %807 = vxpose.xlu0.b32.cont [5/16] 0.0, 128
      %808 = vxpose.xlu0.b32.cont [6/16] 0.0, 128
      %809 = vxpose.xlu0.b32.cont [7/16] 0.0, 128
      %810 = vxpose.xlu0.b32.cont [8/16] 0.0, 128
      %811 = vxpose.xlu0.b32.cont [9/16] 0.0, 128
      %812 = vxpose.xlu0.b32.cont [10/16] 0.0, 128
      %813 = vxpose.xlu0.b32.cont [11/16] 0.0, 128
      %814 = vxpose.xlu0.b32.cont [12/16] 0.0, 128
      %815 = vxpose.xlu0.b32.cont [13/16] 0.0, 128
      %816 = vxpose.xlu0.b32.cont [14/16] 0.0, 128
      %817 = vxpose.xlu0.b32.cont [15/16] 0.0, 128
      %818 = vxpose.xlu0.b32.end [16/16] 0.0, 128
      %v819 = vpop.trf.xlu0
      %v820 = vpop.trf.xlu0
      %v821 = vpop.trf.xlu0
      %v822 = vpop.trf.xlu0
      %v823 = vpop.trf.xlu0
      %v824 = vpop.trf.xlu0
      %v825 = vpop.trf.xlu0
      %v826 = vpop.trf.xlu0
      %v827 = vpop.trf.xlu0
      %v828 = vpop.trf.xlu0
      %v829 = vpop.trf.xlu0
      %v830 = vpop.trf.xlu0
      %v831 = vpop.trf.xlu0
      %v832 = vpop.trf.xlu0
      %v833 = vpop.trf.xlu0
      %v834 = vpop.trf.xlu0
      %v836 = vsel %vm643, %v819, 0
      %v839 = vsel %vm643, %v820, 0
      %841 = vmatprep.subr.mxu0 0.0
      %842 = vmatpush1.msra.mxu0 %v641
      %843 = vmatprep.subr.mxu0 0.0
      %844 = vmatpush1.msra.mxu0 0.0
      %845 = vmatprep.subr.mxu0 0.0
      %846 = vmatpush1.msra.mxu0 0.0
      %847 = vmatprep.subr.mxu0 0.0
      %848 = vmatpush1.msra.mxu0 0.0
      %849 = vmatprep.subr.mxu0 0.0
      %850 = vmatpush1.msra.mxu0 0.0
      %851 = vmatprep.subr.mxu0 0.0
      %852 = vmatpush1.msra.mxu0 0.0
      %853 = vmatprep.subr.mxu0 0.0
      %854 = vmatpush1.msra.mxu0 0.0
      %855 = vmatprep.subr.mxu0 0.0
      %856 = vmatpush1.msra.mxu0 0.0
      %857 = vmatprep.subr.mxu0 0.0
      %858 = vmatpush1.msra.mxu0 0.0
      %859 = vmatprep.subr.mxu0 0.0
      %860 = vmatpush1.msra.mxu0 0.0
      %861 = vmatprep.subr.mxu0 0.0
      %862 = vmatpush1.msra.mxu0 0.0
      %863 = vmatprep.subr.mxu0 0.0
      %864 = vmatpush1.msra.mxu0 0.0
      %865 = vmatprep.subr.mxu0 0.0
      %866 = vmatpush1.msra.mxu0 0.0
      %867 = vmatprep.subr.mxu0 0.0
      %868 = vmatpush1.msra.mxu0 0.0
      %869 = vmatprep.subr.mxu0 0.0
      %870 = vmatpush1.msra.mxu0 0.0
      %871 = vmatprep.subr.mxu0 0.0
      %872 = vmatpush1.msra.mxu0 0.0
      %873 = vmatprep.subr.mxu0 0.0
      %874 = vmatpush1.msra.mxu0 0.0
      %875 = vmatprep.subr.mxu0 0.0
      %876 = vmatpush1.msra.mxu0 0.0
      %877 = vmatprep.subr.mxu0 0.0
      %878 = vmatpush1.msra.mxu0 0.0
      %879 = vmatprep.subr.mxu0 0.0
      %880 = vmatpush1.msra.mxu0 0.0
      %881 = vmatprep.subr.mxu0 0.0
      %882 = vmatpush1.msra.mxu0 0.0
      %883 = vmatprep.subr.mxu0 0.0
      %884 = vmatpush1.msra.mxu0 0.0
      %885 = vmatprep.subr.mxu0 0.0
      %886 = vmatpush1.msra.mxu0 0.0
      %887 = vmatprep.subr.mxu0 0.0
      %888 = vmatpush1.msra.mxu0 0.0
      %889 = vmatprep.subr.mxu0 0.0
      %890 = vmatpush1.msra.mxu0 0.0
      %891 = vmatprep.subr.mxu0 0.0
      %892 = vmatpush1.msra.mxu0 0.0
      %893 = vmatprep.subr.mxu0 0.0
      %894 = vmatpush1.msra.mxu0 0.0
      %895 = vmatprep.subr.mxu0 0.0
      %896 = vmatpush1.msra.mxu0 0.0
      %897 = vmatprep.subr.mxu0 0.0
      %898 = vmatpush1.msra.mxu0 0.0
      %899 = vmatprep.subr.mxu0 0.0
      %900 = vmatpush1.msra.mxu0 0.0
      %901 = vmatprep.subr.mxu0 0.0
      %902 = vmatpush1.msra.mxu0 0.0
      %903 = vmatprep.subr.mxu0 0.0
      %904 = vmatpush1.msra.mxu0 0.0
      %905 = vmatprep.mubr.f32.mxu0 0.0
      %906 = vmatmul.mubr.f32.gmra.mrb[0].mxu0 %v836
      %v907 = vpop.f32.mrb[0].mxu0
      %v908 = vadd.f32 0.0, %v907
      %v909 = vpop.f32.mrb[0].mxu0
      %910 = vmatprep.mubr.f32.mxu0 0.0
      %911 = vmatmul.mubr.f32.gmra.mrb[0].mxu0 %v839
      %v912 = vpop.f32.mrb[0].mxu0
      %v913 = vadd.f32 0.0, %v912
      %v914 = vpop.f32.mrb[0].mxu0
      %915 = vdwg.mxu0
      %v916 = vadd.f32 %v530, %v908
      %v917 = vadd.f32 %v531, %v913
      %918 = vst.msk [vmem:[#allocation2] sm:$0xff] %vm643, %v916
      %919 = vst.msk [vmem:[#allocation2 + $0x8] sm:$0xff] %vm643, %v917
      %v920 = vsel %vm496, %v561, 0.0
      %v921 = vrot.slane %v920, 4
      %v922 = vadd.f32 %v920, %v921
      %v923 = vrot.slane %v922, 2
      %v924 = vadd.f32 %v922, %v923
      %v925 = vrot.slane %v924, 1
      %v926 = vadd.f32 %v924, %v925
      %v927 = vadd.f32 %v541, %v926
      %vm928 = vcmask 122880
      %929 = vst.msk [vmem:[#allocation3] sm:$0x1] %vm928, %v927
      %vm930 = vcmask 0
      %931 = vst.msk [vmem:[#allocation4] sm:$0x1] %vm930, %v515
      %932 = vset.pattern.permute.xlu0 1
      %933 = vperm.xlu0 %932, %v406
      %v934 = vpop.permute.xlu0 %933
      %v936 = vsub.f32 %v282, %v934
      %vm937 = vcmask 261248
      %v938 = vsel %vm937, %v282, -inf
      %939 = vmax.xlane.f32.xlu0 %v938
      %v940 = vpop.xlane.xlu0 %939
      %v941 = vsub.f32 %v936, %v940
      %v942 = vmul.f32 %v941, 1.442695
      %v943 = vpow.pop %v942
      %v944 = vadd.f32 %v943, 0.0001
      %v945 = vmul.f32 %v944, 0.25
      %s946 = scalar_lea.vmem [#allocation4], 1
      %v947 = vld [vmem:[%s946] sm:$0x1]
      %v948 = vsel %vm937, %v330, -inf
      %949 = vmax.xlane.f32.xlu0 %v948
      %v950 = vpop.xlane.xlu0 %949
      %v951 = vrot.slane %v950, 4
      %v952 = vmax.f32 %v950, %v951
      %v953 = vrot.slane %v952, 2
      %v954 = vmax.f32 %v952, %v953
      %v955 = vrot.slane %v954, 1
      %v956 = vmax.f32 %v954, %v955
      %v957 = vmax.f32 %v947, %v956
      %v958 = vsub.f32 %v947, %v957
      %v959 = vmul.f32 %v958, 1.442695
      %v960 = vpow.pop %v959
      %s961 = scalar_lea.vmem [#allocation2], 16
      %v962 = vld [vmem:[%s961] sm:$0xff]
      %v963 = vld [vmem:[%s961 + $0x8] sm:$0xff]
      %v965 = vlaneseq
      %v966 = vshrl.u32 %v965, 7
      %v967 = vsub.s32 0, %v966
      %v968 = vrot.slane %v960, %v967
      %969 = vset.pattern.permute.xlu0 0
      %970 = vperm.xlu0 %969, %v968
      %v971 = vpop.permute.xlu0 %970
      %v973 = vmul.f32 %v962, %v971
      %v974 = vmul.f32 %v963, %v971
      %s975 = scalar_lea.vmem [#allocation3], 1
      %v976 = vld [vmem:[%s975] sm:$0x1]
      %977 = vset.pattern.permute.xlu0 0
      %978 = vperm.xlu0 %977, %v960
      %v979 = vpop.permute.xlu0 %978
      %v981 = vlaneseq
      %v982 = vshrl.u32 %v981, 7
      %v983 = vsub.s32 0, %v982
      %v984 = vrot.slane %v979, %v983
      %v985 = vmul.f32 %v976, %v984
      %986 = vset.pattern.permute.xlu0 1
      %987 = vperm.xlu0 %986, %v480
      %v988 = vpop.permute.xlu0 %987
      %v990 = vsub.f32 %v330, %v988
      %v992 = vlaneseq
      %v993 = vshrl.u32 %v992, 7
      %v994 = vsub.s32 0, %v993
      %v995 = vrot.slane %v957, %v994
      %996 = vset.pattern.permute.xlu0 0
      %997 = vperm.xlu0 %996, %v995
      %v998 = vpop.permute.xlu0 %997
      %v1000 = vsub.f32 %v990, %v998
      %v1001 = vmul.f32 %v1000, 1.442695
      %v1002 = vpow.pop %v1001
      %v1003 = vadd.f32 %v1002, 0.0001
      %v1004 = vmul.f32 %v1003, 0.25
      %1006 = vrot.lane.b32.xlu0 %v945, 112
      %v1007 = vpop.permute.xlu0 %1006
      %1009 = vrot.lane.b32.xlu0 %v1004, 112
      %v1010 = vpop.permute.xlu0 %1009
      %v1011 = vsel %vm496, %v1007, 0
      %v1013 = vsel %vm496, %v1010, 0
      %1015 = vmatprep.subr.mxu0 0.0
      %1016 = vmatpush1.xpose.msra.mxu0 %v1013
      %1017 = vmatprep.subr.mxu0 0.0
      %1018 = vmatpush1.xpose.msra.mxu0 0.0
      %1019 = vmatprep.subr.mxu0 0.0
      %1020 = vmatpush1.xpose.msra.mxu0 0.0
      %1021 = vmatprep.subr.mxu0 0.0
      %1022 = vmatpush1.xpose.msra.mxu0 0.0
      %1023 = vmatprep.subr.mxu0 0.0
      %1024 = vmatpush1.xpose.msra.mxu0 0.0
      %1025 = vmatprep.subr.mxu0 0.0
      %1026 = vmatpush1.xpose.msra.mxu0 0.0
      %1027 = vmatprep.subr.mxu0 0.0
      %1028 = vmatpush1.xpose.msra.mxu0 0.0
      %1029 = vmatprep.subr.mxu0 0.0
      %1030 = vmatpush1.xpose.msra.mxu0 0.0
      %1031 = vmatprep.subr.mxu0 0.0
      %1032 = vmatpush1.xpose.msra.mxu0 0.0
      %1033 = vmatprep.subr.mxu0 0.0
      %1034 = vmatpush1.xpose.msra.mxu0 0.0
      %1035 = vmatprep.subr.mxu0 0.0
      %1036 = vmatpush1.xpose.msra.mxu0 0.0
      %1037 = vmatprep.subr.mxu0 0.0
      %1038 = vmatpush1.xpose.msra.mxu0 0.0
      %1039 = vmatprep.subr.mxu0 0.0
      %1040 = vmatpush1.xpose.msra.mxu0 0.0
      %1041 = vmatprep.subr.mxu0 0.0
      %1042 = vmatpush1.xpose.msra.mxu0 0.0
      %1043 = vmatprep.subr.mxu0 0.0
      %1044 = vmatpush1.xpose.msra.mxu0 0.0
      %1045 = vmatprep.subr.mxu0 0.0
      %1046 = vmatpush1.xpose.msra.mxu0 0.0
      %1047 = vmatprep.subr.mxu0 0.0
      %1048 = vmatpush1.xpose.msra.mxu0 0.0
      %1049 = vmatprep.subr.mxu0 0.0
      %1050 = vmatpush1.xpose.msra.mxu0 0.0
      %1051 = vmatprep.subr.mxu0 0.0
      %1052 = vmatpush1.xpose.msra.mxu0 0.0
      %1053 = vmatprep.subr.mxu0 0.0
      %1054 = vmatpush1.xpose.msra.mxu0 0.0
      %1055 = vmatprep.subr.mxu0 0.0
      %1056 = vmatpush1.xpose.msra.mxu0 0.0
      %1057 = vmatprep.subr.mxu0 0.0
      %1058 = vmatpush1.xpose.msra.mxu0 0.0
      %1059 = vmatprep.subr.mxu0 0.0
      %1060 = vmatpush1.xpose.msra.mxu0 0.0
      %1061 = vmatprep.subr.mxu0 0.0
      %1062 = vmatpush1.xpose.msra.mxu0 0.0
      %1063 = vmatprep.subr.mxu0 0.0
      %1064 = vmatpush1.xpose.msra.mxu0 0.0
      %1065 = vmatprep.subr.mxu0 0.0
      %1066 = vmatpush1.xpose.msra.mxu0 0.0
      %1067 = vmatprep.subr.mxu0 0.0
      %1068 = vmatpush1.xpose.msra.mxu0 0.0
      %1069 = vmatprep.subr.mxu0 0.0
      %1070 = vmatpush1.xpose.msra.mxu0 0.0
      %1071 = vmatprep.subr.mxu0 0.0
      %1072 = vmatpush1.xpose.msra.mxu0 0.0
      %1073 = vmatprep.subr.mxu0 0.0
      %1074 = vmatpush1.xpose.msra.mxu0 0.0
      %1075 = vmatprep.subr.mxu0 0.0
      %1076 = vmatpush1.xpose.msra.mxu0 0.0
      %1077 = vmatprep.subr.mxu0 0.0
      %1078 = vmatpush1.xpose.msra.mxu0 0.0
      %1079 = vmatprep.mubr.f32.mxu0 0.0
      %1080 = vmatmul.mubr.f32.gmra.mrb[0].mxu0 %v1011
      %v1081 = vpop.f32.mrb[0].mxu0
      %v1082 = vadd.f32 0.0, %v1081
      %v1083 = vpop.f32.mrb[0].mxu0
      %1084 = vdwg.mxu0
      %v1085 = vmul.f32 %v1082, %v489
      %1086 = vrot.lane.b32.xlu0 %v222, 56
      %v1087 = vpop.permute.xlu0 %1086
      %v1090 = vsel %vm643, %v1085, 0
      %1092 = vmatprep.subr.mxu0 0.0
      %1093 = vmatpush1.msra.mxu0 %v1087
      %1094 = vmatprep.subr.mxu0 0.0
      %1095 = vmatpush1.msra.mxu0 0.0
      %1096 = vmatprep.subr.mxu0 0.0
      %1097 = vmatpush1.msra.mxu0 0.0
      %1098 = vmatprep.subr.mxu0 0.0
      %1099 = vmatpush1.msra.mxu0 0.0
      %1100 = vmatprep.subr.mxu0 0.0
      %1101 = vmatpush1.msra.mxu0 0.0
      %1102 = vmatprep.subr.mxu0 0.0
      %1103 = vmatpush1.msra.mxu0 0.0
      %1104 = vmatprep.subr.mxu0 0.0
      %1105 = vmatpush1.msra.mxu0 0.0
      %1106 = vmatprep.subr.mxu0 0.0
      %1107 = vmatpush1.msra.mxu0 0.0
      %1108 = vmatprep.subr.mxu0 0.0
      %1109 = vmatpush1.msra.mxu0 0.0
      %1110 = vmatprep.subr.mxu0 0.0
      %1111 = vmatpush1.msra.mxu0 0.0
      %1112 = vmatprep.subr.mxu0 0.0
      %1113 = vmatpush1.msra.mxu0 0.0
      %1114 = vmatprep.subr.mxu0 0.0
      %1115 = vmatpush1.msra.mxu0 0.0
      %1116 = vmatprep.subr.mxu0 0.0
      %1117 = vmatpush1.msra.mxu0 0.0
      %1118 = vmatprep.subr.mxu0 0.0
      %1119 = vmatpush1.msra.mxu0 0.0
      %1120 = vmatprep.subr.mxu0 0.0
      %1121 = vmatpush1.msra.mxu0 0.0
      %1122 = vmatprep.subr.mxu0 0.0
      %1123 = vmatpush1.msra.mxu0 0.0
      %1124 = vmatprep.subr.mxu0 0.0
      %1125 = vmatpush1.msra.mxu0 0.0
      %1126 = vmatprep.subr.mxu0 0.0
      %1127 = vmatpush1.msra.mxu0 0.0
      %1128 = vmatprep.subr.mxu0 0.0
      %1129 = vmatpush1.msra.mxu0 0.0
      %1130 = vmatprep.subr.mxu0 0.0
      %1131 = vmatpush1.msra.mxu0 0.0
      %1132 = vmatprep.subr.mxu0 0.0
      %1133 = vmatpush1.msra.mxu0 0.0
      %1134 = vmatprep.subr.mxu0 0.0
      %1135 = vmatpush1.msra.mxu0 0.0
      %1136 = vmatprep.subr.mxu0 0.0
      %1137 = vmatpush1.msra.mxu0 0.0
      %1138 = vmatprep.subr.mxu0 0.0
      %1139 = vmatpush1.msra.mxu0 0.0
      %1140 = vmatprep.subr.mxu0 0.0
      %1141 = vmatpush1.msra.mxu0 0.0
      %1142 = vmatprep.subr.mxu0 0.0
      %1143 = vmatpush1.msra.mxu0 0.0
      %1144 = vmatprep.subr.mxu0 0.0
      %1145 = vmatpush1.msra.mxu0 0.0
      %1146 = vmatprep.subr.mxu0 0.0
      %1147 = vmatpush1.msra.mxu0 0.0
      %1148 = vmatprep.subr.mxu0 0.0
      %1149 = vmatpush1.msra.mxu0 0.0
      %1150 = vmatprep.subr.mxu0 0.0
      %1151 = vmatpush1.msra.mxu0 0.0
      %1152 = vmatprep.subr.mxu0 0.0
      %1153 = vmatpush1.msra.mxu0 0.0
      %1154 = vmatprep.subr.mxu0 0.0
      %1155 = vmatpush1.msra.mxu0 0.0
      %1156 = vmatprep.mubr.f32.mxu0 0.0
      %1157 = vmatmul.mubr.f32.gmra.mrb[0].mxu0 %v1090
      %v1158 = vpop.f32.mrb[0].mxu0
      %v1159 = vadd.f32 0.0, %v1158
      %v1160 = vpop.f32.mrb[0].mxu0
      %1161 = vdwg.mxu0
      %1162 = vmatprep.subr.mxu0 0.0
      %1163 = vmatpush1.msra.mxu0 %v973
      %1164 = vmatprep.subr.mxu0 0.0
      %1165 = vmatpush1.msra.mxu0 %v974
      %1166 = vmatprep.subr.mxu0 0.0
      %1167 = vmatpush1.msra.mxu0 0.0
      %1168 = vmatprep.subr.mxu0 0.0
      %1169 = vmatpush1.msra.mxu0 0.0
      %1170 = vmatprep.subr.mxu0 0.0
      %1171 = vmatpush1.msra.mxu0 0.0
      %1172 = vmatprep.subr.mxu0 0.0
      %1173 = vmatpush1.msra.mxu0 0.0
      %1174 = vmatprep.subr.mxu0 0.0
      %1175 = vmatpush1.msra.mxu0 0.0
      %1176 = vmatprep.subr.mxu0 0.0
      %1177 = vmatpush1.msra.mxu0 0.0
      %1178 = vmatprep.subr.mxu0 0.0
      %1179 = vmatpush1.msra.mxu0 0.0
      %1180 = vmatprep.subr.mxu0 0.0
      %1181 = vmatpush1.msra.mxu0 0.0
      %1182 = vmatprep.subr.mxu0 0.0
      %1183 = vmatpush1.msra.mxu0 0.0
      %1184 = vmatprep.subr.mxu0 0.0
      %1185 = vmatpush1.msra.mxu0 0.0
      %1186 = vmatprep.subr.mxu0 0.0
      %1187 = vmatpush1.msra.mxu0 0.0
      %1188 = vmatprep.subr.mxu0 0.0
      %1189 = vmatpush1.msra.mxu0 0.0
      %1190 = vmatprep.subr.mxu0 0.0
      %1191 = vmatpush1.msra.mxu0 0.0
      %1192 = vmatprep.subr.mxu0 0.0
      %1193 = vmatpush1.msra.mxu0 0.0
      %1194 = vmatprep.subr.mxu0 0.0
      %1195 = vmatpush1.msra.mxu0 0.0
      %1196 = vmatprep.subr.mxu0 0.0
      %1197 = vmatpush1.msra.mxu0 0.0
      %1198 = vmatprep.subr.mxu0 0.0
      %1199 = vmatpush1.msra.mxu0 0.0
      %1200 = vmatprep.subr.mxu0 0.0
      %1201 = vmatpush1.msra.mxu0 0.0
      %1202 = vmatprep.subr.mxu0 0.0
      %1203 = vmatpush1.msra.mxu0 0.0
      %1204 = vmatprep.subr.mxu0 0.0
      %1205 = vmatpush1.msra.mxu0 0.0
      %1206 = vmatprep.subr.mxu0 0.0
      %1207 = vmatpush1.msra.mxu0 0.0
      %1208 = vmatprep.subr.mxu0 0.0
      %1209 = vmatpush1.msra.mxu0 0.0
      %1210 = vmatprep.subr.mxu0 0.0
      %1211 = vmatpush1.msra.mxu0 0.0
      %1212 = vmatprep.subr.mxu0 0.0
      %1213 = vmatpush1.msra.mxu0 0.0
      %1214 = vmatprep.subr.mxu0 0.0
      %1215 = vmatpush1.msra.mxu0 0.0
      %1216 = vmatprep.subr.mxu0 0.0
      %1217 = vmatpush1.msra.mxu0 0.0
      %1218 = vmatprep.subr.mxu0 0.0
      %1219 = vmatpush1.msra.mxu0 0.0
      %1220 = vmatprep.subr.mxu0 0.0
      %1221 = vmatpush1.msra.mxu0 0.0
      %1222 = vmatprep.subr.mxu0 0.0
      %1223 = vmatpush1.msra.mxu0 0.0
      %1224 = vmatprep.subr.mxu0 0.0
      %1225 = vmatpush1.msra.mxu0 0.0
      %1226 = vmatprep.mubr.f32.mxu0 0.0
      %1227 = vmatmul.mubr.f32.gmra.mrb[0].mxu0 %v1011
      %v1228 = vpop.f32.mrb[0].mxu0
      %v1229 = vadd.f32 %v1159, %v1228
      %v1230 = vpop.f32.mrb[0].mxu0
      %1231 = vdwg.mxu0
      %v1232 = vsel %vm643, %v1085, 0.0
      %1233 = vadd.xlane.f32.xlu0 %v1232
      %v1234 = vpop.xlane.xlu0 %1233
      %v1236 = vlaneseq
      %v1237 = vshrl.u32 %v1236, 7
      %v1238 = vsub.s32 0, %v1237
      %v1239 = vrot.slane %v985, %v1238
      %1240 = vrot.lane.b32.xlu0 %v1239, 16
      %v1241 = vpop.permute.xlu0 %1240
      %v1243 = vmul.f32 %v945, %v1241
      %1245 = vrot.lane.b32.xlu0 %v1243, 112
      %v1246 = vpop.permute.xlu0 %1245
      %v1248 = vsel %vm496, %v1246, 0.0
      %1249 = vadd.xlane.f32.xlu0 %v1248
      %v1250 = vpop.xlane.xlu0 %1249
      %v1251 = vadd.f32 %v1250, %v1234
      %v1252 = vrcp.pop %v1251
      %v1253 = vmul.f32 %v1229, %v1252
      %1255 = vxpose.xlu0.b32.start [1/16] %v1010, 128
      %1256 = vxpose.xlu0.b32.cont [2/16] 0.0, 128
      %1257 = vxpose.xlu0.b32.cont [3/16] 0.0, 128
      %1258 = vxpose.xlu0.b32.cont [4/16] 0.0, 128
      %1259 = vxpose.xlu0.b32.cont [5/16] 0.0, 128
      %1260 = vxpose.xlu0.b32.cont [6/16] 0.0, 128
      %1261 = vxpose.xlu0.b32.cont [7/16] 0.0, 128
      %1262 = vxpose.xlu0.b32.cont [8/16] 0.0, 128
      %1263 = vxpose.xlu0.b32.cont [9/16] 0.0, 128
      %1264 = vxpose.xlu0.b32.cont [10/16] 0.0, 128
      %1265 = vxpose.xlu0.b32.cont [11/16] 0.0, 128
      %1266 = vxpose.xlu0.b32.cont [12/16] 0.0, 128
      %1267 = vxpose.xlu0.b32.cont [13/16] 0.0, 128
      %1268 = vxpose.xlu0.b32.cont [14/16] 0.0, 128
      %1269 = vxpose.xlu0.b32.cont [15/16] 0.0, 128
      %1270 = vxpose.xlu0.b32.end [16/16] 0.0, 128
      %v1271 = vpop.trf.xlu0
      %v1272 = vpop.trf.xlu0
      %v1273 = vpop.trf.xlu0
      %v1274 = vpop.trf.xlu0
      %v1275 = vpop.trf.xlu0
      %v1276 = vpop.trf.xlu0
      %v1277 = vpop.trf.xlu0
      %v1278 = vpop.trf.xlu0
      %v1279 = vpop.trf.xlu0
      %v1280 = vpop.trf.xlu0
      %v1281 = vpop.trf.xlu0
      %v1282 = vpop.trf.xlu0
      %v1283 = vpop.trf.xlu0
      %v1284 = vpop.trf.xlu0
      %v1285 = vpop.trf.xlu0
      %v1286 = vpop.trf.xlu0
      %v1288 = vsel %vm643, %v1271, 0
      %v1291 = vsel %vm643, %v1272, 0
      %1293 = vmatprep.subr.mxu0 0.0
      %1294 = vmatpush1.msra.mxu0 %v1087
      %1295 = vmatprep.subr.mxu0 0.0
      %1296 = vmatpush1.msra.mxu0 0.0
      %1297 = vmatprep.subr.mxu0 0.0
      %1298 = vmatpush1.msra.mxu0 0.0
      %1299 = vmatprep.subr.mxu0 0.0
      %1300 = vmatpush1.msra.mxu0 0.0
      %1301 = vmatprep.subr.mxu0 0.0
      %1302 = vmatpush1.msra.mxu0 0.0
      %1303 = vmatprep.subr.mxu0 0.0
      %1304 = vmatpush1.msra.mxu0 0.0
      %1305 = vmatprep.subr.mxu0 0.0
      %1306 = vmatpush1.msra.mxu0 0.0
      %1307 = vmatprep.subr.mxu0 0.0
      %1308 = vmatpush1.msra.mxu0 0.0
      %1309 = vmatprep.subr.mxu0 0.0
      %1310 = vmatpush1.msra.mxu0 0.0
      %1311 = vmatprep.subr.mxu0 0.0
      %1312 = vmatpush1.msra.mxu0 0.0
      %1313 = vmatprep.subr.mxu0 0.0
      %1314 = vmatpush1.msra.mxu0 0.0
      %1315 = vmatprep.subr.mxu0 0.0
      %1316 = vmatpush1.msra.mxu0 0.0
      %1317 = vmatprep.subr.mxu0 0.0
      %1318 = vmatpush1.msra.mxu0 0.0
      %1319 = vmatprep.subr.mxu0 0.0
      %1320 = vmatpush1.msra.mxu0 0.0
      %1321 = vmatprep.subr.mxu0 0.0
      %1322 = vmatpush1.msra.mxu0 0.0
      %1323 = vmatprep.subr.mxu0 0.0
      %1324 = vmatpush1.msra.mxu0 0.0
      %1325 = vmatprep.subr.mxu0 0.0
      %1326 = vmatpush1.msra.mxu0 0.0
      %1327 = vmatprep.subr.mxu0 0.0
      %1328 = vmatpush1.msra.mxu0 0.0
      %1329 = vmatprep.subr.mxu0 0.0
      %1330 = vmatpush1.msra.mxu0 0.0
      %1331 = vmatprep.subr.mxu0 0.0
      %1332 = vmatpush1.msra.mxu0 0.0
      %1333 = vmatprep.subr.mxu0 0.0
      %1334 = vmatpush1.msra.mxu0 0.0
      %1335 = vmatprep.subr.mxu0 0.0
      %1336 = vmatpush1.msra.mxu0 0.0
      %1337 = vmatprep.subr.mxu0 0.0
      %1338 = vmatpush1.msra.mxu0 0.0
      %1339 = vmatprep.subr.mxu0 0.0
      %1340 = vmatpush1.msra.mxu0 0.0
      %1341 = vmatprep.subr.mxu0 0.0
      %1342 = vmatpush1.msra.mxu0 0.0
      %1343 = vmatprep.subr.mxu0 0.0
      %1344 = vmatpush1.msra.mxu0 0.0
      %1345 = vmatprep.subr.mxu0 0.0
      %1346 = vmatpush1.msra.mxu0 0.0
      %1347 = vmatprep.subr.mxu0 0.0
      %1348 = vmatpush1.msra.mxu0 0.0
      %1349 = vmatprep.subr.mxu0 0.0
      %1350 = vmatpush1.msra.mxu0 0.0
      %1351 = vmatprep.subr.mxu0 0.0
      %1352 = vmatpush1.msra.mxu0 0.0
      %1353 = vmatprep.subr.mxu0 0.0
      %1354 = vmatpush1.msra.mxu0 0.0
      %1355 = vmatprep.subr.mxu0 0.0
      %1356 = vmatpush1.msra.mxu0 0.0
      %1357 = vmatprep.mubr.f32.mxu0 0.0
      %1358 = vmatmul.mubr.f32.gmra.mrb[0].mxu0 %v1288
      %v1359 = vpop.f32.mrb[0].mxu0
      %v1360 = vadd.f32 0.0, %v1359
      %v1361 = vpop.f32.mrb[0].mxu0
      %1362 = vmatprep.mubr.f32.mxu0 0.0
      %1363 = vmatmul.mubr.f32.gmra.mrb[0].mxu0 %v1291
      %v1364 = vpop.f32.mrb[0].mxu0
      %v1365 = vadd.f32 0.0, %v1364
      %v1366 = vpop.f32.mrb[0].mxu0
      %1367 = vdwg.mxu0
      %v1368 = vadd.f32 %v973, %v1360
      %v1369 = vadd.f32 %v974, %v1365
      %1370 = vst.msk [vmem:[%s961] sm:$0xff] %vm643, %v1368
      %1371 = vst.msk [vmem:[%s961 + $0x8] sm:$0xff] %vm643, %v1369
      %v1372 = vsel %vm937, %v1004, 0.0
      %v1373 = vrot.slane %v1372, 4
      %v1374 = vadd.f32 %v1372, %v1373
      %v1375 = vrot.slane %v1374, 2
      %v1376 = vadd.f32 %v1374, %v1375
      %v1377 = vrot.slane %v1376, 1
      %v1378 = vadd.f32 %v1376, %v1377
      %v1381 = vunpack.c.l.s4 1966171168
      %v1382 = vunpack.c.0.s8 %v1381
      %v1383 = vlaneseq
      %v1384 = vshrl.u32 %v1383, 7
      %v1385 = vsub.s32 %v1382, %v1384
      %v1386 = vrot.slane %v1378, %v1385
      %v1388 = vunpack.c.l.s4 1966171168
      %v1389 = vunpack.c.0.s8 %v1388
      %v1390 = vlaneseq
      %v1391 = vshrl.u32 %v1390, 7
      %v1392 = vsub.s32 %v1389, %v1391
      %v1393 = vrot.slane %v1386, %v1392
      %1394 = vrot.lane.b32.xlu0 %v1393, 112
      %v1395 = vpop.permute.xlu0 %1394
      %v1397 = vadd.f32 %v985, %v1395
      %1398 = vst.msk [vmem:[%s975] sm:$0x1] %vm928, %v1397
      %1399 = vst.msk [vmem:[%s946] sm:$0x1] %vm930, %v957
      %1400 = vset.pattern.permute.xlu0 2
      %1401 = vperm.xlu0 %1400, %v406
      %v1402 = vpop.permute.xlu0 %1401
      %v1404 = vsub.f32 %v282, %v1402
      %vm1405 = vcmask 392448
      %v1406 = vsel %vm1405, %v282, -inf
      %1407 = vmax.xlane.f32.xlu0 %v1406
      %v1408 = vpop.xlane.xlu0 %1407
      %v1409 = vsub.f32 %v1404, %v1408
      %v1410 = vmul.f32 %v1409, 1.442695
      %v1411 = vpow.pop %v1410
      %v1412 = vadd.f32 %v1411, 0.0001
      %v1413 = vmul.f32 %v1412, 0.25
      %s1414 = scalar_lea.vmem [#allocation4], 2
      %v1415 = vld [vmem:[%s1414] sm:$0x1]
      %v1416 = vsel %vm1405, %v330, -inf
      %1417 = vmax.xlane.f32.xlu0 %v1416
      %v1418 = vpop.xlane.xlu0 %1417
      %v1419 = vrot.slane %v1418, 4
      %v1420 = vmax.f32 %v1418, %v1419
      %v1421 = vrot.slane %v1420, 2
      %v1422 = vmax.f32 %v1420, %v1421
      %v1423 = vrot.slane %v1422, 1
      %v1424 = vmax.f32 %v1422, %v1423
      %v1425 = vmax.f32 %v1415, %v1424
      %v1426 = vsub.f32 %v1415, %v1425
      %v1427 = vmul.f32 %v1426, 1.442695
      %v1428 = vpow.pop %v1427
      %s1429 = scalar_lea.vmem [#allocation2], 32
      %v1430 = vld [vmem:[%s1429] sm:$0xff]
      %v1431 = vld [vmem:[%s1429 + $0x8] sm:$0xff]
      %v1433 = vlaneseq
      %v1434 = vshrl.u32 %v1433, 7
      %v1435 = vsub.s32 0, %v1434
      %v1436 = vrot.slane %v1428, %v1435
      %1437 = vset.pattern.permute.xlu0 0
      %1438 = vperm.xlu0 %1437, %v1436
      %v1439 = vpop.permute.xlu0 %1438
      %v1441 = vmul.f32 %v1430, %v1439
      %v1442 = vmul.f32 %v1431, %v1439
      %s1443 = scalar_lea.vmem [#allocation3], 2
      %v1444 = vld [vmem:[%s1443] sm:$0x1]
      %1445 = vset.pattern.permute.xlu0 0
      %1446 = vperm.xlu0 %1445, %v1428
      %v1447 = vpop.permute.xlu0 %1446
      %v1449 = vlaneseq
      %v1450 = vshrl.u32 %v1449, 7
      %v1451 = vsub.s32 0, %v1450
      %v1452 = vrot.slane %v1447, %v1451
      %v1453 = vmul.f32 %v1444, %v1452
      %1454 = vset.pattern.permute.xlu0 2
      %1455 = vperm.xlu0 %1454, %v480
      %v1456 = vpop.permute.xlu0 %1455
      %v1458 = vsub.f32 %v330, %v1456
      %v1460 = vlaneseq
      %v1461 = vshrl.u32 %v1460, 7
      %v1462 = vsub.s32 0, %v1461
      %v1463 = vrot.slane %v1425, %v1462
      %1464 = vset.pattern.permute.xlu0 0
      %1465 = vperm.xlu0 %1464, %v1463
      %v1466 = vpop.permute.xlu0 %1465
      %v1468 = vsub.f32 %v1458, %v1466
      %v1469 = vmul.f32 %v1468, 1.442695
      %v1470 = vpow.pop %v1469
      %v1471 = vadd.f32 %v1470, 0.0001
      %v1472 = vmul.f32 %v1471, 0.25
      %1474 = vrot.lane.b32.xlu0 %v1413, 96
      %v1475 = vpop.permute.xlu0 %1474
      %1477 = vrot.lane.b32.xlu0 %v1472, 96
      %v1478 = vpop.permute.xlu0 %1477
      %v1479 = vsel %vm496, %v1475, 0
      %v1481 = vsel %vm496, %v1478, 0
      %1483 = vmatprep.subr.mxu0 0.0
      %1484 = vmatpush1.xpose.msra.mxu0 %v1481
      %1485 = vmatprep.subr.mxu0 0.0
      %1486 = vmatpush1.xpose.msra.mxu0 0.0
      %1487 = vmatprep.subr.mxu0 0.0
      %1488 = vmatpush1.xpose.msra.mxu0 0.0
      %1489 = vmatprep.subr.mxu0 0.0
      %1490 = vmatpush1.xpose.msra.mxu0 0.0
      %1491 = vmatprep.subr.mxu0 0.0
      %1492 = vmatpush1.xpose.msra.mxu0 0.0
      %1493 = vmatprep.subr.mxu0 0.0
      %1494 = vmatpush1.xpose.msra.mxu0 0.0
      %1495 = vmatprep.subr.mxu0 0.0
      %1496 = vmatpush1.xpose.msra.mxu0 0.0
      %1497 = vmatprep.subr.mxu0 0.0
      %1498 = vmatpush1.xpose.msra.mxu0 0.0
      %1499 = vmatprep.subr.mxu0 0.0
      %1500 = vmatpush1.xpose.msra.mxu0 0.0
      %1501 = vmatprep.subr.mxu0 0.0
      %1502 = vmatpush1.xpose.msra.mxu0 0.0
      %1503 = vmatprep.subr.mxu0 0.0
      %1504 = vmatpush1.xpose.msra.mxu0 0.0
      %1505 = vmatprep.subr.mxu0 0.0
      %1506 = vmatpush1.xpose.msra.mxu0 0.0
      %1507 = vmatprep.subr.mxu0 0.0
      %1508 = vmatpush1.xpose.msra.mxu0 0.0
      %1509 = vmatprep.subr.mxu0 0.0
      %1510 = vmatpush1.xpose.msra.mxu0 0.0
      %1511 = vmatprep.subr.mxu0 0.0
      %1512 = vmatpush1.xpose.msra.mxu0 0.0
      %1513 = vmatprep.subr.mxu0 0.0
      %1514 = vmatpush1.xpose.msra.mxu0 0.0
      %1515 = vmatprep.subr.mxu0 0.0
      %1516 = vmatpush1.xpose.msra.mxu0 0.0
      %1517 = vmatprep.subr.mxu0 0.0
      %1518 = vmatpush1.xpose.msra.mxu0 0.0
      %1519 = vmatprep.subr.mxu0 0.0
      %1520 = vmatpush1.xpose.msra.mxu0 0.0
      %1521 = vmatprep.subr.mxu0 0.0
      %1522 = vmatpush1.xpose.msra.mxu0 0.0
      %1523 = vmatprep.subr.mxu0 0.0
      %1524 = vmatpush1.xpose.msra.mxu0 0.0
      %1525 = vmatprep.subr.mxu0 0.0
      %1526 = vmatpush1.xpose.msra.mxu0 0.0
      %1527 = vmatprep.subr.mxu0 0.0
      %1528 = vmatpush1.xpose.msra.mxu0 0.0
      %1529 = vmatprep.subr.mxu0 0.0
      %1530 = vmatpush1.xpose.msra.mxu0 0.0
      %1531 = vmatprep.subr.mxu0 0.0
      %1532 = vmatpush1.xpose.msra.mxu0 0.0
      %1533 = vmatprep.subr.mxu0 0.0
      %1534 = vmatpush1.xpose.msra.mxu0 0.0
      %1535 = vmatprep.subr.mxu0 0.0
      %1536 = vmatpush1.xpose.msra.mxu0 0.0
      %1537 = vmatprep.subr.mxu0 0.0
      %1538 = vmatpush1.xpose.msra.mxu0 0.0
      %1539 = vmatprep.subr.mxu0 0.0
      %1540 = vmatpush1.xpose.msra.mxu0 0.0
      %1541 = vmatprep.subr.mxu0 0.0
      %1542 = vmatpush1.xpose.msra.mxu0 0.0
      %1543 = vmatprep.subr.mxu0 0.0
      %1544 = vmatpush1.xpose.msra.mxu0 0.0
      %1545 = vmatprep.subr.mxu0 0.0
      %1546 = vmatpush1.xpose.msra.mxu0 0.0
      %1547 = vmatprep.mubr.f32.mxu0 0.0
      %1548 = vmatmul.mubr.f32.gmra.mrb[0].mxu0 %v1479
      %v1549 = vpop.f32.mrb[0].mxu0
      %v1550 = vadd.f32 0.0, %v1549
      %v1551 = vpop.f32.mrb[0].mxu0
      %1552 = vdwg.mxu0
      %v1553 = vmul.f32 %v1550, %v489
      %1554 = vrot.lane.b32.xlu0 %v222, 48
      %v1555 = vpop.permute.xlu0 %1554
      %v1558 = vsel %vm643, %v1553, 0
      %1560 = vmatprep.subr.mxu0 0.0
      %1561 = vmatpush1.msra.mxu0 %v1555
      %1562 = vmatprep.subr.mxu0 0.0
      %1563 = vmatpush1.msra.mxu0 0.0
      %1564 = vmatprep.subr.mxu0 0.0
      %1565 = vmatpush1.msra.mxu0 0.0
      %1566 = vmatprep.subr.mxu0 0.0
      %1567 = vmatpush1.msra.mxu0 0.0
      %1568 = vmatprep.subr.mxu0 0.0
      %1569 = vmatpush1.msra.mxu0 0.0
      %1570 = vmatprep.subr.mxu0 0.0
      %1571 = vmatpush1.msra.mxu0 0.0
      %1572 = vmatprep.subr.mxu0 0.0
      %1573 = vmatpush1.msra.mxu0 0.0
      %1574 = vmatprep.subr.mxu0 0.0
      %1575 = vmatpush1.msra.mxu0 0.0
      %1576 = vmatprep.subr.mxu0 0.0
      %1577 = vmatpush1.msra.mxu0 0.0
      %1578 = vmatprep.subr.mxu0 0.0
      %1579 = vmatpush1.msra.mxu0 0.0
      %1580 = vmatprep.subr.mxu0 0.0
      %1581 = vmatpush1.msra.mxu0 0.0
      %1582 = vmatprep.subr.mxu0 0.0
      %1583 = vmatpush1.msra.mxu0 0.0
      %1584 = vmatprep.subr.mxu0 0.0
      %1585 = vmatpush1.msra.mxu0 0.0
      %1586 = vmatprep.subr.mxu0 0.0
      %1587 = vmatpush1.msra.mxu0 0.0
      %1588 = vmatprep.subr.mxu0 0.0
      %1589 = vmatpush1.msra.mxu0 0.0
      %1590 = vmatprep.subr.mxu0 0.0
      %1591 = vmatpush1.msra.mxu0 0.0
      %1592 = vmatprep.subr.mxu0 0.0
      %1593 = vmatpush1.msra.mxu0 0.0
      %1594 = vmatprep.subr.mxu0 0.0
      %1595 = vmatpush1.msra.mxu0 0.0
      %1596 = vmatprep.subr.mxu0 0.0
      %1597 = vmatpush1.msra.mxu0 0.0
      %1598 = vmatprep.subr.mxu0 0.0
      %1599 = vmatpush1.msra.mxu0 0.0
      %1600 = vmatprep.subr.mxu0 0.0
      %1601 = vmatpush1.msra.mxu0 0.0
      %1602 = vmatprep.subr.mxu0 0.0
      %1603 = vmatpush1.msra.mxu0 0.0
      %1604 = vmatprep.subr.mxu0 0.0
      %1605 = vmatpush1.msra.mxu0 0.0
      %1606 = vmatprep.subr.mxu0 0.0
      %1607 = vmatpush1.msra.mxu0 0.0
      %1608 = vmatprep.subr.mxu0 0.0
      %1609 = vmatpush1.msra.mxu0 0.0
      %1610 = vmatprep.subr.mxu0 0.0
      %1611 = vmatpush1.msra.mxu0 0.0
      %1612 = vmatprep.subr.mxu0 0.0
      %1613 = vmatpush1.msra.mxu0 0.0
      %1614 = vmatprep.subr.mxu0 0.0
      %1615 = vmatpush1.msra.mxu0 0.0
      %1616 = vmatprep.subr.mxu0 0.0
      %1617 = vmatpush1.msra.mxu0 0.0
      %1618 = vmatprep.subr.mxu0 0.0
      %1619 = vmatpush1.msra.mxu0 0.0
      %1620 = vmatprep.subr.mxu0 0.0
      %1621 = vmatpush1.msra.mxu0 0.0
      %1622 = vmatprep.subr.mxu0 0.0
      %1623 = vmatpush1.msra.mxu0 0.0
      %1624 = vmatprep.mubr.f32.mxu0 0.0
      %1625 = vmatmul.mubr.f32.gmra.mrb[0].mxu0 %v1558
      %v1626 = vpop.f32.mrb[0].mxu0
      %v1627 = vadd.f32 0.0, %v1626
      %v1628 = vpop.f32.mrb[0].mxu0
      %1629 = vdwg.mxu0
      %1630 = vmatprep.subr.mxu0 0.0
      %1631 = vmatpush1.msra.mxu0 %v1441
      %1632 = vmatprep.subr.mxu0 0.0
      %1633 = vmatpush1.msra.mxu0 %v1442
      %1634 = vmatprep.subr.mxu0 0.0
      %1635 = vmatpush1.msra.mxu0 0.0
      %1636 = vmatprep.subr.mxu0 0.0
      %1637 = vmatpush1.msra.mxu0 0.0
      %1638 = vmatprep.subr.mxu0 0.0
      %1639 = vmatpush1.msra.mxu0 0.0
      %1640 = vmatprep.subr.mxu0 0.0
      %1641 = vmatpush1.msra.mxu0 0.0
      %1642 = vmatprep.subr.mxu0 0.0
      %1643 = vmatpush1.msra.mxu0 0.0
      %1644 = vmatprep.subr.mxu0 0.0
      %1645 = vmatpush1.msra.mxu0 0.0
      %1646 = vmatprep.subr.mxu0 0.0
      %1647 = vmatpush1.msra.mxu0 0.0
      %1648 = vmatprep.subr.mxu0 0.0
      %1649 = vmatpush1.msra.mxu0 0.0
      %1650 = vmatprep.subr.mxu0 0.0
      %1651 = vmatpush1.msra.mxu0 0.0
      %1652 = vmatprep.subr.mxu0 0.0
      %1653 = vmatpush1.msra.mxu0 0.0
      %1654 = vmatprep.subr.mxu0 0.0
      %1655 = vmatpush1.msra.mxu0 0.0
      %1656 = vmatprep.subr.mxu0 0.0
      %1657 = vmatpush1.msra.mxu0 0.0
      %1658 = vmatprep.subr.mxu0 0.0
      %1659 = vmatpush1.msra.mxu0 0.0
      %1660 = vmatprep.subr.mxu0 0.0
      %1661 = vmatpush1.msra.mxu0 0.0
      %1662 = vmatprep.subr.mxu0 0.0
      %1663 = vmatpush1.msra.mxu0 0.0
      %1664 = vmatprep.subr.mxu0 0.0
      %1665 = vmatpush1.msra.mxu0 0.0
      %1666 = vmatprep.subr.mxu0 0.0
      %1667 = vmatpush1.msra.mxu0 0.0
      %1668 = vmatprep.subr.mxu0 0.0
      %1669 = vmatpush1.msra.mxu0 0.0
      %1670 = vmatprep.subr.mxu0 0.0
      %1671 = vmatpush1.msra.mxu0 0.0
      %1672 = vmatprep.subr.mxu0 0.0
      %1673 = vmatpush1.msra.mxu0 0.0
      %1674 = vmatprep.subr.mxu0 0.0
      %1675 = vmatpush1.msra.mxu0 0.0
      %1676 = vmatprep.subr.mxu0 0.0
      %1677 = vmatpush1.msra.mxu0 0.0
      %1678 = vmatprep.subr.mxu0 0.0
      %1679 = vmatpush1.msra.mxu0 0.0
      %1680 = vmatprep.subr.mxu0 0.0
      %1681 = vmatpush1.msra.mxu0 0.0
      %1682 = vmatprep.subr.mxu0 0.0
      %1683 = vmatpush1.msra.mxu0 0.0
      %1684 = vmatprep.subr.mxu0 0.0
      %1685 = vmatpush1.msra.mxu0 0.0
      %1686 = vmatprep.subr.mxu0 0.0
      %1687 = vmatpush1.msra.mxu0 0.0
      %1688 = vmatprep.subr.mxu0 0.0
      %1689 = vmatpush1.msra.mxu0 0.0
      %1690 = vmatprep.subr.mxu0 0.0
      %1691 = vmatpush1.msra.mxu0 0.0
      %1692 = vmatprep.subr.mxu0 0.0
      %1693 = vmatpush1.msra.mxu0 0.0
      %1694 = vmatprep.mubr.f32.mxu0 0.0
      %1695 = vmatmul.mubr.f32.gmra.mrb[0].mxu0 %v1479
      %v1696 = vpop.f32.mrb[0].mxu0
      %v1697 = vadd.f32 %v1627, %v1696
      %v1698 = vpop.f32.mrb[0].mxu0
      %1699 = vdwg.mxu0
      %v1700 = vsel %vm643, %v1553, 0.0
      %1701 = vadd.xlane.f32.xlu0 %v1700
      %v1702 = vpop.xlane.xlu0 %1701
      %v1704 = vlaneseq
      %v1705 = vshrl.u32 %v1704, 7
      %v1706 = vsub.s32 0, %v1705
      %v1707 = vrot.slane %v1453, %v1706
      %1708 = vrot.lane.b32.xlu0 %v1707, 32
      %v1709 = vpop.permute.xlu0 %1708
      %v1711 = vmul.f32 %v1413, %v1709
      %1713 = vrot.lane.b32.xlu0 %v1711, 96
      %v1714 = vpop.permute.xlu0 %1713
      %v1716 = vsel %vm496, %v1714, 0.0
      %1717 = vadd.xlane.f32.xlu0 %v1716
      %v1718 = vpop.xlane.xlu0 %1717
      %v1719 = vadd.f32 %v1718, %v1702
      %v1720 = vrcp.pop %v1719
      %v1721 = vmul.f32 %v1697, %v1720
      %1723 = vxpose.xlu0.b32.start [1/16] %v1478, 128
      %1724 = vxpose.xlu0.b32.cont [2/16] 0.0, 128
      %1725 = vxpose.xlu0.b32.cont [3/16] 0.0, 128
      %1726 = vxpose.xlu0.b32.cont [4/16] 0.0, 128
      %1727 = vxpose.xlu0.b32.cont [5/16] 0.0, 128
      %1728 = vxpose.xlu0.b32.cont [6/16] 0.0, 128
      %1729 = vxpose.xlu0.b32.cont [7/16] 0.0, 128
      %1730 = vxpose.xlu0.b32.cont [8/16] 0.0, 128
      %1731 = vxpose.xlu0.b32.cont [9/16] 0.0, 128
      %1732 = vxpose.xlu0.b32.cont [10/16] 0.0, 128
      %1733 = vxpose.xlu0.b32.cont [11/16] 0.0, 128
      %1734 = vxpose.xlu0.b32.cont [12/16] 0.0, 128
      %1735 = vxpose.xlu0.b32.cont [13/16] 0.0, 128
      %1736 = vxpose.xlu0.b32.cont [14/16] 0.0, 128
      %1737 = vxpose.xlu0.b32.cont [15/16] 0.0, 128
      %1738 = vxpose.xlu0.b32.end [16/16] 0.0, 128
      %v1739 = vpop.trf.xlu0
      %v1740 = vpop.trf.xlu0
      %v1741 = vpop.trf.xlu0
      %v1742 = vpop.trf.xlu0
      %v1743 = vpop.trf.xlu0
      %v1744 = vpop.trf.xlu0
      %v1745 = vpop.trf.xlu0
      %v1746 = vpop.trf.xlu0
      %v1747 = vpop.trf.xlu0
      %v1748 = vpop.trf.xlu0
      %v1749 = vpop.trf.xlu0
      %v1750 = vpop.trf.xlu0
      %v1751 = vpop.trf.xlu0
      %v1752 = vpop.trf.xlu0
      %v1753 = vpop.trf.xlu0
      %v1754 = vpop.trf.xlu0
      %v1756 = vsel %vm643, %v1739, 0
      %v1759 = vsel %vm643, %v1740, 0
      %1761 = vmatprep.subr.mxu0 0.0
      %1762 = vmatpush1.msra.mxu0 %v1555
      %1763 = vmatprep.subr.mxu0 0.0
      %1764 = vmatpush1.msra.mxu0 0.0
      %1765 = vmatprep.subr.mxu0 0.0
      %1766 = vmatpush1.msra.mxu0 0.0
      %1767 = vmatprep.subr.mxu0 0.0
      %1768 = vmatpush1.msra.mxu0 0.0
      %1769 = vmatprep.subr.mxu0 0.0
      %1770 = vmatpush1.msra.mxu0 0.0
      %1771 = vmatprep.subr.mxu0 0.0
      %1772 = vmatpush1.msra.mxu0 0.0
      %1773 = vmatprep.subr.mxu0 0.0
      %1774 = vmatpush1.msra.mxu0 0.0
      %1775 = vmatprep.subr.mxu0 0.0
      %1776 = vmatpush1.msra.mxu0 0.0
      %1777 = vmatprep.subr.mxu0 0.0
      %1778 = vmatpush1.msra.mxu0 0.0
      %1779 = vmatprep.subr.mxu0 0.0
      %1780 = vmatpush1.msra.mxu0 0.0
      %1781 = vmatprep.subr.mxu0 0.0
      %1782 = vmatpush1.msra.mxu0 0.0
      %1783 = vmatprep.subr.mxu0 0.0
      %1784 = vmatpush1.msra.mxu0 0.0
      %1785 = vmatprep.subr.mxu0 0.0
      %1786 = vmatpush1.msra.mxu0 0.0
      %1787 = vmatprep.subr.mxu0 0.0
      %1788 = vmatpush1.msra.mxu0 0.0
      %1789 = vmatprep.subr.mxu0 0.0
      %1790 = vmatpush1.msra.mxu0 0.0
      %1791 = vmatprep.subr.mxu0 0.0
      %1792 = vmatpush1.msra.mxu0 0.0
      %1793 = vmatprep.subr.mxu0 0.0
      %1794 = vmatpush1.msra.mxu0 0.0
      %1795 = vmatprep.subr.mxu0 0.0
      %1796 = vmatpush1.msra.mxu0 0.0
      %1797 = vmatprep.subr.mxu0 0.0
      %1798 = vmatpush1.msra.mxu0 0.0
      %1799 = vmatprep.subr.mxu0 0.0
      %1800 = vmatpush1.msra.mxu0 0.0
      %1801 = vmatprep.subr.mxu0 0.0
      %1802 = vmatpush1.msra.mxu0 0.0
      %1803 = vmatprep.subr.mxu0 0.0
      %1804 = vmatpush1.msra.mxu0 0.0
      %1805 = vmatprep.subr.mxu0 0.0
      %1806 = vmatpush1.msra.mxu0 0.0
      %1807 = vmatprep.subr.mxu0 0.0
      %1808 = vmatpush1.msra.mxu0 0.0
      %1809 = vmatprep.subr.mxu0 0.0
      %1810 = vmatpush1.msra.mxu0 0.0
      %1811 = vmatprep.subr.mxu0 0.0
      %1812 = vmatpush1.msra.mxu0 0.0
      %1813 = vmatprep.subr.mxu0 0.0
      %1814 = vmatpush1.msra.mxu0 0.0
      %1815 = vmatprep.subr.mxu0 0.0
      %1816 = vmatpush1.msra.mxu0 0.0
      %1817 = vmatprep.subr.mxu0 0.0
      %1818 = vmatpush1.msra.mxu0 0.0
      %1819 = vmatprep.subr.mxu0 0.0
      %1820 = vmatpush1.msra.mxu0 0.0
      %1821 = vmatprep.subr.mxu0 0.0
      %1822 = vmatpush1.msra.mxu0 0.0
      %1823 = vmatprep.subr.mxu0 0.0
      %1824 = vmatpush1.msra.mxu0 0.0
      %1825 = vmatprep.mubr.f32.mxu0 0.0
      %1826 = vmatmul.mubr.f32.gmra.mrb[0].mxu0 %v1756
      %v1827 = vpop.f32.mrb[0].mxu0
      %v1828 = vadd.f32 0.0, %v1827
      %v1829 = vpop.f32.mrb[0].mxu0
      %1830 = vmatprep.mubr.f32.mxu0 0.0
      %1831 = vmatmul.mubr.f32.gmra.mrb[0].mxu0 %v1759
      %v1832 = vpop.f32.mrb[0].mxu0
      %v1833 = vadd.f32 0.0, %v1832
      %v1834 = vpop.f32.mrb[0].mxu0
      %1835 = vdwg.mxu0
      %v1836 = vadd.f32 %v1441, %v1828
      %v1837 = vadd.f32 %v1442, %v1833
      %1838 = vst.msk [vmem:[%s1429] sm:$0xff] %vm643, %v1836
      %1839 = vst.msk [vmem:[%s1429 + $0x8] sm:$0xff] %vm643, %v1837
      %v1840 = vsel %vm1405, %v1472, 0.0
      %v1841 = vrot.slane %v1840, 4
      %v1842 = vadd.f32 %v1840, %v1841
      %v1843 = vrot.slane %v1842, 2
      %v1844 = vadd.f32 %v1842, %v1843
      %v1845 = vrot.slane %v1844, 1
      %v1846 = vadd.f32 %v1844, %v1845
      %v1849 = vunpack.c.l.s4 1966171168
      %v1850 = vunpack.c.0.s8 %v1849
      %v1851 = vlaneseq
      %v1852 = vshrl.u32 %v1851, 7
      %v1853 = vsub.s32 %v1850, %v1852
      %v1854 = vrot.slane %v1846, %v1853
      %v1856 = vunpack.c.l.s4 1966171168
      %v1857 = vunpack.c.0.s8 %v1856
      %v1858 = vlaneseq
      %v1859 = vshrl.u32 %v1858, 7
      %v1860 = vsub.s32 %v1857, %v1859
      %v1861 = vrot.slane %v1854, %v1860
      %1862 = vrot.lane.b32.xlu0 %v1861, 96
      %v1863 = vpop.permute.xlu0 %1862
      %v1865 = vadd.f32 %v1453, %v1863
      %1866 = vst.msk [vmem:[%s1443] sm:$0x1] %vm928, %v1865
      %1867 = vst.msk [vmem:[%s1414] sm:$0x1] %vm930, %v1425
      %1868 = vset.pattern.permute.xlu0 3
      %1869 = vperm.xlu0 %1868, %v406
      %v1870 = vpop.permute.xlu0 %1869
      %v1872 = vsub.f32 %v282, %v1870
      %vm1873 = vcmask 523648
      %v1874 = vsel %vm1873, %v282, -inf
      %1875 = vmax.xlane.f32.xlu0 %v1874
      %v1876 = vpop.xlane.xlu0 %1875
      %v1877 = vsub.f32 %v1872, %v1876
      %v1878 = vmul.f32 %v1877, 1.442695
      %v1879 = vpow.pop %v1878
      %v1880 = vadd.f32 %v1879, 0.0001
      %v1881 = vmul.f32 %v1880, 0.25
      %s1882 = scalar_lea.vmem [#allocation4], 3
      %v1883 = vld [vmem:[%s1882] sm:$0x1]
      %v1884 = vsel %vm1873, %v330, -inf
      %1885 = vmax.xlane.f32.xlu0 %v1884
      %v1886 = vpop.xlane.xlu0 %1885
      %v1887 = vrot.slane %v1886, 4
      %v1888 = vmax.f32 %v1886, %v1887
      %v1889 = vrot.slane %v1888, 2
      %v1890 = vmax.f32 %v1888, %v1889
      %v1891 = vrot.slane %v1890, 1
      %v1892 = vmax.f32 %v1890, %v1891
      %v1893 = vmax.f32 %v1883, %v1892
      %v1894 = vsub.f32 %v1883, %v1893
      %v1895 = vmul.f32 %v1894, 1.442695
      %v1896 = vpow.pop %v1895
      %s1897 = scalar_lea.vmem [#allocation2], 48
      %v1898 = vld [vmem:[%s1897] sm:$0xff]
      %v1899 = vld [vmem:[%s1897 + $0x8] sm:$0xff]
      %v1901 = vlaneseq
      %v1902 = vshrl.u32 %v1901, 7
      %v1903 = vsub.s32 0, %v1902
      %v1904 = vrot.slane %v1896, %v1903
      %1905 = vset.pattern.permute.xlu0 0
      %1906 = vperm.xlu0 %1905, %v1904
      %v1907 = vpop.permute.xlu0 %1906
      %v1909 = vmul.f32 %v1898, %v1907
      %v1910 = vmul.f32 %v1899, %v1907
      %s1911 = scalar_lea.vmem [#allocation3], 3
      %v1912 = vld [vmem:[%s1911] sm:$0x1]
      %1913 = vset.pattern.permute.xlu0 0
      %1914 = vperm.xlu0 %1913, %v1896
      %v1915 = vpop.permute.xlu0 %1914
      %v1917 = vlaneseq
      %v1918 = vshrl.u32 %v1917, 7
      %v1919 = vsub.s32 0, %v1918
      %v1920 = vrot.slane %v1915, %v1919
      %v1921 = vmul.f32 %v1912, %v1920
      %1922 = vset.pattern.permute.xlu0 3
      %1923 = vperm.xlu0 %1922, %v480
      %v1924 = vpop.permute.xlu0 %1923
      %v1926 = vsub.f32 %v330, %v1924
      %v1928 = vlaneseq
      %v1929 = vshrl.u32 %v1928, 7
      %v1930 = vsub.s32 0, %v1929
      %v1931 = vrot.slane %v1893, %v1930
      %1932 = vset.pattern.permute.xlu0 0
      %1933 = vperm.xlu0 %1932, %v1931
      %v1934 = vpop.permute.xlu0 %1933
      %v1936 = vsub.f32 %v1926, %v1934
      %v1937 = vmul.f32 %v1936, 1.442695
      %v1938 = vpow.pop %v1937
      %v1939 = vadd.f32 %v1938, 0.0001
      %v1940 = vmul.f32 %v1939, 0.25
      %1942 = vrot.lane.b32.xlu0 %v1881, 80
      %v1943 = vpop.permute.xlu0 %1942
      %1945 = vrot.lane.b32.xlu0 %v1940, 80
      %v1946 = vpop.permute.xlu0 %1945
      %v1947 = vsel %vm496, %v1943, 0
      %v1949 = vsel %vm496, %v1946, 0
      %1951 = vmatprep.subr.mxu0 0.0
      %1952 = vmatpush1.xpose.msra.mxu0 %v1949
      %1953 = vmatprep.subr.mxu0 0.0
      %1954 = vmatpush1.xpose.msra.mxu0 0.0
      %1955 = vmatprep.subr.mxu0 0.0
      %1956 = vmatpush1.xpose.msra.mxu0 0.0
      %1957 = vmatprep.subr.mxu0 0.0
      %1958 = vmatpush1.xpose.msra.mxu0 0.0
      %1959 = vmatprep.subr.mxu0 0.0
      %1960 = vmatpush1.xpose.msra.mxu0 0.0
      %1961 = vmatprep.subr.mxu0 0.0
      %1962 = vmatpush1.xpose.msra.mxu0 0.0
      %1963 = vmatprep.subr.mxu0 0.0
      %1964 = vmatpush1.xpose.msra.mxu0 0.0
      %1965 = vmatprep.subr.mxu0 0.0
      %1966 = vmatpush1.xpose.msra.mxu0 0.0
      %1967 = vmatprep.subr.mxu0 0.0
      %1968 = vmatpush1.xpose.msra.mxu0 0.0
      %1969 = vmatprep.subr.mxu0 0.0
      %1970 = vmatpush1.xpose.msra.mxu0 0.0
      %1971 = vmatprep.subr.mxu0 0.0
      %1972 = vmatpush1.xpose.msra.mxu0 0.0
      %1973 = vmatprep.subr.mxu0 0.0
      %1974 = vmatpush1.xpose.msra.mxu0 0.0
      %1975 = vmatprep.subr.mxu0 0.0
      %1976 = vmatpush1.xpose.msra.mxu0 0.0
      %1977 = vmatprep.subr.mxu0 0.0
      %1978 = vmatpush1.xpose.msra.mxu0 0.0
      %1979 = vmatprep.subr.mxu0 0.0
      %1980 = vmatpush1.xpose.msra.mxu0 0.0
      %1981 = vmatprep.subr.mxu0 0.0
      %1982 = vmatpush1.xpose.msra.mxu0 0.0
      %1983 = vmatprep.subr.mxu0 0.0
      %1984 = vmatpush1.xpose.msra.mxu0 0.0
      %1985 = vmatprep.subr.mxu0 0.0
      %1986 = vmatpush1.xpose.msra.mxu0 0.0
      %1987 = vmatprep.subr.mxu0 0.0
      %1988 = vmatpush1.xpose.msra.mxu0 0.0
      %1989 = vmatprep.subr.mxu0 0.0
      %1990 = vmatpush1.xpose.msra.mxu0 0.0
      %1991 = vmatprep.subr.mxu0 0.0
      %1992 = vmatpush1.xpose.msra.mxu0 0.0
      %1993 = vmatprep.subr.mxu0 0.0
      %1994 = vmatpush1.xpose.msra.mxu0 0.0
      %1995 = vmatprep.subr.mxu0 0.0
      %1996 = vmatpush1.xpose.msra.mxu0 0.0
      %1997 = vmatprep.subr.mxu0 0.0
      %1998 = vmatpush1.xpose.msra.mxu0 0.0
      %1999 = vmatprep.subr.mxu0 0.0
      %2000 = vmatpush1.xpose.msra.mxu0 0.0
      %2001 = vmatprep.subr.mxu0 0.0
      %2002 = vmatpush1.xpose.msra.mxu0 0.0
      %2003 = vmatprep.subr.mxu0 0.0
      %2004 = vmatpush1.xpose.msra.mxu0 0.0
      %2005 = vmatprep.subr.mxu0 0.0
      %2006 = vmatpush1.xpose.msra.mxu0 0.0
      %2007 = vmatprep.subr.mxu0 0.0
      %2008 = vmatpush1.xpose.msra.mxu0 0.0
      %2009 = vmatprep.subr.mxu0 0.0
      %2010 = vmatpush1.xpose.msra.mxu0 0.0
      %2011 = vmatprep.subr.mxu0 0.0
      %2012 = vmatpush1.xpose.msra.mxu0 0.0
      %2013 = vmatprep.subr.mxu0 0.0
      %2014 = vmatpush1.xpose.msra.mxu0 0.0
      %2015 = vmatprep.mubr.f32.mxu0 0.0
      %2016 = vmatmul.mubr.f32.gmra.mrb[0].mxu0 %v1947
      %v2017 = vpop.f32.mrb[0].mxu0
      %v2018 = vadd.f32 0.0, %v2017
      %v2019 = vpop.f32.mrb[0].mxu0
      %2020 = vdwg.mxu0
      %v2021 = vmul.f32 %v2018, %v489
      %2022 = vrot.lane.b32.xlu0 %v222, 40
      %v2023 = vpop.permute.xlu0 %2022
      %v2026 = vsel %vm643, %v2021, 0
      %2028 = vmatprep.subr.mxu0 0.0
      %2029 = vmatpush1.msra.mxu0 %v2023
      %2030 = vmatprep.subr.mxu0 0.0
      %2031 = vmatpush1.msra.mxu0 0.0
      %2032 = vmatprep.subr.mxu0 0.0
      %2033 = vmatpush1.msra.mxu0 0.0
      %2034 = vmatprep.subr.mxu0 0.0
      %2035 = vmatpush1.msra.mxu0 0.0
      %2036 = vmatprep.subr.mxu0 0.0
      %2037 = vmatpush1.msra.mxu0 0.0
      %2038 = vmatprep.subr.mxu0 0.0
      %2039 = vmatpush1.msra.mxu0 0.0
      %2040 = vmatprep.subr.mxu0 0.0
      %2041 = vmatpush1.msra.mxu0 0.0
      %2042 = vmatprep.subr.mxu0 0.0
      %2043 = vmatpush1.msra.mxu0 0.0
      %2044 = vmatprep.subr.mxu0 0.0
      %2045 = vmatpush1.msra.mxu0 0.0
      %2046 = vmatprep.subr.mxu0 0.0
      %2047 = vmatpush1.msra.mxu0 0.0
      %2048 = vmatprep.subr.mxu0 0.0
      %2049 = vmatpush1.msra.mxu0 0.0
      %2050 = vmatprep.subr.mxu0 0.0
      %2051 = vmatpush1.msra.mxu0 0.0
      %2052 = vmatprep.subr.mxu0 0.0
      %2053 = vmatpush1.msra.mxu0 0.0
      %2054 = vmatprep.subr.mxu0 0.0
      %2055 = vmatpush1.msra.mxu0 0.0
      %2056 = vmatprep.subr.mxu0 0.0
      %2057 = vmatpush1.msra.mxu0 0.0
      %2058 = vmatprep.subr.mxu0 0.0
      %2059 = vmatpush1.msra.mxu0 0.0
      %2060 = vmatprep.subr.mxu0 0.0
      %2061 = vmatpush1.msra.mxu0 0.0
      %2062 = vmatprep.subr.mxu0 0.0
      %2063 = vmatpush1.msra.mxu0 0.0
      %2064 = vmatprep.subr.mxu0 0.0
      %2065 = vmatpush1.msra.mxu0 0.0
      %2066 = vmatprep.subr.mxu0 0.0
      %2067 = vmatpush1.msra.mxu0 0.0
      %2068 = vmatprep.subr.mxu0 0.0
      %2069 = vmatpush1.msra.mxu0 0.0
      %2070 = vmatprep.subr.mxu0 0.0
      %2071 = vmatpush1.msra.mxu0 0.0
      %2072 = vmatprep.subr.mxu0 0.0
      %2073 = vmatpush1.msra.mxu0 0.0
      %2074 = vmatprep.subr.mxu0 0.0
      %2075 = vmatpush1.msra.mxu0 0.0
      %2076 = vmatprep.subr.mxu0 0.0
      %2077 = vmatpush1.msra.mxu0 0.0
      %2078 = vmatprep.subr.mxu0 0.0
      %2079 = vmatpush1.msra.mxu0 0.0
      %2080 = vmatprep.subr.mxu0 0.0
      %2081 = vmatpush1.msra.mxu0 0.0
      %2082 = vmatprep.subr.mxu0 0.0
      %2083 = vmatpush1.msra.mxu0 0.0
      %2084 = vmatprep.subr.mxu0 0.0
      %2085 = vmatpush1.msra.mxu0 0.0
      %2086 = vmatprep.subr.mxu0 0.0
      %2087 = vmatpush1.msra.mxu0 0.0
      %2088 = vmatprep.subr.mxu0 0.0
      %2089 = vmatpush1.msra.mxu0 0.0
      %2090 = vmatprep.subr.mxu0 0.0
      %2091 = vmatpush1.msra.mxu0 0.0
      %2092 = vmatprep.mubr.f32.mxu0 0.0
      %2093 = vmatmul.mubr.f32.gmra.mrb[0].mxu0 %v2026
      %v2094 = vpop.f32.mrb[0].mxu0
      %v2095 = vadd.f32 0.0, %v2094
      %v2096 = vpop.f32.mrb[0].mxu0
      %2097 = vdwg.mxu0
      %2098 = vmatprep.subr.mxu0 0.0
      %2099 = vmatpush1.msra.mxu0 %v1909
      %2100 = vmatprep.subr.mxu0 0.0
      %2101 = vmatpush1.msra.mxu0 %v1910
      %2102 = vmatprep.subr.mxu0 0.0
      %2103 = vmatpush1.msra.mxu0 0.0
      %2104 = vmatprep.subr.mxu0 0.0
      %2105 = vmatpush1.msra.mxu0 0.0
      %2106 = vmatprep.subr.mxu0 0.0
      %2107 = vmatpush1.msra.mxu0 0.0
      %2108 = vmatprep.subr.mxu0 0.0
      %2109 = vmatpush1.msra.mxu0 0.0
      %2110 = vmatprep.subr.mxu0 0.0
      %2111 = vmatpush1.msra.mxu0 0.0
      %2112 = vmatprep.subr.mxu0 0.0
      %2113 = vmatpush1.msra.mxu0 0.0
      %2114 = vmatprep.subr.mxu0 0.0
      %2115 = vmatpush1.msra.mxu0 0.0
      %2116 = vmatprep.subr.mxu0 0.0
      %2117 = vmatpush1.msra.mxu0 0.0
      %2118 = vmatprep.subr.mxu0 0.0
      %2119 = vmatpush1.msra.mxu0 0.0
      %2120 = vmatprep.subr.mxu0 0.0
      %2121 = vmatpush1.msra.mxu0 0.0
      %2122 = vmatprep.subr.mxu0 0.0
      %2123 = vmatpush1.msra.mxu0 0.0
      %2124 = vmatprep.subr.mxu0 0.0
      %2125 = vmatpush1.msra.mxu0 0.0
      %2126 = vmatprep.subr.mxu0 0.0
      %2127 = vmatpush1.msra.mxu0 0.0
      %2128 = vmatprep.subr.mxu0 0.0
      %2129 = vmatpush1.msra.mxu0 0.0
      %2130 = vmatprep.subr.mxu0 0.0
      %2131 = vmatpush1.msra.mxu0 0.0
      %2132 = vmatprep.subr.mxu0 0.0
      %2133 = vmatpush1.msra.mxu0 0.0
      %2134 = vmatprep.subr.mxu0 0.0
      %2135 = vmatpush1.msra.mxu0 0.0
      %2136 = vmatprep.subr.mxu0 0.0
      %2137 = vmatpush1.msra.mxu0 0.0
      %2138 = vmatprep.subr.mxu0 0.0
      %2139 = vmatpush1.msra.mxu0 0.0
      %2140 = vmatprep.subr.mxu0 0.0
      %2141 = vmatpush1.msra.mxu0 0.0
      %2142 = vmatprep.subr.mxu0 0.0
      %2143 = vmatpush1.msra.mxu0 0.0
      %2144 = vmatprep.subr.mxu0 0.0
      %2145 = vmatpush1.msra.mxu0 0.0
      %2146 = vmatprep.subr.mxu0 0.0
      %2147 = vmatpush1.msra.mxu0 0.0
      %2148 = vmatprep.subr.mxu0 0.0
      %2149 = vmatpush1.msra.mxu0 0.0
      %2150 = vmatprep.subr.mxu0 0.0
      %2151 = vmatpush1.msra.mxu0 0.0
      %2152 = vmatprep.subr.mxu0 0.0
      %2153 = vmatpush1.msra.mxu0 0.0
      %2154 = vmatprep.subr.mxu0 0.0
      %2155 = vmatpush1.msra.mxu0 0.0
      %2156 = vmatprep.subr.mxu0 0.0
      %2157 = vmatpush1.msra.mxu0 0.0
      %2158 = vmatprep.subr.mxu0 0.0
      %2159 = vmatpush1.msra.mxu0 0.0
      %2160 = vmatprep.subr.mxu0 0.0
      %2161 = vmatpush1.msra.mxu0 0.0
      %2162 = vmatprep.mubr.f32.mxu0 0.0
      %2163 = vmatmul.mubr.f32.gmra.mrb[0].mxu0 %v1947
      %v2164 = vpop.f32.mrb[0].mxu0
      %v2165 = vadd.f32 %v2095, %v2164
      %v2166 = vpop.f32.mrb[0].mxu0
      %2167 = vdwg.mxu0
      %v2168 = vsel %vm643, %v2021, 0.0
      %2169 = vadd.xlane.f32.xlu0 %v2168
      %v2170 = vpop.xlane.xlu0 %2169
      %v2172 = vlaneseq
      %v2173 = vshrl.u32 %v2172, 7
      %v2174 = vsub.s32 0, %v2173
      %v2175 = vrot.slane %v1921, %v2174
      %2176 = vrot.lane.b32.xlu0 %v2175, 48
      %v2177 = vpop.permute.xlu0 %2176
      %v2179 = vmul.f32 %v1881, %v2177
      %2181 = vrot.lane.b32.xlu0 %v2179, 80
      %v2182 = vpop.permute.xlu0 %2181
      %v2184 = vsel %vm496, %v2182, 0.0
      %2185 = vadd.xlane.f32.xlu0 %v2184
      %v2186 = vpop.xlane.xlu0 %2185
      %v2187 = vadd.f32 %v2186, %v2170
      %v2188 = vrcp.pop %v2187
      %v2189 = vmul.f32 %v2165, %v2188
      %2191 = vxpose.xlu0.b32.start [1/16] %v1946, 128
      %2192 = vxpose.xlu0.b32.cont [2/16] 0.0, 128
      %2193 = vxpose.xlu0.b32.cont [3/16] 0.0, 128
      %2194 = vxpose.xlu0.b32.cont [4/16] 0.0, 128
      %2195 = vxpose.xlu0.b32.cont [5/16] 0.0, 128
      %2196 = vxpose.xlu0.b32.cont [6/16] 0.0, 128
      %2197 = vxpose.xlu0.b32.cont [7/16] 0.0, 128
      %2198 = vxpose.xlu0.b32.cont [8/16] 0.0, 128
      %2199 = vxpose.xlu0.b32.cont [9/16] 0.0, 128
      %2200 = vxpose.xlu0.b32.cont [10/16] 0.0, 128
      %2201 = vxpose.xlu0.b32.cont [11/16] 0.0, 128
      %2202 = vxpose.xlu0.b32.cont [12/16] 0.0, 128
      %2203 = vxpose.xlu0.b32.cont [13/16] 0.0, 128
      %2204 = vxpose.xlu0.b32.cont [14/16] 0.0, 128
      %2205 = vxpose.xlu0.b32.cont [15/16] 0.0, 128
      %2206 = vxpose.xlu0.b32.end [16/16] 0.0, 128
      %v2207 = vpop.trf.xlu0
      %v2208 = vpop.trf.xlu0
      %v2209 = vpop.trf.xlu0
      %v2210 = vpop.trf.xlu0
      %v2211 = vpop.trf.xlu0
      %v2212 = vpop.trf.xlu0
      %v2213 = vpop.trf.xlu0
      %v2214 = vpop.trf.xlu0
      %v2215 = vpop.trf.xlu0
      %v2216 = vpop.trf.xlu0
      %v2217 = vpop.trf.xlu0
      %v2218 = vpop.trf.xlu0
      %v2219 = vpop.trf.xlu0
      %v2220 = vpop.trf.xlu0
      %v2221 = vpop.trf.xlu0
      %v2222 = vpop.trf.xlu0
      %v2224 = vsel %vm643, %v2207, 0
      %v2227 = vsel %vm643, %v2208, 0
      %2229 = vmatprep.subr.mxu0 0.0
      %2230 = vmatpush1.msra.mxu0 %v2023
      %2231 = vmatprep.subr.mxu0 0.0
      %2232 = vmatpush1.msra.mxu0 0.0
      %2233 = vmatprep.subr.mxu0 0.0
      %2234 = vmatpush1.msra.mxu0 0.0
      %2235 = vmatprep.subr.mxu0 0.0
      %2236 = vmatpush1.msra.mxu0 0.0
      %2237 = vmatprep.subr.mxu0 0.0
      %2238 = vmatpush1.msra.mxu0 0.0
      %2239 = vmatprep.subr.mxu0 0.0
      %2240 = vmatpush1.msra.mxu0 0.0
      %2241 = vmatprep.subr.mxu0 0.0
      %2242 = vmatpush1.msra.mxu0 0.0
      %2243 = vmatprep.subr.mxu0 0.0
      %2244 = vmatpush1.msra.mxu0 0.0
      %2245 = vmatprep.subr.mxu0 0.0
      %2246 = vmatpush1.msra.mxu0 0.0
      %2247 = vmatprep.subr.mxu0 0.0
      %2248 = vmatpush1.msra.mxu0 0.0
      %2249 = vmatprep.subr.mxu0 0.0
      %2250 = vmatpush1.msra.mxu0 0.0
      %2251 = vmatprep.subr.mxu0 0.0
      %2252 = vmatpush1.msra.mxu0 0.0
      %2253 = vmatprep.subr.mxu0 0.0
      %2254 = vmatpush1.msra.mxu0 0.0
      %2255 = vmatprep.subr.mxu0 0.0
      %2256 = vmatpush1.msra.mxu0 0.0
      %2257 = vmatprep.subr.mxu0 0.0
      %2258 = vmatpush1.msra.mxu0 0.0
      %2259 = vmatprep.subr.mxu0 0.0
      %2260 = vmatpush1.msra.mxu0 0.0
      %2261 = vmatprep.subr.mxu0 0.0
      %2262 = vmatpush1.msra.mxu0 0.0
      %2263 = vmatprep.subr.mxu0 0.0
      %2264 = vmatpush1.msra.mxu0 0.0
      %2265 = vmatprep.subr.mxu0 0.0
      %2266 = vmatpush1.msra.mxu0 0.0
      %2267 = vmatprep.subr.mxu0 0.0
      %2268 = vmatpush1.msra.mxu0 0.0
      %2269 = vmatprep.subr.mxu0 0.0
      %2270 = vmatpush1.msra.mxu0 0.0
      %2271 = vmatprep.subr.mxu0 0.0
      %2272 = vmatpush1.msra.mxu0 0.0
      %2273 = vmatprep.subr.mxu0 0.0
      %2274 = vmatpush1.msra.mxu0 0.0
      %2275 = vmatprep.subr.mxu0 0.0
      %2276 = vmatpush1.msra.mxu0 0.0
      %2277 = vmatprep.subr.mxu0 0.0
      %2278 = vmatpush1.msra.mxu0 0.0
      %2279 = vmatprep.subr.mxu0 0.0
      %2280 = vmatpush1.msra.mxu0 0.0
      %2281 = vmatprep.subr.mxu0 0.0
      %2282 = vmatpush1.msra.mxu0 0.0
      %2283 = vmatprep.subr.mxu0 0.0
      %2284 = vmatpush1.msra.mxu0 0.0
      %2285 = vmatprep.subr.mxu0 0.0
      %2286 = vmatpush1.msra.mxu0 0.0
      %2287 = vmatprep.subr.mxu0 0.0
      %2288 = vmatpush1.msra.mxu0 0.0
      %2289 = vmatprep.subr.mxu0 0.0
      %2290 = vmatpush1.msra.mxu0 0.0
      %2291 = vmatprep.subr.mxu0 0.0
      %2292 = vmatpush1.msra.mxu0 0.0
      %2293 = vmatprep.mubr.f32.mxu0 0.0
      %2294 = vmatmul.mubr.f32.gmra.mrb[0].mxu0 %v2224
      %v2295 = vpop.f32.mrb[0].mxu0
      %v2296 = vadd.f32 0.0, %v2295
      %v2297 = vpop.f32.mrb[0].mxu0
      %2298 = vmatprep.mubr.f32.mxu0 0.0
      %2299 = vmatmul.mubr.f32.gmra.mrb[0].mxu0 %v2227
      %v2300 = vpop.f32.mrb[0].mxu0
      %v2301 = vadd.f32 0.0, %v2300
      %v2302 = vpop.f32.mrb[0].mxu0
      %2303 = vdwg.mxu0
      %v2304 = vadd.f32 %v1909, %v2296
      %v2305 = vadd.f32 %v1910, %v2301
      %2306 = vst.msk [vmem:[%s1897] sm:$0xff] %vm643, %v2304
      %2307 = vst.msk [vmem:[%s1897 + $0x8] sm:$0xff] %vm643, %v2305
      %v2308 = vsel %vm1873, %v1940, 0.0
      %v2309 = vrot.slane %v2308, 4
      %v2310 = vadd.f32 %v2308, %v2309
      %v2311 = vrot.slane %v2310, 2
      %v2312 = vadd.f32 %v2310, %v2311
      %v2313 = vrot.slane %v2312, 1
      %v2314 = vadd.f32 %v2312, %v2313
      %v2317 = vunpack.c.l.s4 1966171168
      %v2318 = vunpack.c.0.s8 %v2317
      %v2319 = vlaneseq
      %v2320 = vshrl.u32 %v2319, 7
      %v2321 = vsub.s32 %v2318, %v2320
      %v2322 = vrot.slane %v2314, %v2321
      %v2324 = vunpack.c.l.s4 1966171168
      %v2325 = vunpack.c.0.s8 %v2324
      %v2326 = vlaneseq
      %v2327 = vshrl.u32 %v2326, 7
      %v2328 = vsub.s32 %v2325, %v2327
      %v2329 = vrot.slane %v2322, %v2328
      %2330 = vrot.lane.b32.xlu0 %v2329, 80
      %v2331 = vpop.permute.xlu0 %2330
      %v2333 = vadd.f32 %v1921, %v2331
      %2334 = vst.msk [vmem:[%s1911] sm:$0x1] %vm928, %v2333
      %2335 = vst.msk [vmem:[%s1882] sm:$0x1] %vm930, %v1893
      %2337 = vrot.lane.b32.xlu0 %v1253, 8
      %v2338 = vpop.permute.xlu0 %2337
      %2341 = vrot.lane.b32.xlu0 %v1721, 16
      %v2342 = vpop.permute.xlu0 %2341
      %2345 = vrot.lane.b32.xlu0 %v2189, 24
      %v2346 = vpop.permute.xlu0 %2345
      %v2348 = vsel %vm643, %v802, %v2338
      %v2349 = vsel %vm496, %v2348, %v2342
      %vm2350 = vcmask 195584
      %v2351 = vsel %vm2350, %v2349, %v2346
      %v2352 = vpack.c.bf16 %v2351, %v2351
      %vm2353 = vcmask 257024
      %2354 = vst.msk [vmem:[%s196] sm:$0xf] %vm2353, %v2352
      %p2355 = scmp.lt.s32.totalorder %s18, 1
      %s2356 = scalar_select %p2355, %s18, 1
      %p2357 = scmp.lt.s32.totalorder %s19, 0
      %s2358 = scalar_select %p2357, %s19, 0
      %s2359 = sadd.s32 %s2358, %s2356
      %s2360 = smul.addr %s2359, 4
      %s2361 = scalar_lea.vmem %s3, %s2360
      // Predicated region
      $region37: #{performer_model_forward.14} parent=31 // pred_check
        %p2362 = pneg %p116
      $region38: #{performer_model_forward.14} parent=31 // pred_check_branch
        %2364 = sbr.rel (%p2362) target = $region40
      $region39: #{performer_model_forward.14} parent=31 // pred_region
        _
      $region40: #{performer_model_forward.14} parent=31 // pred_fallthru
        _
    $region32: #{performer_model_forward.14} parent=5 // pred_fallthru
      _
    %p2365 = scmp.le.s32.totalorder 2, %s9
    // Predicated region
    $region41: #{performer_model_forward.14} parent=5 // pred_check
      %p2366 = pneg %p2365
    $region42: #{performer_model_forward.14} parent=5 // pred_check_branch
      %2368 = sbr.rel (%p2366) target = $region44
    $region43: #{performer_model_forward.14} parent=5 // pred_region
      %s2369 = ssub.s32 %s9, 2
      // Predicated region
      $region45: #{performer_model_forward.14} parent=43 // pred_check
        %p2370 = pneg %p122
      $region46: #{performer_model_forward.14} parent=43 // pred_check_branch
        %2372 = sbr.rel (%p2370) target = $region48
      $region47: #{performer_model_forward.14} parent=43 // pred_region
        %p2373 = scmp.lt.s32.totalorder %s20, 1
        %s2374 = scalar_select %p2373, %s20, 1
        %p2375 = scmp.lt.s32.totalorder %s21, 0
        %s2376 = scalar_select %p2375, %s21, 0
        %s2377 = sadd.s32 %s2376, %s2374
        %s2378 = smul.addr %s2377, 4
        %s2379 = scalar_lea.vmem %s3, %s2378
      $region48: #{performer_model_forward.14} parent=43 // pred_fallthru
        _
    $region44: #{performer_model_forward.14} parent=5 // pred_fallthru
      _
  $region6: #{performer_model_forward.14} parent=0 // loop_footer
    %s13 = sadd.s32 1, %s9
  $region7: #{performer_model_forward.14} parent=0 // loop_footer_branch
    %8 = sbr.rel target = $region3
  $region8: #{performer_model_forward.14} parent=0 // loop_exit
    _

</llo_original>
